<compile_context>
chip_gen: v6e
topology: v6e:2x2x1
jax: 0.10.0
libtpu: 0.0.40
codegen_flags: <defaults>
</compile_context>

<pallas_src>
import functools

import jax
import jax.numpy as jnp
import numpy as np
from jax import lax
from jax.experimental import pallas as pl
from jax.experimental.pallas import tpu as pltpu


def _round_up(v, m):
    return ((v + m - 1) // m) * m


_FULL_UNROLL_T = 16  # fully unroll the time loop only for tiny T


def _make_fused_kernel(T, Bp, Hp, num_layers):
    """Fused kernel for static (T, padded batch, padded hidden, layers).

    Ref layout (all whole-array VMEM blocks, no grid):
      refs[0]                 : x_flat    (T*Bp, D0)     bf16
      refs[1 + 3*l + 0]       : W_ih_l^T  (D_l, 4*Hp)    bf16  (gate-major [i,f,o,g])
      refs[1 + 3*l + 1]       : W_hh_l^T  (Hp, 4*Hp)     bf16
      refs[1 + 3*l + 2]       : bias_l    (1, 4*Hp)      f32   (b_ih + b_hh)
      refs[1 + 3*L]           : fc_w^T    (Hp, Op)       bf16
      refs[2 + 3*L]           : fc_b      (1, Op)        f32
      refs[3 + 3*L]           : out       (Bp, Op)       f32   (output)
      refs[4 + 3*L]           : gates_sc  (T*Bp, 4*Hp)   bf16  (scratch)
      refs[5 + 3*L]           : seq_sc    (T*Bp, Hp)     bf16  (scratch, L>1 only)
    """
    unrolled = T <= _FULL_UNROLL_T

    def kernel(*refs):
        x_ref = refs[0]
        layer_refs = refs[1:1 + 3 * num_layers]
        fc_w_ref = refs[1 + 3 * num_layers]
        fc_b_ref = refs[2 + 3 * num_layers]
        out_ref = refs[3 + 3 * num_layers]
        gates_sc = refs[4 + 3 * num_layers]
        seq_sc = refs[5 + 3 * num_layers] if num_layers > 1 else None

        h = None
        for layer in range(num_layers):
            w_ih = layer_refs[3 * layer + 0][...]   # (D_l, 4Hp) bf16
            w_hh = layer_refs[3 * layer + 1][...]   # (Hp, 4Hp)  bf16
            bias = layer_refs[3 * layer + 2][...]   # (1, 4Hp)   f32

            # Hoisted input projection: ONE MXU matmul over all timesteps,
            # bias folded in, result stored bf16 (halves the slab bytes).
            src = x_ref[...] if layer == 0 else seq_sc[...]
            gates_sc[...] = (
                jnp.dot(src, w_ih, preferred_element_type=jnp.float32) + bias
            ).astype(jnp.bfloat16)

            store_seq = (layer + 1 < num_layers)

            def step(h, c, r0):
                # Serial critical path: h @ W_hh (MXU) + gate nonlinearities.
                g = gates_sc[pl.ds(r0, Bp), :].astype(jnp.float32) + jnp.dot(
                    h.astype(jnp.bfloat16), w_hh,
                    preferred_element_type=jnp.float32)
                # Column-only transcendentals: sigmoid on the contiguous
                # i|f|o block (3*Hp lanes), tanh on the g block (Hp lanes).
                sig = jax.nn.sigmoid(g[:, :3 * Hp])
                g_gate = jnp.tanh(g[:, 3 * Hp:])
                i_g = sig[:, 0:Hp]
                f_g = sig[:, Hp:2 * Hp]
                o_g = sig[:, 2 * Hp:3 * Hp]
                c = f_g * c + i_g * g_gate
                h = o_g * jnp.tanh(c)
                if store_seq:
                    # Hp is a multiple of 128 -> unmasked, lane-dense store.
                    seq_sc[pl.ds(r0, Bp), :] = h.astype(jnp.bfloat16)
                return h, c

            h0 = jnp.zeros((Bp, Hp), jnp.float32)
            c0 = jnp.zeros((Bp, Hp), jnp.float32)

            if unrolled:
                h, c = h0, c0
                for t in range(T):
                    h, c = step(h, c, t * Bp)
            else:
                if T % 4 == 0:
                    unroll = 4
                elif T % 2 == 0:
                    unroll = 2
                else:
                    unroll = 1

                def body(t, carry):
                    hh, cc = carry
                    r0 = pl.multiple_of(t * Bp, 8)  # sublane-aligned offset
                    return step(hh, cc, r0)

                h, c = lax.fori_loop(0, T, body, (h0, c0), unroll=unroll)

        # Final Linear on the last timestep's hidden state of the top layer.
        # Op is a multiple of 128 -> lane-dense, unmasked output store.
        out_ref[...] = (
            jnp.dot(h.astype(jnp.bfloat16), fc_w_ref[...],
                    preferred_element_type=jnp.float32)
            + fc_b_ref[...]
        )

    return kernel


def _prep_lstm_matrix(w, H, Hp, in_pad):
    """(4H, Din) PyTorch [i,f,g,o] row layout -> (Din+in_pad, 4Hp) bf16,
    gate-major columns ordered [i, f, o, g], each gate padded H -> Hp."""
    blocks = (w[0:H], w[H:2 * H], w[3 * H:4 * H], w[2 * H:3 * H])  # i,f,o,g
    blocks = [jnp.pad(b, ((0, Hp - H), (0, in_pad))) for b in blocks]
    return jnp.concatenate(blocks, axis=0).T.astype(jnp.bfloat16)


def _prep_lstm_bias(b_ih, b_hh, H, Hp):
    b = (b_ih + b_hh).astype(jnp.float32)
    blocks = (b[0:H], b[H:2 * H], b[3 * H:4 * H], b[2 * H:3 * H])  # i,f,o,g
    blocks = [jnp.pad(v, (0, Hp - H)) for v in blocks]
    return jnp.concatenate(blocks, axis=0).reshape(1, 4 * Hp)


@functools.partial(jax.jit, static_argnames=("input_size",))
def lstm_forward(x, params, *, input_size):
    """Mirrors LSTM.forward: view(B, -1, input_size) -> multilayer LSTM with
    zero initial state (batch_first) -> Linear on the last timestep's h."""
    x = x.astype(jnp.float32)
    B = x.shape[0]
    x = x.reshape(B, -1, input_size)            # (B, T, D), batch_first
    T = x.shape[1]

    num_layers = len(params["lstm"])
    H = params["lstm"][0][1].shape[1]           # w_hh is (4H, H)
    O = params["fc_w"].shape[0]

    Bp = _round_up(B, 8)                        # sublane multiple
    Hp = _round_up(H, 128)                      # lane-dense gate blocks
    Op = _round_up(O, 128)                      # lane-dense output store

    # Time-major, batch padded with zeros, flattened to (T*Bp, D) for the
    # hoisted per-layer input-projection matmul. bf16 activations, f32 accum.
    x_t = jnp.transpose(x, (1, 0, 2))           # (T, B, D)
    x_t = jnp.pad(x_t, ((0, 0), (0, Bp - B), (0, 0)))
    x_flat = x_t.reshape(T * Bp, input_size).astype(jnp.bfloat16)

    flat_w = []
    for layer, (w_ih, w_hh, b_ih, b_hh) in enumerate(params["lstm"]):
        in_pad = 0 if layer == 0 else (Hp - H)
        flat_w.append(_prep_lstm_matrix(w_ih, H, Hp, in_pad))   # (D_l, 4Hp)
        flat_w.append(_prep_lstm_matrix(w_hh, H, Hp, Hp - H))   # (Hp, 4Hp)
        flat_w.append(_prep_lstm_bias(b_ih, b_hh, H, Hp))       # (1, 4Hp)

    fc_w_t = jnp.pad(params["fc_w"].astype(jnp.float32),
                     ((0, Op - O), (0, Hp - H))).T.astype(jnp.bfloat16)  # (Hp, Op)
    fc_b_p = jnp.pad(params["fc_b"].astype(jnp.float32),
                     (0, Op - O)).reshape(1, Op)

    scratch_shapes = [pltpu.VMEM((T * Bp, 4 * Hp), jnp.bfloat16)]  # gate slab
    if num_layers > 1:
        scratch_shapes.append(pltpu.VMEM((T * Bp, Hp), jnp.bfloat16))  # h sequence

    # Explicit VMEM budget sized from the actual resident footprint
    # (x + weights + scratch + out + the transient f32 projection result),
    # with 2x headroom -- required headroom on v5e's 16 MiB scoped default.
    w_bytes = 0
    for layer in range(num_layers):
        d_in = input_size if layer == 0 else Hp
        w_bytes += d_in * 4 * Hp * 2 + Hp * 4 * Hp * 2 + 4 * Hp * 4
    total_bytes = (
        T * Bp * input_size * 2                      # x_flat
        + w_bytes
        + Hp * Op * 2 + Op * 4                       # fc
        + T * Bp * 4 * Hp * 2                        # gate slab (bf16)
        + T * Bp * 4 * Hp * 4                        # transient f32 projection
        + (T * Bp * Hp * 2 if num_layers > 1 else 0)  # seq buffer
        + Bp * Op * 4                                # out
    )
    vmem_limit = min(128 * 1024 * 1024,
                     max(2 * total_bytes + (4 << 20), 32 << 20))

    kernel = _make_fused_kernel(T, Bp, Hp, num_layers)
    out_pad = pl.pallas_call(
        kernel,
        out_shape=jax.ShapeDtypeStruct((Bp, Op), jnp.float32),
        scratch_shapes=scratch_shapes,
        compiler_params=pltpu.CompilerParams(vmem_limit_bytes=vmem_limit),
    )(x_flat, *flat_w, fc_w_t, fc_b_p)

    return out_pad[:B, :O]


def init_params(key, input_size, hidden_size, num_layers, output_size):
    """Deterministic init matching PyTorch param shapes (U[-1/sqrt(H), 1/sqrt(H)])."""
    k = 1.0 / np.sqrt(hidden_size)
    lstm_params = []
    for layer in range(num_layers):
        d_in = input_size if layer == 0 else hidden_size
        key, k1, k2, k3, k4 = jax.random.split(key, 5)
        w_ih = jax.random.uniform(k1, (4 * hidden_size, d_in), jnp.float32, -k, k)
        w_hh = jax.random.uniform(k2, (4 * hidden_size, hidden_size), jnp.float32, -k, k)
        b_ih = jax.random.uniform(k3, (4 * hidden_size,), jnp.float32, -k, k)
        b_hh = jax.random.uniform(k4, (4 * hidden_size,), jnp.float32, -k, k)
        lstm_params.append((w_ih, w_hh, b_ih, b_hh))
    key, k5, k6 = jax.random.split(key, 3)
    fc_w = jax.random.uniform(k5, (output_size, hidden_size), jnp.float32, -k, k)
    fc_b = jax.random.uniform(k6, (output_size,), jnp.float32, -k, k)
    return {"lstm": lstm_params, "fc_w": fc_w, "fc_b": fc_b}


def _reference_forward(x, params, input_size):
    """Pure-JAX reference mirroring the kernel's math (bf16 matmul inputs,
    bf16 gate-slab storage, f32 accumulation, f32 recurrent state)."""
    x = x.astype(jnp.float32)
    B = x.shape[0]
    x = x.reshape(B, -1, input_size)
    T = x.shape[1]
    seq = jnp.transpose(x, (1, 0, 2)).astype(jnp.bfloat16)   # (T, B, D)
    h_last = None
    for (w_ih, w_hh, b_ih, b_hh) in params["lstm"]:
        H = w_hh.shape[1]
        wih = w_ih.T.astype(jnp.bfloat16)                    # (D, 4H)
        whh = w_hh.T.astype(jnp.bfloat16)                    # (H, 4H)
        bias = (b_ih + b_hh).astype(jnp.float32)
        d_in = wih.shape[0]
        gates_x = (jnp.dot(seq.reshape(T * B, d_in), wih,
                           preferred_element_type=jnp.float32)
                   + bias).astype(jnp.bfloat16)
        gates_x = gates_x.reshape(T, B, 4 * H)

        def step(carry, g_x):
            h, c = carry
            g = g_x.astype(jnp.float32) + jnp.dot(
                h.astype(jnp.bfloat16), whh, preferred_element_type=jnp.float32)
            i = jax.nn.sigmoid(g[:, 0 * H:1 * H])
            f = jax.nn.sigmoid(g[:, 1 * H:2 * H])
            gg = jnp.tanh(g[:, 2 * H:3 * H])
            o = jax.nn.sigmoid(g[:, 3 * H:4 * H])
            c = f * c + i * gg
            h = o * jnp.tanh(c)
            return (h, c), h.astype(jnp.bfloat16)

        init = (jnp.zeros((B, H), jnp.float32), jnp.zeros((B, H), jnp.float32))
        (h_last, _), seq = lax.scan(step, init, gates_x)
    out = jnp.dot(h_last.astype(jnp.bfloat16),
                  params["fc_w"].T.astype(jnp.bfloat16),
                  preferred_element_type=jnp.float32) + params["fc_b"]
    return out


if __name__ == "__main__":
    INPUT_SIZE = 32
    HIDDEN_SIZE = 32
    NUM_LAYERS = 2
    OUTPUT_SIZE = 16
    B, T = 2, 8

    key = jax.random.PRNGKey(0)
    key, kx = jax.random.split(key)
    x = jax.random.normal(kx, (B, T, INPUT_SIZE), jnp.float32)

    params = init_params(key, INPUT_SIZE, HIDDEN_SIZE, NUM_LAYERS, OUTPUT_SIZE)

    # 1) Small T -> fully unrolled time loop path.
    out = jax.block_until_ready(lstm_forward(x, params, input_size=INPUT_SIZE))
    ref = _reference_forward(x, params, INPUT_SIZE)
    np.testing.assert_allclose(np.asarray(out), np.asarray(ref), rtol=2e-2, atol=2e-2)
    assert out.shape == (B, OUTPUT_SIZE) and out.dtype == jnp.float32

    # 2) Longer T -> lax.fori_loop time loop path (bounded live ranges).
    T2 = 32
    key, kx2 = jax.random.split(key)
    x2 = jax.random.normal(kx2, (B, T2, INPUT_SIZE), jnp.float32)
    out2 = jax.block_until_ready(lstm_forward(x2, params, input_size=INPUT_SIZE))
    ref2 = _reference_forward(x2, params, INPUT_SIZE)
    np.testing.assert_allclose(np.asarray(out2), np.asarray(ref2), rtol=2e-2, atol=2e-2)
    assert out2.shape == (B, OUTPUT_SIZE)

    print("KERNEL_OK")
</pallas_src>

<mosaic_0001>
module attributes {stable_mosaic.version = 11 : i64} {
  func.func @kernel(%arg0: memref<64x32xbf16, #tpu.memory_space<vmem>>, %arg1: memref<32x512xbf16, #tpu.memory_space<vmem>>, %arg2: memref<128x512xbf16, #tpu.memory_space<vmem>>, %arg3: memref<1x512xf32, #tpu.memory_space<vmem>>, %arg4: memref<128x512xbf16, #tpu.memory_space<vmem>>, %arg5: memref<128x512xbf16, #tpu.memory_space<vmem>>, %arg6: memref<1x512xf32, #tpu.memory_space<vmem>>, %arg7: memref<128x128xbf16, #tpu.memory_space<vmem>>, %arg8: memref<1x128xf32, #tpu.memory_space<vmem>>, %arg9: memref<8x128xf32, #tpu.memory_space<vmem>>, %arg10: memref<64x512xbf16, #tpu.memory_space<vmem>>, %arg11: memref<64x128xbf16, #tpu.memory_space<vmem>>) attributes {dimension_semantics = [], scalar_prefetch = 0 : i64, scratch_operands = 2 : i64, tpu.core_type = #tpu.core_type<tc>} {
    %c0 = arith.constant 0 : index
    %c0_0 = arith.constant 0 : index
    %0 = vector.load %arg1[%c0, %c0_0] : memref<32x512xbf16, #tpu.memory_space<vmem>>, vector<32x512xbf16>
    %c0_1 = arith.constant 0 : index
    %c0_2 = arith.constant 0 : index
    %1 = vector.load %arg2[%c0_1, %c0_2] : memref<128x512xbf16, #tpu.memory_space<vmem>>, vector<128x512xbf16>
    %c0_3 = arith.constant 0 : index
    %c0_4 = arith.constant 0 : index
    %2 = vector.load %arg3[%c0_3, %c0_4] : memref<1x512xf32, #tpu.memory_space<vmem>>, vector<1x512xf32>
    %c0_5 = arith.constant 0 : index
    %c0_6 = arith.constant 0 : index
    %3 = vector.load %arg0[%c0_5, %c0_6] : memref<64x32xbf16, #tpu.memory_space<vmem>>, vector<64x32xbf16>
    %cst = arith.constant dense<0.000000e+00> : vector<64x512xf32>
    %4 = tpu.matmul %3, %0, %cst {dimension_numbers = #tpu.dot_dimension_numbers<[1], [0], [0], [1], [0, 0, 1, 1], [], []>} : vector<64x32xbf16>, vector<32x512xbf16>, vector<64x512xf32> -> vector<64x512xf32>
    %5 = vector.broadcast %2 : vector<1x512xf32> to vector<64x512xf32>
    %6 = arith.addf %4, %5 : vector<64x512xf32>
    %7 = arith.truncf %6 : vector<64x512xf32> to vector<64x512xbf16>
    %c0_7 = arith.constant 0 : index
    %c0_8 = arith.constant 0 : index
    %8 = vector.load %arg10[%c0_7, %c0_8] : memref<64x512xbf16, #tpu.memory_space<vmem>>, vector<64x512xbf16>
    tpu.vector_store %arg10[%c0_7, %c0_8], %7 {strides = array<i32>} : memref<64x512xbf16, #tpu.memory_space<vmem>>, vector<64x512xbf16>,
    %cst_9 = arith.constant 0.000000e+00 : f32
    %9 = vector.broadcast %cst_9 : f32 to vector<8x128xf32>
    %cst_10 = arith.constant 0.000000e+00 : f32
    %10 = vector.broadcast %cst_10 : f32 to vector<8x128xf32>
    %c0_11 = arith.constant 0 : index
    %c0_12 = arith.constant 0 : index
    %11 = vector.load %arg10[%c0_11, %c0_12] : memref<64x512xbf16, #tpu.memory_space<vmem>>, vector<8x512xbf16>
    %12 = arith.extf %11 : vector<8x512xbf16> to vector<8x512xf32>
    %13 = arith.truncf %9 : vector<8x128xf32> to vector<8x128xbf16>
    %cst_13 = arith.constant dense<0.000000e+00> : vector<8x512xf32>
    %14 = tpu.matmul %13, %1, %cst_13 {dimension_numbers = #tpu.dot_dimension_numbers<[1], [0], [0], [1], [0, 0, 1, 1], [], []>} : vector<8x128xbf16>, vector<128x512xbf16>, vector<8x512xf32> -> vector<8x512xf32>
    %15 = arith.addf %12, %14 : vector<8x512xf32>
    %16 = vector.extract_strided_slice %15 {offsets = [0, 0], sizes = [8, 384], strides = [1, 1]} : vector<8x512xf32> to vector<8x384xf32>
    %17 = arith.negf %16 : vector<8x384xf32>
    %18 = math.exp %17 : vector<8x384xf32>
    %cst_14 = arith.constant 1.000000e+00 : f32
    %19 = vector.broadcast %cst_14 : f32 to vector<8x384xf32>
    %20 = arith.addf %19, %18 : vector<8x384xf32>
    %21 = arith.divf %19, %20 : vector<8x384xf32>
    %22 = vector.extract_strided_slice %15 {offsets = [0, 384], sizes = [8, 128], strides = [1, 1]} : vector<8x512xf32> to vector<8x128xf32>
    %23 = math.tanh %22 : vector<8x128xf32>
    %24 = vector.extract_strided_slice %21 {offsets = [0, 0], sizes = [8, 128], strides = [1, 1]} : vector<8x384xf32> to vector<8x128xf32>
    %25 = vector.extract_strided_slice %21 {offsets = [0, 128], sizes = [8, 128], strides = [1, 1]} : vector<8x384xf32> to vector<8x128xf32>
    %26 = vector.extract_strided_slice %21 {offsets = [0, 256], sizes = [8, 128], strides = [1, 1]} : vector<8x384xf32> to vector<8x128xf32>
    %27 = arith.mulf %25, %10 : vector<8x128xf32>
    %28 = arith.mulf %24, %23 : vector<8x128xf32>
    %29 = arith.addf %27, %28 : vector<8x128xf32>
    %30 = math.tanh %29 : vector<8x128xf32>
    %31 = arith.mulf %26, %30 : vector<8x128xf32>
    %32 = arith.truncf %31 : vector<8x128xf32> to vector<8x128xbf16>
    %c0_15 = arith.constant 0 : index
    %c0_16 = arith.constant 0 : index
    %33 = vector.load %arg11[%c0_15, %c0_16] : memref<64x128xbf16, #tpu.memory_space<vmem>>, vector<8x128xbf16>
    tpu.vector_store %arg11[%c0_15, %c0_16], %32 {strides = array<i32>} : memref<64x128xbf16, #tpu.memory_space<vmem>>, vector<8x128xbf16>,
    %c8 = arith.constant 8 : index
    %c0_17 = arith.constant 0 : index
    %34 = vector.load %arg10[%c8, %c0_17] : memref<64x512xbf16, #tpu.memory_space<vmem>>, vector<8x512xbf16>
    %35 = arith.extf %34 : vector<8x512xbf16> to vector<8x512xf32>
    %36 = arith.truncf %31 : vector<8x128xf32> to vector<8x128xbf16>
    %cst_18 = arith.constant dense<0.000000e+00> : vector<8x512xf32>
    %37 = tpu.matmul %36, %1, %cst_18 {dimension_numbers = #tpu.dot_dimension_numbers<[1], [0], [0], [1], [0, 0, 1, 1], [], []>} : vector<8x128xbf16>, vector<128x512xbf16>, vector<8x512xf32> -> vector<8x512xf32>
    %38 = arith.addf %35, %37 : vector<8x512xf32>
    %39 = vector.extract_strided_slice %38 {offsets = [0, 0], sizes = [8, 384], strides = [1, 1]} : vector<8x512xf32> to vector<8x384xf32>
    %40 = arith.negf %39 : vector<8x384xf32>
    %41 = math.exp %40 : vector<8x384xf32>
    %cst_19 = arith.constant 1.000000e+00 : f32
    %42 = vector.broadcast %cst_19 : f32 to vector<8x384xf32>
    %43 = arith.addf %42, %41 : vector<8x384xf32>
    %44 = arith.divf %42, %43 : vector<8x384xf32>
    %45 = vector.extract_strided_slice %38 {offsets = [0, 384], sizes = [8, 128], strides = [1, 1]} : vector<8x512xf32> to vector<8x128xf32>
    %46 = math.tanh %45 : vector<8x128xf32>
    %47 = vector.extract_strided_slice %44 {offsets = [0, 0], sizes = [8, 128], strides = [1, 1]} : vector<8x384xf32> to vector<8x128xf32>
    %48 = vector.extract_strided_slice %44 {offsets = [0, 128], sizes = [8, 128], strides = [1, 1]} : vector<8x384xf32> to vector<8x128xf32>
    %49 = vector.extract_strided_slice %44 {offsets = [0, 256], sizes = [8, 128], strides = [1, 1]} : vector<8x384xf32> to vector<8x128xf32>
    %50 = arith.mulf %48, %29 : vector<8x128xf32>
    %51 = arith.mulf %47, %46 : vector<8x128xf32>
    %52 = arith.addf %50, %51 : vector<8x128xf32>
    %53 = math.tanh %52 : vector<8x128xf32>
    %54 = arith.mulf %49, %53 : vector<8x128xf32>
    %55 = arith.truncf %54 : vector<8x128xf32> to vector<8x128xbf16>
    %c8_20 = arith.constant 8 : index
    %c0_21 = arith.constant 0 : index
    %56 = vector.load %arg11[%c8_20, %c0_21] : memref<64x128xbf16, #tpu.memory_space<vmem>>, vector<8x128xbf16>
    tpu.vector_store %arg11[%c8_20, %c0_21], %55 {strides = array<i32>} : memref<64x128xbf16, #tpu.memory_space<vmem>>, vector<8x128xbf16>,
    %c16 = arith.constant 16 : index
    %c0_22 = arith.constant 0 : index
    %57 = vector.load %arg10[%c16, %c0_22] : memref<64x512xbf16, #tpu.memory_space<vmem>>, vector<8x512xbf16>
    %58 = arith.extf %57 : vector<8x512xbf16> to vector<8x512xf32>
    %59 = arith.truncf %54 : vector<8x128xf32> to vector<8x128xbf16>
    %cst_23 = arith.constant dense<0.000000e+00> : vector<8x512xf32>
    %60 = tpu.matmul %59, %1, %cst_23 {dimension_numbers = #tpu.dot_dimension_numbers<[1], [0], [0], [1], [0, 0, 1, 1], [], []>} : vector<8x128xbf16>, vector<128x512xbf16>, vector<8x512xf32> -> vector<8x512xf32>
    %61 = arith.addf %58, %60 : vector<8x512xf32>
    %62 = vector.extract_strided_slice %61 {offsets = [0, 0], sizes = [8, 384], strides = [1, 1]} : vector<8x512xf32> to vector<8x384xf32>
    %63 = arith.negf %62 : vector<8x384xf32>
    %64 = math.exp %63 : vector<8x384xf32>
    %cst_24 = arith.constant 1.000000e+00 : f32
    %65 = vector.broadcast %cst_24 : f32 to vector<8x384xf32>
    %66 = arith.addf %65, %64 : vector<8x384xf32>
    %67 = arith.divf %65, %66 : vector<8x384xf32>
    %68 = vector.extract_strided_slice %61 {offsets = [0, 384], sizes = [8, 128], strides = [1, 1]} : vector<8x512xf32> to vector<8x128xf32>
    %69 = math.tanh %68 : vector<8x128xf32>
    %70 = vector.extract_strided_slice %67 {offsets = [0, 0], sizes = [8, 128], strides = [1, 1]} : vector<8x384xf32> to vector<8x128xf32>
    %71 = vector.extract_strided_slice %67 {offsets = [0, 128], sizes = [8, 128], strides = [1, 1]} : vector<8x384xf32> to vector<8x128xf32>
    %72 = vector.extract_strided_slice %67 {offsets = [0, 256], sizes = [8, 128], strides = [1, 1]} : vector<8x384xf32> to vector<8x128xf32>
    %73 = arith.mulf %71, %52 : vector<8x128xf32>
    %74 = arith.mulf %70, %69 : vector<8x128xf32>
    %75 = arith.addf %73, %74 : vector<8x128xf32>
    %76 = math.tanh %75 : vector<8x128xf32>
    %77 = arith.mulf %72, %76 : vector<8x128xf32>
    %78 = arith.truncf %77 : vector<8x128xf32> to vector<8x128xbf16>
    %c16_25 = arith.constant 16 : index
    %c0_26 = arith.constant 0 : index
    %79 = vector.load %arg11[%c16_25, %c0_26] : memref<64x128xbf16, #tpu.memory_space<vmem>>, vector<8x128xbf16>
    tpu.vector_store %arg11[%c16_25, %c0_26], %78 {strides = array<i32>} : memref<64x128xbf16, #tpu.memory_space<vmem>>, vector<8x128xbf16>,
    %c24 = arith.constant 24 : index
    %c0_27 = arith.constant 0 : index
    %80 = vector.load %arg10[%c24, %c0_27] : memref<64x512xbf16, #tpu.memory_space<vmem>>, vector<8x512xbf16>
    %81 = arith.extf %80 : vector<8x512xbf16> to vector<8x512xf32>
    %82 = arith.truncf %77 : vector<8x128xf32> to vector<8x128xbf16>
    %cst_28 = arith.constant dense<0.000000e+00> : vector<8x512xf32>
    %83 = tpu.matmul %82, %1, %cst_28 {dimension_numbers = #tpu.dot_dimension_numbers<[1], [0], [0], [1], [0, 0, 1, 1], [], []>} : vector<8x128xbf16>, vector<128x512xbf16>, vector<8x512xf32> -> vector<8x512xf32>
    %84 = arith.addf %81, %83 : vector<8x512xf32>
    %85 = vector.extract_strided_slice %84 {offsets = [0, 0], sizes = [8, 384], strides = [1, 1]} : vector<8x512xf32> to vector<8x384xf32>
    %86 = arith.negf %85 : vector<8x384xf32>
    %87 = math.exp %86 : vector<8x384xf32>
    %cst_29 = arith.constant 1.000000e+00 : f32
    %88 = vector.broadcast %cst_29 : f32 to vector<8x384xf32>
    %89 = arith.addf %88, %87 : vector<8x384xf32>
    %90 = arith.divf %88, %89 : vector<8x384xf32>
    %91 = vector.extract_strided_slice %84 {offsets = [0, 384], sizes = [8, 128], strides = [1, 1]} : vector<8x512xf32> to vector<8x128xf32>
    %92 = math.tanh %91 : vector<8x128xf32>
    %93 = vector.extract_strided_slice %90 {offsets = [0, 0], sizes = [8, 128], strides = [1, 1]} : vector<8x384xf32> to vector<8x128xf32>
    %94 = vector.extract_strided_slice %90 {offsets = [0, 128], sizes = [8, 128], strides = [1, 1]} : vector<8x384xf32> to vector<8x128xf32>
    %95 = vector.extract_strided_slice %90 {offsets = [0, 256], sizes = [8, 128], strides = [1, 1]} : vector<8x384xf32> to vector<8x128xf32>
    %96 = arith.mulf %94, %75 : vector<8x128xf32>
    %97 = arith.mulf %93, %92 : vector<8x128xf32>
    %98 = arith.addf %96, %97 : vector<8x128xf32>
    %99 = math.tanh %98 : vector<8x128xf32>
    %100 = arith.mulf %95, %99 : vector<8x128xf32>
    %101 = arith.truncf %100 : vector<8x128xf32> to vector<8x128xbf16>
    %c24_30 = arith.constant 24 : index
    %c0_31 = arith.constant 0 : index
    %102 = vector.load %arg11[%c24_30, %c0_31] : memref<64x128xbf16, #tpu.memory_space<vmem>>, vector<8x128xbf16>
    tpu.vector_store %arg11[%c24_30, %c0_31], %101 {strides = array<i32>} : memref<64x128xbf16, #tpu.memory_space<vmem>>, vector<8x128xbf16>,
    %c32 = arith.constant 32 : index
    %c0_32 = arith.constant 0 : index
    %103 = vector.load %arg10[%c32, %c0_32] : memref<64x512xbf16, #tpu.memory_space<vmem>>, vector<8x512xbf16>
    %104 = arith.extf %103 : vector<8x512xbf16> to vector<8x512xf32>
    %105 = arith.truncf %100 : vector<8x128xf32> to vector<8x128xbf16>
    %cst_33 = arith.constant dense<0.000000e+00> : vector<8x512xf32>
    %106 = tpu.matmul %105, %1, %cst_33 {dimension_numbers = #tpu.dot_dimension_numbers<[1], [0], [0], [1], [0, 0, 1, 1], [], []>} : vector<8x128xbf16>, vector<128x512xbf16>, vector<8x512xf32> -> vector<8x512xf32>
    %107 = arith.addf %104, %106 : vector<8x512xf32>
    %108 = vector.extract_strided_slice %107 {offsets = [0, 0], sizes = [8, 384], strides = [1, 1]} : vector<8x512xf32> to vector<8x384xf32>
    %109 = arith.negf %108 : vector<8x384xf32>
    %110 = math.exp %109 : vector<8x384xf32>
    %cst_34 = arith.constant 1.000000e+00 : f32
    %111 = vector.broadcast %cst_34 : f32 to vector<8x384xf32>
    %112 = arith.addf %111, %110 : vector<8x384xf32>
    %113 = arith.divf %111, %112 : vector<8x384xf32>
    %114 = vector.extract_strided_slice %107 {offsets = [0, 384], sizes = [8, 128], strides = [1, 1]} : vector<8x512xf32> to vector<8x128xf32>
    %115 = math.tanh %114 : vector<8x128xf32>
    %116 = vector.extract_strided_slice %113 {offsets = [0, 0], sizes = [8, 128], strides = [1, 1]} : vector<8x384xf32> to vector<8x128xf32>
    %117 = vector.extract_strided_slice %113 {offsets = [0, 128], sizes = [8, 128], strides = [1, 1]} : vector<8x384xf32> to vector<8x128xf32>
    %118 = vector.extract_strided_slice %113 {offsets = [0, 256], sizes = [8, 128], strides = [1, 1]} : vector<8x384xf32> to vector<8x128xf32>
    %119 = arith.mulf %117, %98 : vector<8x128xf32>
    %120 = arith.mulf %116, %115 : vector<8x128xf32>
    %121 = arith.addf %119, %120 : vector<8x128xf32>
    %122 = math.tanh %121 : vector<8x128xf32>
    %123 = arith.mulf %118, %122 : vector<8x128xf32>
    %124 = arith.truncf %123 : vector<8x128xf32> to vector<8x128xbf16>
    %c32_35 = arith.constant 32 : index
    %c0_36 = arith.constant 0 : index
    %125 = vector.load %arg11[%c32_35, %c0_36] : memref<64x128xbf16, #tpu.memory_space<vmem>>, vector<8x128xbf16>
    tpu.vector_store %arg11[%c32_35, %c0_36], %124 {strides = array<i32>} : memref<64x128xbf16, #tpu.memory_space<vmem>>, vector<8x128xbf16>,
    %c40 = arith.constant 40 : index
    %c0_37 = arith.constant 0 : index
    %126 = vector.load %arg10[%c40, %c0_37] : memref<64x512xbf16, #tpu.memory_space<vmem>>, vector<8x512xbf16>
    %127 = arith.extf %126 : vector<8x512xbf16> to vector<8x512xf32>
    %128 = arith.truncf %123 : vector<8x128xf32> to vector<8x128xbf16>
    %cst_38 = arith.constant dense<0.000000e+00> : vector<8x512xf32>
    %129 = tpu.matmul %128, %1, %cst_38 {dimension_numbers = #tpu.dot_dimension_numbers<[1], [0], [0], [1], [0, 0, 1, 1], [], []>} : vector<8x128xbf16>, vector<128x512xbf16>, vector<8x512xf32> -> vector<8x512xf32>
    %130 = arith.addf %127, %129 : vector<8x512xf32>
    %131 = vector.extract_strided_slice %130 {offsets = [0, 0], sizes = [8, 384], strides = [1, 1]} : vector<8x512xf32> to vector<8x384xf32>
    %132 = arith.negf %131 : vector<8x384xf32>
    %133 = math.exp %132 : vector<8x384xf32>
    %cst_39 = arith.constant 1.000000e+00 : f32
    %134 = vector.broadcast %cst_39 : f32 to vector<8x384xf32>
    %135 = arith.addf %134, %133 : vector<8x384xf32>
    %136 = arith.divf %134, %135 : vector<8x384xf32>
    %137 = vector.extract_strided_slice %130 {offsets = [0, 384], sizes = [8, 128], strides = [1, 1]} : vector<8x512xf32> to vector<8x128xf32>
    %138 = math.tanh %137 : vector<8x128xf32>
    %139 = vector.extract_strided_slice %136 {offsets = [0, 0], sizes = [8, 128], strides = [1, 1]} : vector<8x384xf32> to vector<8x128xf32>
    %140 = vector.extract_strided_slice %136 {offsets = [0, 128], sizes = [8, 128], strides = [1, 1]} : vector<8x384xf32> to vector<8x128xf32>
    %141 = vector.extract_strided_slice %136 {offsets = [0, 256], sizes = [8, 128], strides = [1, 1]} : vector<8x384xf32> to vector<8x128xf32>
    %142 = arith.mulf %140, %121 : vector<8x128xf32>
    %143 = arith.mulf %139, %138 : vector<8x128xf32>
    %144 = arith.addf %142, %143 : vector<8x128xf32>
    %145 = math.tanh %144 : vector<8x128xf32>
    %146 = arith.mulf %141, %145 : vector<8x128xf32>
    %147 = arith.truncf %146 : vector<8x128xf32> to vector<8x128xbf16>
    %c40_40 = arith.constant 40 : index
    %c0_41 = arith.constant 0 : index
    %148 = vector.load %arg11[%c40_40, %c0_41] : memref<64x128xbf16, #tpu.memory_space<vmem>>, vector<8x128xbf16>
    tpu.vector_store %arg11[%c40_40, %c0_41], %147 {strides = array<i32>} : memref<64x128xbf16, #tpu.memory_space<vmem>>, vector<8x128xbf16>,
    %c48 = arith.constant 48 : index
    %c0_42 = arith.constant 0 : index
    %149 = vector.load %arg10[%c48, %c0_42] : memref<64x512xbf16, #tpu.memory_space<vmem>>, vector<8x512xbf16>
    %150 = arith.extf %149 : vector<8x512xbf16> to vector<8x512xf32>
    %151 = arith.truncf %146 : vector<8x128xf32> to vector<8x128xbf16>
    %cst_43 = arith.constant dense<0.000000e+00> : vector<8x512xf32>
    %152 = tpu.matmul %151, %1, %cst_43 {dimension_numbers = #tpu.dot_dimension_numbers<[1], [0], [0], [1], [0, 0, 1, 1], [], []>} : vector<8x128xbf16>, vector<128x512xbf16>, vector<8x512xf32> -> vector<8x512xf32>
    %153 = arith.addf %150, %152 : vector<8x512xf32>
    %154 = vector.extract_strided_slice %153 {offsets = [0, 0], sizes = [8, 384], strides = [1, 1]} : vector<8x512xf32> to vector<8x384xf32>
    %155 = arith.negf %154 : vector<8x384xf32>
    %156 = math.exp %155 : vector<8x384xf32>
    %cst_44 = arith.constant 1.000000e+00 : f32
    %157 = vector.broadcast %cst_44 : f32 to vector<8x384xf32>
    %158 = arith.addf %157, %156 : vector<8x384xf32>
    %159 = arith.divf %157, %158 : vector<8x384xf32>
    %160 = vector.extract_strided_slice %153 {offsets = [0, 384], sizes = [8, 128], strides = [1, 1]} : vector<8x512xf32> to vector<8x128xf32>
    %161 = math.tanh %160 : vector<8x128xf32>
    %162 = vector.extract_strided_slice %159 {offsets = [0, 0], sizes = [8, 128], strides = [1, 1]} : vector<8x384xf32> to vector<8x128xf32>
    %163 = vector.extract_strided_slice %159 {offsets = [0, 128], sizes = [8, 128], strides = [1, 1]} : vector<8x384xf32> to vector<8x128xf32>
    %164 = vector.extract_strided_slice %159 {offsets = [0, 256], sizes = [8, 128], strides = [1, 1]} : vector<8x384xf32> to vector<8x128xf32>
    %165 = arith.mulf %163, %144 : vector<8x128xf32>
    %166 = arith.mulf %162, %161 : vector<8x128xf32>
    %167 = arith.addf %165, %166 : vector<8x128xf32>
    %168 = math.tanh %167 : vector<8x128xf32>
    %169 = arith.mulf %164, %168 : vector<8x128xf32>
    %170 = arith.truncf %169 : vector<8x128xf32> to vector<8x128xbf16>
    %c48_45 = arith.constant 48 : index
    %c0_46 = arith.constant 0 : index
    %171 = vector.load %arg11[%c48_45, %c0_46] : memref<64x128xbf16, #tpu.memory_space<vmem>>, vector<8x128xbf16>
    tpu.vector_store %arg11[%c48_45, %c0_46], %170 {strides = array<i32>} : memref<64x128xbf16, #tpu.memory_space<vmem>>, vector<8x128xbf16>,
    %c56 = arith.constant 56 : index
    %c0_47 = arith.constant 0 : index
    %172 = vector.load %arg10[%c56, %c0_47] : memref<64x512xbf16, #tpu.memory_space<vmem>>, vector<8x512xbf16>
    %173 = arith.extf %172 : vector<8x512xbf16> to vector<8x512xf32>
    %174 = arith.truncf %169 : vector<8x128xf32> to vector<8x128xbf16>
    %cst_48 = arith.constant dense<0.000000e+00> : vector<8x512xf32>
    %175 = tpu.matmul %174, %1, %cst_48 {dimension_numbers = #tpu.dot_dimension_numbers<[1], [0], [0], [1], [0, 0, 1, 1], [], []>} : vector<8x128xbf16>, vector<128x512xbf16>, vector<8x512xf32> -> vector<8x512xf32>
    %176 = arith.addf %173, %175 : vector<8x512xf32>
    %177 = vector.extract_strided_slice %176 {offsets = [0, 0], sizes = [8, 384], strides = [1, 1]} : vector<8x512xf32> to vector<8x384xf32>
    %178 = arith.negf %177 : vector<8x384xf32>
    %179 = math.exp %178 : vector<8x384xf32>
    %cst_49 = arith.constant 1.000000e+00 : f32
    %180 = vector.broadcast %cst_49 : f32 to vector<8x384xf32>
    %181 = arith.addf %180, %179 : vector<8x384xf32>
    %182 = arith.divf %180, %181 : vector<8x384xf32>
    %183 = vector.extract_strided_slice %176 {offsets = [0, 384], sizes = [8, 128], strides = [1, 1]} : vector<8x512xf32> to vector<8x128xf32>
    %184 = math.tanh %183 : vector<8x128xf32>
    %185 = vector.extract_strided_slice %182 {offsets = [0, 0], sizes = [8, 128], strides = [1, 1]} : vector<8x384xf32> to vector<8x128xf32>
    %186 = vector.extract_strided_slice %182 {offsets = [0, 128], sizes = [8, 128], strides = [1, 1]} : vector<8x384xf32> to vector<8x128xf32>
    %187 = vector.extract_strided_slice %182 {offsets = [0, 256], sizes = [8, 128], strides = [1, 1]} : vector<8x384xf32> to vector<8x128xf32>
    %188 = arith.mulf %186, %167 : vector<8x128xf32>
    %189 = arith.mulf %185, %184 : vector<8x128xf32>
    %190 = arith.addf %188, %189 : vector<8x128xf32>
    %191 = math.tanh %190 : vector<8x128xf32>
    %192 = arith.mulf %187, %191 : vector<8x128xf32>
    %193 = arith.truncf %192 : vector<8x128xf32> to vector<8x128xbf16>
    %c56_50 = arith.constant 56 : index
    %c0_51 = arith.constant 0 : index
    %194 = vector.load %arg11[%c56_50, %c0_51] : memref<64x128xbf16, #tpu.memory_space<vmem>>, vector<8x128xbf16>
    tpu.vector_store %arg11[%c56_50, %c0_51], %193 {strides = array<i32>} : memref<64x128xbf16, #tpu.memory_space<vmem>>, vector<8x128xbf16>,
    %c0_52 = arith.constant 0 : index
    %c0_53 = arith.constant 0 : index
    %195 = vector.load %arg4[%c0_52, %c0_53] : memref<128x512xbf16, #tpu.memory_space<vmem>>, vector<128x512xbf16>
    %c0_54 = arith.constant 0 : index
    %c0_55 = arith.constant 0 : index
    %196 = vector.load %arg5[%c0_54, %c0_55] : memref<128x512xbf16, #tpu.memory_space<vmem>>, vector<128x512xbf16>
    %c0_56 = arith.constant 0 : index
    %c0_57 = arith.constant 0 : index
    %197 = vector.load %arg6[%c0_56, %c0_57] : memref<1x512xf32, #tpu.memory_space<vmem>>, vector<1x512xf32>
    %c0_58 = arith.constant 0 : index
    %c0_59 = arith.constant 0 : index
    %198 = vector.load %arg11[%c0_58, %c0_59] : memref<64x128xbf16, #tpu.memory_space<vmem>>, vector<64x128xbf16>
    %cst_60 = arith.constant dense<0.000000e+00> : vector<64x512xf32>
    %199 = tpu.matmul %198, %195, %cst_60 {dimension_numbers = #tpu.dot_dimension_numbers<[1], [0], [0], [1], [0, 0, 1, 1], [], []>} : vector<64x128xbf16>, vector<128x512xbf16>, vector<64x512xf32> -> vector<64x512xf32>
    %200 = vector.broadcast %197 : vector<1x512xf32> to vector<64x512xf32>
    %201 = arith.addf %199, %200 : vector<64x512xf32>
    %202 = arith.truncf %201 : vector<64x512xf32> to vector<64x512xbf16>
    %c0_61 = arith.constant 0 : index
    %c0_62 = arith.constant 0 : index
    %203 = vector.load %arg10[%c0_61, %c0_62] : memref<64x512xbf16, #tpu.memory_space<vmem>>, vector<64x512xbf16>
    tpu.vector_store %arg10[%c0_61, %c0_62], %202 {strides = array<i32>} : memref<64x512xbf16, #tpu.memory_space<vmem>>, vector<64x512xbf16>,
    %cst_63 = arith.constant 0.000000e+00 : f32
    %204 = vector.broadcast %cst_63 : f32 to vector<8x128xf32>
    %cst_64 = arith.constant 0.000000e+00 : f32
    %205 = vector.broadcast %cst_64 : f32 to vector<8x128xf32>
    %c0_65 = arith.constant 0 : index
    %c0_66 = arith.constant 0 : index
    %206 = vector.load %arg10[%c0_65, %c0_66] : memref<64x512xbf16, #tpu.memory_space<vmem>>, vector<8x512xbf16>
    %207 = arith.extf %206 : vector<8x512xbf16> to vector<8x512xf32>
    %208 = arith.truncf %204 : vector<8x128xf32> to vector<8x128xbf16>
    %cst_67 = arith.constant dense<0.000000e+00> : vector<8x512xf32>
    %209 = tpu.matmul %208, %196, %cst_67 {dimension_numbers = #tpu.dot_dimension_numbers<[1], [0], [0], [1], [0, 0, 1, 1], [], []>} : vector<8x128xbf16>, vector<128x512xbf16>, vector<8x512xf32> -> vector<8x512xf32>
    %210 = arith.addf %207, %209 : vector<8x512xf32>
    %211 = vector.extract_strided_slice %210 {offsets = [0, 0], sizes = [8, 384], strides = [1, 1]} : vector<8x512xf32> to vector<8x384xf32>
    %212 = arith.negf %211 : vector<8x384xf32>
    %213 = math.exp %212 : vector<8x384xf32>
    %cst_68 = arith.constant 1.000000e+00 : f32
    %214 = vector.broadcast %cst_68 : f32 to vector<8x384xf32>
    %215 = arith.addf %214, %213 : vector<8x384xf32>
    %216 = arith.divf %214, %215 : vector<8x384xf32>
    %217 = vector.extract_strided_slice %210 {offsets = [0, 384], sizes = [8, 128], strides = [1, 1]} : vector<8x512xf32> to vector<8x128xf32>
    %218 = math.tanh %217 : vector<8x128xf32>
    %219 = vector.extract_strided_slice %216 {offsets = [0, 0], sizes = [8, 128], strides = [1, 1]} : vector<8x384xf32> to vector<8x128xf32>
    %220 = vector.extract_strided_slice %216 {offsets = [0, 128], sizes = [8, 128], strides = [1, 1]} : vector<8x384xf32> to vector<8x128xf32>
    %221 = vector.extract_strided_slice %216 {offsets = [0, 256], sizes = [8, 128], strides = [1, 1]} : vector<8x384xf32> to vector<8x128xf32>
    %222 = arith.mulf %220, %205 : vector<8x128xf32>
    %223 = arith.mulf %219, %218 : vector<8x128xf32>
    %224 = arith.addf %222, %223 : vector<8x128xf32>
    %225 = math.tanh %224 : vector<8x128xf32>
    %226 = arith.mulf %221, %225 : vector<8x128xf32>
    %c8_69 = arith.constant 8 : index
    %c0_70 = arith.constant 0 : index
    %227 = vector.load %arg10[%c8_69, %c0_70] : memref<64x512xbf16, #tpu.memory_space<vmem>>, vector<8x512xbf16>
    %228 = arith.extf %227 : vector<8x512xbf16> to vector<8x512xf32>
    %229 = arith.truncf %226 : vector<8x128xf32> to vector<8x128xbf16>
    %cst_71 = arith.constant dense<0.000000e+00> : vector<8x512xf32>
    %230 = tpu.matmul %229, %196, %cst_71 {dimension_numbers = #tpu.dot_dimension_numbers<[1], [0], [0], [1], [0, 0, 1, 1], [], []>} : vector<8x128xbf16>, vector<128x512xbf16>, vector<8x512xf32> -> vector<8x512xf32>
    %231 = arith.addf %228, %230 : vector<8x512xf32>
    %232 = vector.extract_strided_slice %231 {offsets = [0, 0], sizes = [8, 384], strides = [1, 1]} : vector<8x512xf32> to vector<8x384xf32>
    %233 = arith.negf %232 : vector<8x384xf32>
    %234 = math.exp %233 : vector<8x384xf32>
    %cst_72 = arith.constant 1.000000e+00 : f32
    %235 = vector.broadcast %cst_72 : f32 to vector<8x384xf32>
    %236 = arith.addf %235, %234 : vector<8x384xf32>
    %237 = arith.divf %235, %236 : vector<8x384xf32>
    %238 = vector.extract_strided_slice %231 {offsets = [0, 384], sizes = [8, 128], strides = [1, 1]} : vector<8x512xf32> to vector<8x128xf32>
    %239 = math.tanh %238 : vector<8x128xf32>
    %240 = vector.extract_strided_slice %237 {offsets = [0, 0], sizes = [8, 128], strides = [1, 1]} : vector<8x384xf32> to vector<8x128xf32>
    %241 = vector.extract_strided_slice %237 {offsets = [0, 128], sizes = [8, 128], strides = [1, 1]} : vector<8x384xf32> to vector<8x128xf32>
    %242 = vector.extract_strided_slice %237 {offsets = [0, 256], sizes = [8, 128], strides = [1, 1]} : vector<8x384xf32> to vector<8x128xf32>
    %243 = arith.mulf %241, %224 : vector<8x128xf32>
    %244 = arith.mulf %240, %239 : vector<8x128xf32>
    %245 = arith.addf %243, %244 : vector<8x128xf32>
    %246 = math.tanh %245 : vector<8x128xf32>
    %247 = arith.mulf %242, %246 : vector<8x128xf32>
    %c16_73 = arith.constant 16 : index
    %c0_74 = arith.constant 0 : index
    %248 = vector.load %arg10[%c16_73, %c0_74] : memref<64x512xbf16, #tpu.memory_space<vmem>>, vector<8x512xbf16>
    %249 = arith.extf %248 : vector<8x512xbf16> to vector<8x512xf32>
    %250 = arith.truncf %247 : vector<8x128xf32> to vector<8x128xbf16>
    %cst_75 = arith.constant dense<0.000000e+00> : vector<8x512xf32>
    %251 = tpu.matmul %250, %196, %cst_75 {dimension_numbers = #tpu.dot_dimension_numbers<[1], [0], [0], [1], [0, 0, 1, 1], [], []>} : vector<8x128xbf16>, vector<128x512xbf16>, vector<8x512xf32> -> vector<8x512xf32>
    %252 = arith.addf %249, %251 : vector<8x512xf32>
    %253 = vector.extract_strided_slice %252 {offsets = [0, 0], sizes = [8, 384], strides = [1, 1]} : vector<8x512xf32> to vector<8x384xf32>
    %254 = arith.negf %253 : vector<8x384xf32>
    %255 = math.exp %254 : vector<8x384xf32>
    %cst_76 = arith.constant 1.000000e+00 : f32
    %256 = vector.broadcast %cst_76 : f32 to vector<8x384xf32>
    %257 = arith.addf %256, %255 : vector<8x384xf32>
    %258 = arith.divf %256, %257 : vector<8x384xf32>
    %259 = vector.extract_strided_slice %252 {offsets = [0, 384], sizes = [8, 128], strides = [1, 1]} : vector<8x512xf32> to vector<8x128xf32>
    %260 = math.tanh %259 : vector<8x128xf32>
    %261 = vector.extract_strided_slice %258 {offsets = [0, 0], sizes = [8, 128], strides = [1, 1]} : vector<8x384xf32> to vector<8x128xf32>
    %262 = vector.extract_strided_slice %258 {offsets = [0, 128], sizes = [8, 128], strides = [1, 1]} : vector<8x384xf32> to vector<8x128xf32>
    %263 = vector.extract_strided_slice %258 {offsets = [0, 256], sizes = [8, 128], strides = [1, 1]} : vector<8x384xf32> to vector<8x128xf32>
    %264 = arith.mulf %262, %245 : vector<8x128xf32>
    %265 = arith.mulf %261, %260 : vector<8x128xf32>
    %266 = arith.addf %264, %265 : vector<8x128xf32>
    %267 = math.tanh %266 : vector<8x128xf32>
    %268 = arith.mulf %263, %267 : vector<8x128xf32>
    %c24_77 = arith.constant 24 : index
    %c0_78 = arith.constant 0 : index
    %269 = vector.load %arg10[%c24_77, %c0_78] : memref<64x512xbf16, #tpu.memory_space<vmem>>, vector<8x512xbf16>
    %270 = arith.extf %269 : vector<8x512xbf16> to vector<8x512xf32>
    %271 = arith.truncf %268 : vector<8x128xf32> to vector<8x128xbf16>
    %cst_79 = arith.constant dense<0.000000e+00> : vector<8x512xf32>
    %272 = tpu.matmul %271, %196, %cst_79 {dimension_numbers = #tpu.dot_dimension_numbers<[1], [0], [0], [1], [0, 0, 1, 1], [], []>} : vector<8x128xbf16>, vector<128x512xbf16>, vector<8x512xf32> -> vector<8x512xf32>
    %273 = arith.addf %270, %272 : vector<8x512xf32>
    %274 = vector.extract_strided_slice %273 {offsets = [0, 0], sizes = [8, 384], strides = [1, 1]} : vector<8x512xf32> to vector<8x384xf32>
    %275 = arith.negf %274 : vector<8x384xf32>
    %276 = math.exp %275 : vector<8x384xf32>
    %cst_80 = arith.constant 1.000000e+00 : f32
    %277 = vector.broadcast %cst_80 : f32 to vector<8x384xf32>
    %278 = arith.addf %277, %276 : vector<8x384xf32>
    %279 = arith.divf %277, %278 : vector<8x384xf32>
    %280 = vector.extract_strided_slice %273 {offsets = [0, 384], sizes = [8, 128], strides = [1, 1]} : vector<8x512xf32> to vector<8x128xf32>
    %281 = math.tanh %280 : vector<8x128xf32>
    %282 = vector.extract_strided_slice %279 {offsets = [0, 0], sizes = [8, 128], strides = [1, 1]} : vector<8x384xf32> to vector<8x128xf32>
    %283 = vector.extract_strided_slice %279 {offsets = [0, 128], sizes = [8, 128], strides = [1, 1]} : vector<8x384xf32> to vector<8x128xf32>
    %284 = vector.extract_strided_slice %279 {offsets = [0, 256], sizes = [8, 128], strides = [1, 1]} : vector<8x384xf32> to vector<8x128xf32>
    %285 = arith.mulf %283, %266 : vector<8x128xf32>
    %286 = arith.mulf %282, %281 : vector<8x128xf32>
    %287 = arith.addf %285, %286 : vector<8x128xf32>
    %288 = math.tanh %287 : vector<8x128xf32>
    %289 = arith.mulf %284, %288 : vector<8x128xf32>
    %c32_81 = arith.constant 32 : index
    %c0_82 = arith.constant 0 : index
    %290 = vector.load %arg10[%c32_81, %c0_82] : memref<64x512xbf16, #tpu.memory_space<vmem>>, vector<8x512xbf16>
    %291 = arith.extf %290 : vector<8x512xbf16> to vector<8x512xf32>
    %292 = arith.truncf %289 : vector<8x128xf32> to vector<8x128xbf16>
    %cst_83 = arith.constant dense<0.000000e+00> : vector<8x512xf32>
    %293 = tpu.matmul %292, %196, %cst_83 {dimension_numbers = #tpu.dot_dimension_numbers<[1], [0], [0], [1], [0, 0, 1, 1], [], []>} : vector<8x128xbf16>, vector<128x512xbf16>, vector<8x512xf32> -> vector<8x512xf32>
    %294 = arith.addf %291, %293 : vector<8x512xf32>
    %295 = vector.extract_strided_slice %294 {offsets = [0, 0], sizes = [8, 384], strides = [1, 1]} : vector<8x512xf32> to vector<8x384xf32>
    %296 = arith.negf %295 : vector<8x384xf32>
    %297 = math.exp %296 : vector<8x384xf32>
    %cst_84 = arith.constant 1.000000e+00 : f32
    %298 = vector.broadcast %cst_84 : f32 to vector<8x384xf32>
    %299 = arith.addf %298, %297 : vector<8x384xf32>
    %300 = arith.divf %298, %299 : vector<8x384xf32>
    %301 = vector.extract_strided_slice %294 {offsets = [0, 384], sizes = [8, 128], strides = [1, 1]} : vector<8x512xf32> to vector<8x128xf32>
    %302 = math.tanh %301 : vector<8x128xf32>
    %303 = vector.extract_strided_slice %300 {offsets = [0, 0], sizes = [8, 128], strides = [1, 1]} : vector<8x384xf32> to vector<8x128xf32>
    %304 = vector.extract_strided_slice %300 {offsets = [0, 128], sizes = [8, 128], strides = [1, 1]} : vector<8x384xf32> to vector<8x128xf32>
    %305 = vector.extract_strided_slice %300 {offsets = [0, 256], sizes = [8, 128], strides = [1, 1]} : vector<8x384xf32> to vector<8x128xf32>
    %306 = arith.mulf %304, %287 : vector<8x128xf32>
    %307 = arith.mulf %303, %302 : vector<8x128xf32>
    %308 = arith.addf %306, %307 : vector<8x128xf32>
    %309 = math.tanh %308 : vector<8x128xf32>
    %310 = arith.mulf %305, %309 : vector<8x128xf32>
    %c40_85 = arith.constant 40 : index
    %c0_86 = arith.constant 0 : index
    %311 = vector.load %arg10[%c40_85, %c0_86] : memref<64x512xbf16, #tpu.memory_space<vmem>>, vector<8x512xbf16>
    %312 = arith.extf %311 : vector<8x512xbf16> to vector<8x512xf32>
    %313 = arith.truncf %310 : vector<8x128xf32> to vector<8x128xbf16>
    %cst_87 = arith.constant dense<0.000000e+00> : vector<8x512xf32>
    %314 = tpu.matmul %313, %196, %cst_87 {dimension_numbers = #tpu.dot_dimension_numbers<[1], [0], [0], [1], [0, 0, 1, 1], [], []>} : vector<8x128xbf16>, vector<128x512xbf16>, vector<8x512xf32> -> vector<8x512xf32>
    %315 = arith.addf %312, %314 : vector<8x512xf32>
    %316 = vector.extract_strided_slice %315 {offsets = [0, 0], sizes = [8, 384], strides = [1, 1]} : vector<8x512xf32> to vector<8x384xf32>
    %317 = arith.negf %316 : vector<8x384xf32>
    %318 = math.exp %317 : vector<8x384xf32>
    %cst_88 = arith.constant 1.000000e+00 : f32
    %319 = vector.broadcast %cst_88 : f32 to vector<8x384xf32>
    %320 = arith.addf %319, %318 : vector<8x384xf32>
    %321 = arith.divf %319, %320 : vector<8x384xf32>
    %322 = vector.extract_strided_slice %315 {offsets = [0, 384], sizes = [8, 128], strides = [1, 1]} : vector<8x512xf32> to vector<8x128xf32>
    %323 = math.tanh %322 : vector<8x128xf32>
    %324 = vector.extract_strided_slice %321 {offsets = [0, 0], sizes = [8, 128], strides = [1, 1]} : vector<8x384xf32> to vector<8x128xf32>
    %325 = vector.extract_strided_slice %321 {offsets = [0, 128], sizes = [8, 128], strides = [1, 1]} : vector<8x384xf32> to vector<8x128xf32>
    %326 = vector.extract_strided_slice %321 {offsets = [0, 256], sizes = [8, 128], strides = [1, 1]} : vector<8x384xf32> to vector<8x128xf32>
    %327 = arith.mulf %325, %308 : vector<8x128xf32>
    %328 = arith.mulf %324, %323 : vector<8x128xf32>
    %329 = arith.addf %327, %328 : vector<8x128xf32>
    %330 = math.tanh %329 : vector<8x128xf32>
    %331 = arith.mulf %326, %330 : vector<8x128xf32>
    %c48_89 = arith.constant 48 : index
    %c0_90 = arith.constant 0 : index
    %332 = vector.load %arg10[%c48_89, %c0_90] : memref<64x512xbf16, #tpu.memory_space<vmem>>, vector<8x512xbf16>
    %333 = arith.extf %332 : vector<8x512xbf16> to vector<8x512xf32>
    %334 = arith.truncf %331 : vector<8x128xf32> to vector<8x128xbf16>
    %cst_91 = arith.constant dense<0.000000e+00> : vector<8x512xf32>
    %335 = tpu.matmul %334, %196, %cst_91 {dimension_numbers = #tpu.dot_dimension_numbers<[1], [0], [0], [1], [0, 0, 1, 1], [], []>} : vector<8x128xbf16>, vector<128x512xbf16>, vector<8x512xf32> -> vector<8x512xf32>
    %336 = arith.addf %333, %335 : vector<8x512xf32>
    %337 = vector.extract_strided_slice %336 {offsets = [0, 0], sizes = [8, 384], strides = [1, 1]} : vector<8x512xf32> to vector<8x384xf32>
    %338 = arith.negf %337 : vector<8x384xf32>
    %339 = math.exp %338 : vector<8x384xf32>
    %cst_92 = arith.constant 1.000000e+00 : f32
    %340 = vector.broadcast %cst_92 : f32 to vector<8x384xf32>
    %341 = arith.addf %340, %339 : vector<8x384xf32>
    %342 = arith.divf %340, %341 : vector<8x384xf32>
    %343 = vector.extract_strided_slice %336 {offsets = [0, 384], sizes = [8, 128], strides = [1, 1]} : vector<8x512xf32> to vector<8x128xf32>
    %344 = math.tanh %343 : vector<8x128xf32>
    %345 = vector.extract_strided_slice %342 {offsets = [0, 0], sizes = [8, 128], strides = [1, 1]} : vector<8x384xf32> to vector<8x128xf32>
    %346 = vector.extract_strided_slice %342 {offsets = [0, 128], sizes = [8, 128], strides = [1, 1]} : vector<8x384xf32> to vector<8x128xf32>
    %347 = vector.extract_strided_slice %342 {offsets = [0, 256], sizes = [8, 128], strides = [1, 1]} : vector<8x384xf32> to vector<8x128xf32>
    %348 = arith.mulf %346, %329 : vector<8x128xf32>
    %349 = arith.mulf %345, %344 : vector<8x128xf32>
    %350 = arith.addf %348, %349 : vector<8x128xf32>
    %351 = math.tanh %350 : vector<8x128xf32>
    %352 = arith.mulf %347, %351 : vector<8x128xf32>
    %c56_93 = arith.constant 56 : index
    %c0_94 = arith.constant 0 : index
    %353 = vector.load %arg10[%c56_93, %c0_94] : memref<64x512xbf16, #tpu.memory_space<vmem>>, vector<8x512xbf16>
    %354 = arith.extf %353 : vector<8x512xbf16> to vector<8x512xf32>
    %355 = arith.truncf %352 : vector<8x128xf32> to vector<8x128xbf16>
    %cst_95 = arith.constant dense<0.000000e+00> : vector<8x512xf32>
    %356 = tpu.matmul %355, %196, %cst_95 {dimension_numbers = #tpu.dot_dimension_numbers<[1], [0], [0], [1], [0, 0, 1, 1], [], []>} : vector<8x128xbf16>, vector<128x512xbf16>, vector<8x512xf32> -> vector<8x512xf32>
    %357 = arith.addf %354, %356 : vector<8x512xf32>
    %358 = vector.extract_strided_slice %357 {offsets = [0, 0], sizes = [8, 384], strides = [1, 1]} : vector<8x512xf32> to vector<8x384xf32>
    %359 = arith.negf %358 : vector<8x384xf32>
    %360 = math.exp %359 : vector<8x384xf32>
    %cst_96 = arith.constant 1.000000e+00 : f32
    %361 = vector.broadcast %cst_96 : f32 to vector<8x384xf32>
    %362 = arith.addf %361, %360 : vector<8x384xf32>
    %363 = arith.divf %361, %362 : vector<8x384xf32>
    %364 = vector.extract_strided_slice %357 {offsets = [0, 384], sizes = [8, 128], strides = [1, 1]} : vector<8x512xf32> to vector<8x128xf32>
    %365 = math.tanh %364 : vector<8x128xf32>
    %366 = vector.extract_strided_slice %363 {offsets = [0, 0], sizes = [8, 128], strides = [1, 1]} : vector<8x384xf32> to vector<8x128xf32>
    %367 = vector.extract_strided_slice %363 {offsets = [0, 128], sizes = [8, 128], strides = [1, 1]} : vector<8x384xf32> to vector<8x128xf32>
    %368 = vector.extract_strided_slice %363 {offsets = [0, 256], sizes = [8, 128], strides = [1, 1]} : vector<8x384xf32> to vector<8x128xf32>
    %369 = arith.mulf %367, %350 : vector<8x128xf32>
    %370 = arith.mulf %366, %365 : vector<8x128xf32>
    %371 = arith.addf %369, %370 : vector<8x128xf32>
    %372 = math.tanh %371 : vector<8x128xf32>
    %373 = arith.mulf %368, %372 : vector<8x128xf32>
    %374 = arith.truncf %373 : vector<8x128xf32> to vector<8x128xbf16>
    %c0_97 = arith.constant 0 : index
    %c0_98 = arith.constant 0 : index
    %375 = vector.load %arg7[%c0_97, %c0_98] : memref<128x128xbf16, #tpu.memory_space<vmem>>, vector<128x128xbf16>
    %cst_99 = arith.constant dense<0.000000e+00> : vector<8x128xf32>
    %376 = tpu.matmul %374, %375, %cst_99 {dimension_numbers = #tpu.dot_dimension_numbers<[1], [0], [0], [1], [0, 0, 1, 1], [], []>} : vector<8x128xbf16>, vector<128x128xbf16>, vector<8x128xf32> -> vector<8x128xf32>
    %c0_100 = arith.constant 0 : index
    %c0_101 = arith.constant 0 : index
    %377 = vector.load %arg8[%c0_100, %c0_101] : memref<1x128xf32, #tpu.memory_space<vmem>>, vector<1x128xf32>
    %378 = vector.broadcast %377 : vector<1x128xf32> to vector<8x128xf32>
    %379 = arith.addf %376, %378 : vector<8x128xf32>
    %c0_102 = arith.constant 0 : index
    %c0_103 = arith.constant 0 : index
    %380 = vector.load %arg9[%c0_102, %c0_103] : memref<8x128xf32, #tpu.memory_space<vmem>>, vector<8x128xf32>
    tpu.vector_store %arg9[%c0_102, %c0_103], %379 {strides = array<i32>} : memref<8x128xf32, #tpu.memory_space<vmem>>, vector<8x128xf32>,
    return
  }
}

</mosaic_0001>

<llo_original>
// kernel: lstm_forward.1
$region0: #{lstm_forward.1}
  #allocation0 [shape = 'u32[]', space=smem, size = 0x4, offset = 0x4, fixed_abs, tag = 'smem constant byte address 0x4 - core index']
  #allocation1 [shape = 'u32[144,128]{1,0:T(1,128)}', space=vmem, size = 0x12000, scoped, tag = 'internal scratch']
  #allocation2 [shape = 'bf16[64,512]{1,0:T(8,128)(2,1)}', space=vmem, size = 0x10000, scoped, tag = 'scratch operand']
  #allocation3 [shape = 'bf16[64,128]{1,0:T(8,128)(2,1)}', space=vmem, size = 0x4000, scoped, tag = 'scratch operand']
  %s0 = inlined_call_operand.vmem [shape: bf16[64,32], index: 0, kind: input, shape index: {}]
  %s1 = inlined_call_operand.vmem [shape: bf16[32,512], index: 1, kind: input, shape index: {}]
  %s2 = inlined_call_operand.vmem [shape: bf16[128,512], index: 2, kind: input, shape index: {}]
  %s3 = inlined_call_operand.vmem [shape: f32[1,512], index: 3, kind: input, shape index: {}]
  %s4 = inlined_call_operand.vmem [shape: bf16[128,512], index: 4, kind: input, shape index: {}]
  %s5 = inlined_call_operand.vmem [shape: bf16[128,512], index: 5, kind: input, shape index: {}]
  %s6 = inlined_call_operand.vmem [shape: f32[1,512], index: 6, kind: input, shape index: {}]
  %s7 = inlined_call_operand.vmem [shape: bf16[128,128], index: 7, kind: input, shape index: {}]
  %s8 = inlined_call_operand.vmem [shape: f32[1,128], index: 8, kind: input, shape index: {}]
  %s9 = inlined_call_operand.vmem [shape: f32[8,128], index: 9, kind: output, shape index: {}]
  %s10 = sld [smem:[#allocation0]]
  $region46: #{lstm_forward.1} parent=0
    _
  %s12 = ssub.s32 1, %s10
  %s13 = scalar_select 0, %s12, %s10
  // Predicated region
  $region2: #{lstm_forward.1} parent=0 // pred_check
    _
  $region3: #{lstm_forward.1} parent=0 // pred_check_branch
    %15 = sbr.rel (0) target = $region5
  $region4: #{lstm_forward.1} parent=0 // pred_region
    _
  $region5: #{lstm_forward.1} parent=0 // pred_fallthru
    _
  // Predicated region
  $region6: #{lstm_forward.1} parent=0 // pred_check
    _
  $region7: #{lstm_forward.1} parent=0 // pred_check_branch
    %17 = sbr.rel (0) target = $region9
  $region8: #{lstm_forward.1} parent=0 // pred_region
    _
  $region9: #{lstm_forward.1} parent=0 // pred_fallthru
    _
  // Predicated region
  $region10: #{lstm_forward.1} parent=0 // pred_check
    _
  $region11: #{lstm_forward.1} parent=0 // pred_check_branch
    %19 = sbr.rel (0) target = $region13
  $region12: #{lstm_forward.1} parent=0 // pred_region
    _
  $region13: #{lstm_forward.1} parent=0 // pred_fallthru
    _
  // Predicated region
  $region14: #{lstm_forward.1} parent=0 // pred_check
    _
  $region15: #{lstm_forward.1} parent=0 // pred_check_branch
    %21 = sbr.rel (0) target = $region17
  $region16: #{lstm_forward.1} parent=0 // pred_region
    _
  $region17: #{lstm_forward.1} parent=0 // pred_fallthru
    _
  // Predicated region
  $region18: #{lstm_forward.1} parent=0 // pred_check
    _
  $region19: #{lstm_forward.1} parent=0 // pred_check_branch
    %23 = sbr.rel (0) target = $region21
  $region20: #{lstm_forward.1} parent=0 // pred_region
    _
  $region21: #{lstm_forward.1} parent=0 // pred_fallthru
    _
  // Predicated region
  $region22: #{lstm_forward.1} parent=0 // pred_check
    _
  $region23: #{lstm_forward.1} parent=0 // pred_check_branch
    %25 = sbr.rel (0) target = $region25
  $region24: #{lstm_forward.1} parent=0 // pred_region
    _
  $region25: #{lstm_forward.1} parent=0 // pred_fallthru
    _
  // Predicated region
  $region26: #{lstm_forward.1} parent=0 // pred_check
    _
  $region27: #{lstm_forward.1} parent=0 // pred_check_branch
    %27 = sbr.rel (0) target = $region29
  $region28: #{lstm_forward.1} parent=0 // pred_region
    _
  $region29: #{lstm_forward.1} parent=0 // pred_fallthru
    _
  // Predicated region
  $region30: #{lstm_forward.1} parent=0 // pred_check
    _
  $region31: #{lstm_forward.1} parent=0 // pred_check_branch
    %29 = sbr.rel (0) target = $region33
  $region32: #{lstm_forward.1} parent=0 // pred_region
    _
  $region33: #{lstm_forward.1} parent=0 // pred_fallthru
    _
  // Predicated region
  $region34: #{lstm_forward.1} parent=0 // pred_check
    _
  $region35: #{lstm_forward.1} parent=0 // pred_check_branch
    %31 = sbr.rel (0) target = $region37
  $region36: #{lstm_forward.1} parent=0 // pred_region
    _
  $region37: #{lstm_forward.1} parent=0 // pred_fallthru
    _
  %v33 = vld [vmem:[%s1] sm:$0xff]
  %v34 = vld [vmem:[%s1 + $0x8] sm:$0xff]
  %v35 = vld [vmem:[%s1 + $0x10] sm:$0xff]
  %v36 = vld [vmem:[%s1 + $0x18] sm:$0xff]
  %v37 = vld [vmem:[%s1 + $0x20] sm:$0xff]
  %v38 = vld [vmem:[%s1 + $0x28] sm:$0xff]
  %v39 = vld [vmem:[%s1 + $0x30] sm:$0xff]
  %v40 = vld [vmem:[%s1 + $0x38] sm:$0xff]
  %v41 = vld [vmem:[%s2] sm:$0xff]
  %v42 = vld [vmem:[%s2 + $0x8] sm:$0xff]
  %v43 = vld [vmem:[%s2 + $0x10] sm:$0xff]
  %v44 = vld [vmem:[%s2 + $0x18] sm:$0xff]
  %v45 = vld [vmem:[%s2 + $0x20] sm:$0xff]
  %v46 = vld [vmem:[%s2 + $0x28] sm:$0xff]
  %v47 = vld [vmem:[%s2 + $0x30] sm:$0xff]
  %v48 = vld [vmem:[%s2 + $0x38] sm:$0xff]
  %v49 = vld [vmem:[%s2 + $0x40] sm:$0xff]
  %v50 = vld [vmem:[%s2 + $0x48] sm:$0xff]
  %v51 = vld [vmem:[%s2 + $0x50] sm:$0xff]
  %v52 = vld [vmem:[%s2 + $0x58] sm:$0xff]
  %v53 = vld [vmem:[%s2 + $0x60] sm:$0xff]
  %v54 = vld [vmem:[%s2 + $0x68] sm:$0xff]
  %v55 = vld [vmem:[%s2 + $0x70] sm:$0xff]
  %v56 = vld [vmem:[%s2 + $0x78] sm:$0xff]
  %v57 = vld [vmem:[%s2 + $0x80] sm:$0xff]
  %v58 = vld [vmem:[%s2 + $0x88] sm:$0xff]
  %v59 = vld [vmem:[%s2 + $0x90] sm:$0xff]
  %v60 = vld [vmem:[%s2 + $0x98] sm:$0xff]
  %v61 = vld [vmem:[%s2 + $0xa0] sm:$0xff]
  %v62 = vld [vmem:[%s2 + $0xa8] sm:$0xff]
  %v63 = vld [vmem:[%s2 + $0xb0] sm:$0xff]
  %v64 = vld [vmem:[%s2 + $0xb8] sm:$0xff]
  %v65 = vld [vmem:[%s2 + $0xc0] sm:$0xff]
  %v66 = vld [vmem:[%s2 + $0xc8] sm:$0xff]
  %v67 = vld [vmem:[%s2 + $0xd0] sm:$0xff]
  %v68 = vld [vmem:[%s2 + $0xd8] sm:$0xff]
  %v69 = vld [vmem:[%s2 + $0xe0] sm:$0xff]
  %v70 = vld [vmem:[%s2 + $0xe8] sm:$0xff]
  %v71 = vld [vmem:[%s2 + $0xf0] sm:$0xff]
  %v72 = vld [vmem:[%s2 + $0xf8] sm:$0xff]
  %v73 = vld [vmem:[%s3] sm:$0xf]
  %v74 = vld [vmem:[%s0] sm:$0xf]
  %v75 = vld [vmem:[%s0 + $0x4] sm:$0xf]
  %v76 = vld [vmem:[%s0 + $0x8] sm:$0xf]
  %v77 = vld [vmem:[%s0 + $0xc] sm:$0xf]
  %v78 = vld [vmem:[%s0 + $0x10] sm:$0xf]
  %v79 = vld [vmem:[%s0 + $0x14] sm:$0xf]
  %v80 = vld [vmem:[%s0 + $0x18] sm:$0xf]
  %v81 = vld [vmem:[%s0 + $0x1c] sm:$0xf]
  %v83 = vlaneseq
  %v84 = vshrl.u32 %v83, 7
  %v85 = vsub.s32 0, %v84
  %v86 = vrot.slane %v73, %v85
  %v87 = vlaneseq
  %v88 = vshrl.u32 %v87, 7
  %v89 = vsub.s32 1, %v88
  %v90 = vrot.slane %v73, %v89
  %v91 = vlaneseq
  %v92 = vshrl.u32 %v91, 7
  %v93 = vsub.s32 2, %v92
  %v94 = vrot.slane %v73, %v93
  %v95 = vlaneseq
  %v96 = vshrl.u32 %v95, 7
  %v97 = vsub.s32 3, %v96
  %v98 = vrot.slane %v73, %v97
  %v111 = vunpack.c.l.b16 %v74
  %v112 = vunpack.c.l.b16 %v75
  %v113 = vunpack.c.l.b16 %v76
  %v114 = vunpack.c.l.b16 %v77
  %v115 = vunpack.c.l.b16 %v78
  %v116 = vunpack.c.l.b16 %v79
  %v117 = vunpack.c.l.b16 %v80
  %v118 = vunpack.c.l.b16 %v81
  %v119 = vpack.c.b16 %v112, %v111
  %v120 = vpack.c.b16 %v114, %v113
  %v121 = vpack.c.b16 %v116, %v115
  %v122 = vpack.c.b16 %v118, %v117
  %v131 = vunpack.c.l.b16 %v33
  %v132 = vunpack.c.h.b16 %v33
  %v133 = vunpack.c.l.b16 %v34
  %v134 = vunpack.c.h.b16 %v34
  %v135 = vunpack.c.l.b16 %v35
  %v136 = vunpack.c.h.b16 %v35
  %v137 = vunpack.c.l.b16 %v36
  %v138 = vunpack.c.h.b16 %v36
  %v139 = vunpack.c.l.b16 %v37
  %v140 = vunpack.c.h.b16 %v37
  %v141 = vunpack.c.l.b16 %v38
  %v142 = vunpack.c.h.b16 %v38
  %v143 = vunpack.c.l.b16 %v39
  %v144 = vunpack.c.h.b16 %v39
  %v145 = vunpack.c.l.b16 %v40
  %v146 = vunpack.c.h.b16 %v40
  %v147 = vpack.c.b16 %v135, %v131
  %v148 = vpack.c.b16 %v136, %v132
  %v149 = vpack.c.b16 %v137, %v133
  %v150 = vpack.c.b16 %v138, %v134
  %v151 = vpack.c.b16 %v143, %v139
  %v152 = vpack.c.b16 %v144, %v140
  %v153 = vpack.c.b16 %v145, %v141
  %v154 = vpack.c.b16 %v146, %v142
  %vm163 = vcmask 261120
  %v165 = vsel %vm163, %v119, 0
  %v168 = vsel %vm163, %v120, 0
  %v171 = vsel %vm163, %v121, 0
  %v174 = vsel %vm163, %v122, 0
  %176 = vmatprep.subr.bf16.mxu0 0
  %177 = vmatpush1.bf16.msra.mxu0 0
  %178 = vmatprep.subr.bf16.mxu0 0
  %179 = vmatpush1.bf16.msra.mxu0 0
  %180 = vmatprep.subr.bf16.mxu0 0
  %181 = vmatpush1.bf16.msra.mxu0 0
  %182 = vmatprep.subr.bf16.mxu0 0
  %183 = vmatpush1.bf16.msra.mxu0 0
  %184 = vmatprep.subr.bf16.mxu0 0
  %185 = vmatpush1.bf16.msra.mxu0 0
  %186 = vmatprep.subr.bf16.mxu0 0
  %187 = vmatpush1.bf16.msra.mxu0 0
  %188 = vmatprep.subr.bf16.mxu0 %v152
  %189 = vmatpush1.bf16.msra.mxu0 %v151
  %190 = vmatprep.subr.bf16.mxu0 %v148
  %191 = vmatpush1.bf16.msra.mxu0 %v147
  %192 = vmatprep.subr.bf16.mxu0 0
  %193 = vmatpush2.bf16.msra.mxu0 0
  %194 = vmatprep.subr.bf16.mxu0 0
  %195 = vmatpush2.bf16.msra.mxu0 0
  %196 = vmatprep.subr.bf16.mxu0 0
  %197 = vmatpush2.bf16.msra.mxu0 0
  %198 = vmatprep.subr.bf16.mxu0 0
  %199 = vmatpush2.bf16.msra.mxu0 0
  %200 = vmatprep.subr.bf16.mxu0 0
  %201 = vmatpush2.bf16.msra.mxu0 0
  %202 = vmatprep.subr.bf16.mxu0 0
  %203 = vmatpush2.bf16.msra.mxu0 0
  %204 = vmatprep.subr.bf16.mxu0 0
  %205 = vmatpush2.bf16.msra.mxu0 0
  %206 = vmatprep.subr.bf16.mxu0 0
  %207 = vmatpush2.bf16.msra.mxu0 0
  %208 = vmatprep.mubr.bf16.mxu0 0
  %209 = vmatmul.mubr.bf16.gmra.mxu0 %v165
  %v210 = vpop.f32.mrf.mxu0
  %v211 = vadd.f32 %v86, %v210
  %v212 = vpop.f32.mrf.mxu0
  %v213 = vadd.f32 %v90, %v212
  %v214 = vpop.f32.mrf.mxu0
  %v215 = vadd.f32 %v86, %v214
  %v216 = vpop.f32.mrf.mxu0
  %v217 = vadd.f32 %v90, %v216
  %218 = vmatprep.mubr.bf16.mxu0 0
  %219 = vmatmul.mubr.bf16.gmra.mxu0 %v168
  %v220 = vpop.f32.mrf.mxu0
  %v221 = vadd.f32 %v86, %v220
  %v222 = vpop.f32.mrf.mxu0
  %v223 = vadd.f32 %v90, %v222
  %v224 = vpop.f32.mrf.mxu0
  %v225 = vadd.f32 %v86, %v224
  %v226 = vpop.f32.mrf.mxu0
  %v227 = vadd.f32 %v90, %v226
  %228 = vmatprep.mubr.bf16.mxu0 0
  %229 = vmatmul.mubr.bf16.gmra.mxu0 %v171
  %v230 = vpop.f32.mrf.mxu0
  %v231 = vadd.f32 %v86, %v230
  %v232 = vpop.f32.mrf.mxu0
  %v233 = vadd.f32 %v90, %v232
  %v234 = vpop.f32.mrf.mxu0
  %v235 = vadd.f32 %v86, %v234
  %v236 = vpop.f32.mrf.mxu0
  %v237 = vadd.f32 %v90, %v236
  %238 = vmatprep.mubr.bf16.mxu0 0
  %239 = vmatmul.mubr.bf16.gmra.mxu0 %v174
  %v240 = vpop.f32.mrf.mxu0
  %v241 = vadd.f32 %v86, %v240
  %v242 = vpop.f32.mrf.mxu0
  %v243 = vadd.f32 %v90, %v242
  %v244 = vpop.f32.mrf.mxu0
  %v245 = vadd.f32 %v86, %v244
  %v246 = vpop.f32.mrf.mxu0
  %v247 = vadd.f32 %v90, %v246
  %248 = vdwg.mxu0
  %249 = vmatprep.subr.bf16.mxu0 0
  %250 = vmatpush1.bf16.msra.mxu0 0
  %251 = vmatprep.subr.bf16.mxu0 0
  %252 = vmatpush1.bf16.msra.mxu0 0
  %253 = vmatprep.subr.bf16.mxu0 0
  %254 = vmatpush1.bf16.msra.mxu0 0
  %255 = vmatprep.subr.bf16.mxu0 0
  %256 = vmatpush1.bf16.msra.mxu0 0
  %257 = vmatprep.subr.bf16.mxu0 0
  %258 = vmatpush1.bf16.msra.mxu0 0
  %259 = vmatprep.subr.bf16.mxu0 0
  %260 = vmatpush1.bf16.msra.mxu0 0
  %261 = vmatprep.subr.bf16.mxu0 %v154
  %262 = vmatpush1.bf16.msra.mxu0 %v153
  %263 = vmatprep.subr.bf16.mxu0 %v150
  %264 = vmatpush1.bf16.msra.mxu0 %v149
  %265 = vmatprep.subr.bf16.mxu0 0
  %266 = vmatpush2.bf16.msra.mxu0 0
  %267 = vmatprep.subr.bf16.mxu0 0
  %268 = vmatpush2.bf16.msra.mxu0 0
  %269 = vmatprep.subr.bf16.mxu0 0
  %270 = vmatpush2.bf16.msra.mxu0 0
  %271 = vmatprep.subr.bf16.mxu0 0
  %272 = vmatpush2.bf16.msra.mxu0 0
  %273 = vmatprep.subr.bf16.mxu0 0
  %274 = vmatpush2.bf16.msra.mxu0 0
  %275 = vmatprep.subr.bf16.mxu0 0
  %276 = vmatpush2.bf16.msra.mxu0 0
  %277 = vmatprep.subr.bf16.mxu0 0
  %278 = vmatpush2.bf16.msra.mxu0 0
  %279 = vmatprep.subr.bf16.mxu0 0
  %280 = vmatpush2.bf16.msra.mxu0 0
  %281 = vmatprep.mubr.bf16.mxu0 0
  %282 = vmatmul.mubr.bf16.gmra.mxu0 %v165
  %v283 = vpop.f32.mrf.mxu0
  %v284 = vadd.f32 %v94, %v283
  %v285 = vpop.f32.mrf.mxu0
  %v286 = vadd.f32 %v98, %v285
  %v287 = vpop.f32.mrf.mxu0
  %v288 = vadd.f32 %v94, %v287
  %v289 = vpop.f32.mrf.mxu0
  %v290 = vadd.f32 %v98, %v289
  %291 = vmatprep.mubr.bf16.mxu0 0
  %292 = vmatmul.mubr.bf16.gmra.mxu0 %v168
  %v293 = vpop.f32.mrf.mxu0
  %v294 = vadd.f32 %v94, %v293
  %v295 = vpop.f32.mrf.mxu0
  %v296 = vadd.f32 %v98, %v295
  %v297 = vpop.f32.mrf.mxu0
  %v298 = vadd.f32 %v94, %v297
  %v299 = vpop.f32.mrf.mxu0
  %v300 = vadd.f32 %v98, %v299
  %301 = vmatprep.mubr.bf16.mxu0 0
  %302 = vmatmul.mubr.bf16.gmra.mxu0 %v171
  %v303 = vpop.f32.mrf.mxu0
  %v304 = vadd.f32 %v94, %v303
  %v305 = vpop.f32.mrf.mxu0
  %v306 = vadd.f32 %v98, %v305
  %v307 = vpop.f32.mrf.mxu0
  %v308 = vadd.f32 %v94, %v307
  %v309 = vpop.f32.mrf.mxu0
  %v310 = vadd.f32 %v98, %v309
  %311 = vmatprep.mubr.bf16.mxu0 0
  %312 = vmatmul.mubr.bf16.gmra.mxu0 %v174
  %v313 = vpop.f32.mrf.mxu0
  %v314 = vadd.f32 %v94, %v313
  %v315 = vpop.f32.mrf.mxu0
  %v316 = vadd.f32 %v98, %v315
  %v317 = vpop.f32.mrf.mxu0
  %v318 = vadd.f32 %v94, %v317
  %v319 = vpop.f32.mrf.mxu0
  %v320 = vadd.f32 %v98, %v319
  %321 = vdwg.mxu0
  %v322 = vpack.c.bf16 %v215, %v211
  %v323 = vpack.c.bf16 %v217, %v213
  %v324 = vpack.c.bf16 %v288, %v284
  %v325 = vpack.c.bf16 %v290, %v286
  %v326 = vpack.c.bf16 %v225, %v221
  %v327 = vpack.c.bf16 %v227, %v223
  %v328 = vpack.c.bf16 %v298, %v294
  %v329 = vpack.c.bf16 %v300, %v296
  %v330 = vpack.c.bf16 %v235, %v231
  %v331 = vpack.c.bf16 %v237, %v233
  %v332 = vpack.c.bf16 %v308, %v304
  %v333 = vpack.c.bf16 %v310, %v306
  %v334 = vpack.c.bf16 %v245, %v241
  %v335 = vpack.c.bf16 %v247, %v243
  %v336 = vpack.c.bf16 %v318, %v314
  %v337 = vpack.c.bf16 %v320, %v316
  %v354 = vunpack.c.l.b16 %v322
  %v355 = vunpack.c.l.b16 %v323
  %v356 = vunpack.c.l.b16 %v324
  %v357 = vunpack.c.l.b16 %v325
  %v358 = vunpack.c.h.b16 %v322
  %v359 = vunpack.c.h.b16 %v323
  %v360 = vunpack.c.h.b16 %v324
  %v361 = vunpack.c.h.b16 %v325
  %v362 = vunpack.c.l.b16 %v326
  %v363 = vunpack.c.l.b16 %v327
  %v364 = vunpack.c.l.b16 %v328
  %v365 = vunpack.c.l.b16 %v329
  %v366 = vunpack.c.h.b16 %v326
  %v367 = vunpack.c.h.b16 %v327
  %v368 = vunpack.c.h.b16 %v328
  %v369 = vunpack.c.h.b16 %v329
  %v370 = vunpack.c.l.b16 %v330
  %v371 = vunpack.c.l.b16 %v331
  %v372 = vunpack.c.l.b16 %v332
  %v373 = vunpack.c.l.b16 %v333
  %v374 = vunpack.c.h.b16 %v330
  %v375 = vunpack.c.h.b16 %v331
  %v376 = vunpack.c.h.b16 %v332
  %v377 = vunpack.c.h.b16 %v333
  %v378 = vunpack.c.l.b16 %v334
  %v379 = vunpack.c.l.b16 %v335
  %v380 = vunpack.c.l.b16 %v336
  %v381 = vunpack.c.l.b16 %v337
  %v382 = vunpack.c.h.b16 %v334
  %v383 = vunpack.c.h.b16 %v335
  %v384 = vunpack.c.h.b16 %v336
  %v385 = vunpack.c.h.b16 %v337
  %v386 = vpack.c.b16 %v355, %v354
  %v387 = vpack.c.b16 %v357, %v356
  %v388 = vpack.c.b16 %v359, %v358
  %v389 = vpack.c.b16 %v361, %v360
  %v390 = vpack.c.b16 %v363, %v362
  %v391 = vpack.c.b16 %v365, %v364
  %v392 = vpack.c.b16 %v367, %v366
  %v393 = vpack.c.b16 %v369, %v368
  %v394 = vpack.c.b16 %v371, %v370
  %v395 = vpack.c.b16 %v373, %v372
  %v396 = vpack.c.b16 %v375, %v374
  %v397 = vpack.c.b16 %v377, %v376
  %v398 = vpack.c.b16 %v379, %v378
  %v399 = vpack.c.b16 %v381, %v380
  %v400 = vpack.c.b16 %v383, %v382
  %v401 = vpack.c.b16 %v385, %v384
  %418 = vst [vmem:[#allocation2] sm:$0xff] %v386
  %419 = vst [vmem:[#allocation2 + $0x8] sm:$0xff] %v387
  %420 = vst [vmem:[#allocation2 + $0x10] sm:$0xff] %v388
  %421 = vst [vmem:[#allocation2 + $0x18] sm:$0xff] %v389
  %422 = vst [vmem:[#allocation2 + $0x20] sm:$0xff] %v390
  %423 = vst [vmem:[#allocation2 + $0x28] sm:$0xff] %v391
  %424 = vst [vmem:[#allocation2 + $0x30] sm:$0xff] %v392
  %425 = vst [vmem:[#allocation2 + $0x38] sm:$0xff] %v393
  %426 = vst [vmem:[#allocation2 + $0x40] sm:$0xff] %v394
  %427 = vst [vmem:[#allocation2 + $0x48] sm:$0xff] %v395
  %428 = vst [vmem:[#allocation2 + $0x50] sm:$0xff] %v396
  %429 = vst [vmem:[#allocation2 + $0x58] sm:$0xff] %v397
  %430 = vst [vmem:[#allocation2 + $0x60] sm:$0xff] %v398
  %431 = vst [vmem:[#allocation2 + $0x68] sm:$0xff] %v399
  %432 = vst [vmem:[#allocation2 + $0x70] sm:$0xff] %v400
  %433 = vst [vmem:[#allocation2 + $0x78] sm:$0xff] %v401
  %v434 = vld [vmem:[#allocation2] sm:$0xff]
  %v435 = vld [vmem:[#allocation2 + $0x8] sm:$0xff]
  %v436 = vunpack.c.l.bf16 %v434
  %v437 = vunpack.c.h.bf16 %v434
  %v438 = vunpack.c.l.bf16 %v435
  %v439 = vunpack.c.h.bf16 %v435
  %v472 = vunpack.c.l.b16 %v41
  %v473 = vunpack.c.h.b16 %v41
  %v474 = vunpack.c.l.b16 %v42
  %v475 = vunpack.c.h.b16 %v42
  %v476 = vunpack.c.l.b16 %v43
  %v477 = vunpack.c.h.b16 %v43
  %v478 = vunpack.c.l.b16 %v44
  %v479 = vunpack.c.h.b16 %v44
  %v480 = vunpack.c.l.b16 %v45
  %v481 = vunpack.c.h.b16 %v45
  %v482 = vunpack.c.l.b16 %v46
  %v483 = vunpack.c.h.b16 %v46
  %v484 = vunpack.c.l.b16 %v47
  %v485 = vunpack.c.h.b16 %v47
  %v486 = vunpack.c.l.b16 %v48
  %v487 = vunpack.c.h.b16 %v48
  %v488 = vunpack.c.l.b16 %v49
  %v489 = vunpack.c.h.b16 %v49
  %v490 = vunpack.c.l.b16 %v50
  %v491 = vunpack.c.h.b16 %v50
  %v492 = vunpack.c.l.b16 %v51
  %v493 = vunpack.c.h.b16 %v51
  %v494 = vunpack.c.l.b16 %v52
  %v495 = vunpack.c.h.b16 %v52
  %v496 = vunpack.c.l.b16 %v53
  %v497 = vunpack.c.h.b16 %v53
  %v498 = vunpack.c.l.b16 %v54
  %v499 = vunpack.c.h.b16 %v54
  %v500 = vunpack.c.l.b16 %v55
  %v501 = vunpack.c.h.b16 %v55
  %v502 = vunpack.c.l.b16 %v56
  %v503 = vunpack.c.h.b16 %v56
  %v504 = vunpack.c.l.b16 %v57
  %v505 = vunpack.c.h.b16 %v57
  %v506 = vunpack.c.l.b16 %v58
  %v507 = vunpack.c.h.b16 %v58
  %v508 = vunpack.c.l.b16 %v59
  %v509 = vunpack.c.h.b16 %v59
  %v510 = vunpack.c.l.b16 %v60
  %v511 = vunpack.c.h.b16 %v60
  %v512 = vunpack.c.l.b16 %v61
  %v513 = vunpack.c.h.b16 %v61
  %v514 = vunpack.c.l.b16 %v62
  %v515 = vunpack.c.h.b16 %v62
  %v516 = vunpack.c.l.b16 %v63
  %v517 = vunpack.c.h.b16 %v63
  %v518 = vunpack.c.l.b16 %v64
  %v519 = vunpack.c.h.b16 %v64
  %v520 = vunpack.c.l.b16 %v65
  %v521 = vunpack.c.h.b16 %v65
  %v522 = vunpack.c.l.b16 %v66
  %v523 = vunpack.c.h.b16 %v66
  %v524 = vunpack.c.l.b16 %v67
  %v525 = vunpack.c.h.b16 %v67
  %v526 = vunpack.c.l.b16 %v68
  %v527 = vunpack.c.h.b16 %v68
  %v528 = vunpack.c.l.b16 %v69
  %v529 = vunpack.c.h.b16 %v69
  %v530 = vunpack.c.l.b16 %v70
  %v531 = vunpack.c.h.b16 %v70
  %v532 = vunpack.c.l.b16 %v71
  %v533 = vunpack.c.h.b16 %v71
  %v534 = vunpack.c.l.b16 %v72
  %v535 = vunpack.c.h.b16 %v72
  %v536 = vpack.c.b16 %v476, %v472
  %v537 = vpack.c.b16 %v477, %v473
  %v538 = vpack.c.b16 %v478, %v474
  %v539 = vpack.c.b16 %v479, %v475
  %v540 = vpack.c.b16 %v484, %v480
  %v541 = vpack.c.b16 %v485, %v481
  %v542 = vpack.c.b16 %v486, %v482
  %v543 = vpack.c.b16 %v487, %v483
  %v544 = vpack.c.b16 %v492, %v488
  %v545 = vpack.c.b16 %v493, %v489
  %v546 = vpack.c.b16 %v494, %v490
  %v547 = vpack.c.b16 %v495, %v491
  %v548 = vpack.c.b16 %v500, %v496
  %v549 = vpack.c.b16 %v501, %v497
  %v550 = vpack.c.b16 %v502, %v498
  %v551 = vpack.c.b16 %v503, %v499
  %v552 = vpack.c.b16 %v508, %v504
  %v553 = vpack.c.b16 %v509, %v505
  %v554 = vpack.c.b16 %v510, %v506
  %v555 = vpack.c.b16 %v511, %v507
  %v556 = vpack.c.b16 %v516, %v512
  %v557 = vpack.c.b16 %v517, %v513
  %v558 = vpack.c.b16 %v518, %v514
  %v559 = vpack.c.b16 %v519, %v515
  %v560 = vpack.c.b16 %v524, %v520
  %v561 = vpack.c.b16 %v525, %v521
  %v562 = vpack.c.b16 %v526, %v522
  %v563 = vpack.c.b16 %v527, %v523
  %v564 = vpack.c.b16 %v532, %v528
  %v565 = vpack.c.b16 %v533, %v529
  %v566 = vpack.c.b16 %v534, %v530
  %v567 = vpack.c.b16 %v535, %v531
  %600 = vmatprep.subr.bf16.mxu0 %v565
  %601 = vmatpush1.bf16.msra.mxu0 %v564
  %602 = vmatprep.subr.bf16.mxu0 %v561
  %603 = vmatpush1.bf16.msra.mxu0 %v560
  %604 = vmatprep.subr.bf16.mxu0 %v557
  %605 = vmatpush1.bf16.msra.mxu0 %v556
  %606 = vmatprep.subr.bf16.mxu0 %v553
  %607 = vmatpush1.bf16.msra.mxu0 %v552
  %608 = vmatprep.subr.bf16.mxu0 %v549
  %609 = vmatpush1.bf16.msra.mxu0 %v548
  %610 = vmatprep.subr.bf16.mxu0 %v545
  %611 = vmatpush1.bf16.msra.mxu0 %v544
  %612 = vmatprep.subr.bf16.mxu0 %v541
  %613 = vmatpush1.bf16.msra.mxu0 %v540
  %614 = vmatprep.subr.bf16.mxu0 %v537
  %615 = vmatpush1.bf16.msra.mxu0 %v536
  %616 = vmatprep.subr.bf16.mxu0 0
  %617 = vmatpush2.bf16.msra.mxu0 0
  %618 = vmatprep.subr.bf16.mxu0 0
  %619 = vmatpush2.bf16.msra.mxu0 0
  %620 = vmatprep.subr.bf16.mxu0 0
  %621 = vmatpush2.bf16.msra.mxu0 0
  %622 = vmatprep.subr.bf16.mxu0 0
  %623 = vmatpush2.bf16.msra.mxu0 0
  %624 = vmatprep.subr.bf16.mxu0 0
  %625 = vmatpush2.bf16.msra.mxu0 0
  %626 = vmatprep.subr.bf16.mxu0 0
  %627 = vmatpush2.bf16.msra.mxu0 0
  %628 = vmatprep.subr.bf16.mxu0 0
  %629 = vmatpush2.bf16.msra.mxu0 0
  %630 = vmatprep.subr.bf16.mxu0 0
  %631 = vmatpush2.bf16.msra.mxu0 0
  %632 = vmatprep.mubr.bf16.mxu0 0
  %633 = vmatmul.mubr.bf16.gmra.mxu0 0
  %v634 = vpop.f32.mrf.mxu0
  %v635 = vadd.f32 0.0, %v634
  %v636 = vpop.f32.mrf.mxu0
  %v637 = vadd.f32 0.0, %v636
  %v638 = vpop.f32.mrf.mxu0
  %v639 = vpop.f32.mrf.mxu0
  %640 = vdwg.mxu0
  %641 = vmatprep.subr.bf16.mxu0 %v567
  %642 = vmatpush1.bf16.msra.mxu0 %v566
  %643 = vmatprep.subr.bf16.mxu0 %v563
  %644 = vmatpush1.bf16.msra.mxu0 %v562
  %645 = vmatprep.subr.bf16.mxu0 %v559
  %646 = vmatpush1.bf16.msra.mxu0 %v558
  %647 = vmatprep.subr.bf16.mxu0 %v555
  %648 = vmatpush1.bf16.msra.mxu0 %v554
  %649 = vmatprep.subr.bf16.mxu0 %v551
  %650 = vmatpush1.bf16.msra.mxu0 %v550
  %651 = vmatprep.subr.bf16.mxu0 %v547
  %652 = vmatpush1.bf16.msra.mxu0 %v546
  %653 = vmatprep.subr.bf16.mxu0 %v543
  %654 = vmatpush1.bf16.msra.mxu0 %v542
  %655 = vmatprep.subr.bf16.mxu0 %v539
  %656 = vmatpush1.bf16.msra.mxu0 %v538
  %657 = vmatprep.subr.bf16.mxu0 0
  %658 = vmatpush2.bf16.msra.mxu0 0
  %659 = vmatprep.subr.bf16.mxu0 0
  %660 = vmatpush2.bf16.msra.mxu0 0
  %661 = vmatprep.subr.bf16.mxu0 0
  %662 = vmatpush2.bf16.msra.mxu0 0
  %663 = vmatprep.subr.bf16.mxu0 0
  %664 = vmatpush2.bf16.msra.mxu0 0
  %665 = vmatprep.subr.bf16.mxu0 0
  %666 = vmatpush2.bf16.msra.mxu0 0
  %667 = vmatprep.subr.bf16.mxu0 0
  %668 = vmatpush2.bf16.msra.mxu0 0
  %669 = vmatprep.subr.bf16.mxu0 0
  %670 = vmatpush2.bf16.msra.mxu0 0
  %671 = vmatprep.subr.bf16.mxu0 0
  %672 = vmatpush2.bf16.msra.mxu0 0
  %673 = vmatprep.mubr.bf16.mxu0 0
  %674 = vmatmul.mubr.bf16.gmra.mxu0 0
  %v675 = vpop.f32.mrf.mxu0
  %v676 = vadd.f32 0.0, %v675
  %v677 = vpop.f32.mrf.mxu0
  %v678 = vadd.f32 0.0, %v677
  %v679 = vpop.f32.mrf.mxu0
  %v680 = vpop.f32.mrf.mxu0
  %681 = vdwg.mxu0
  %v682 = vadd.f32 %v436, %v635
  %v683 = vadd.f32 %v437, %v637
  %v684 = vadd.f32 %v438, %v676
  %v685 = vadd.f32 %v439, %v678
  %v686 = vxor.u32 %v682, 2147483648
  %v687 = vxor.u32 %v683, 2147483648
  %v688 = vxor.u32 %v684, 2147483648
  %v689 = vmul.f32 %v686, 1.442695
  %v690 = vpow.pop %v689
  %v691 = vmul.f32 %v687, 1.442695
  %v692 = vpow.pop %v691
  %v693 = vmul.f32 %v688, 1.442695
  %v694 = vpow.pop %v693
  %v695 = vadd.f32 %v690, 1.0
  %v696 = vadd.f32 %v692, 1.0
  %v697 = vadd.f32 %v694, 1.0
  %v698 = vrcp.pop %v695
  %v699 = vmul.f32 1.0, %v698
  %v700 = vrcp.pop %v696
  %v701 = vmul.f32 1.0, %v700
  %v702 = vrcp.pop %v697
  %v703 = vmul.f32 1.0, %v702
  %v704 = vtanh.pop %v685
  %v705 = vmul.f32 %v701, 0.0
  %v706 = vmul.f32 %v699, %v704
  %v707 = vadd.f32 %v705, %v706
  %v708 = vtanh.pop %v707
  %v709 = vmul.f32 %v703, %v708
  %v710 = vpack.c.bf16 %v709, %v709
  %711 = vst [vmem:[#allocation3] sm:$0xf] %v710
  %v712 = vld [vmem:[#allocation2 + $0x10] sm:$0xff]
  %v713 = vld [vmem:[#allocation2 + $0x18] sm:$0xff]
  %v714 = vunpack.c.l.bf16 %v712
  %v715 = vunpack.c.h.bf16 %v712
  %v716 = vunpack.c.l.bf16 %v713
  %v717 = vunpack.c.h.bf16 %v713
  %718 = vmatprep.subr.bf16.mxu0 %v565
  %719 = vmatpush1.bf16.msra.mxu0 %v564
  %720 = vmatprep.subr.bf16.mxu0 %v561
  %721 = vmatpush1.bf16.msra.mxu0 %v560
  %722 = vmatprep.subr.bf16.mxu0 %v557
  %723 = vmatpush1.bf16.msra.mxu0 %v556
  %724 = vmatprep.subr.bf16.mxu0 %v553
  %725 = vmatpush1.bf16.msra.mxu0 %v552
  %726 = vmatprep.subr.bf16.mxu0 %v549
  %727 = vmatpush1.bf16.msra.mxu0 %v548
  %728 = vmatprep.subr.bf16.mxu0 %v545
  %729 = vmatpush1.bf16.msra.mxu0 %v544
  %730 = vmatprep.subr.bf16.mxu0 %v541
  %731 = vmatpush1.bf16.msra.mxu0 %v540
  %732 = vmatprep.subr.bf16.mxu0 %v537
  %733 = vmatpush1.bf16.msra.mxu0 %v536
  %734 = vmatprep.subr.bf16.mxu0 0
  %735 = vmatpush2.bf16.msra.mxu0 0
  %736 = vmatprep.subr.bf16.mxu0 0
  %737 = vmatpush2.bf16.msra.mxu0 0
  %738 = vmatprep.subr.bf16.mxu0 0
  %739 = vmatpush2.bf16.msra.mxu0 0
  %740 = vmatprep.subr.bf16.mxu0 0
  %741 = vmatpush2.bf16.msra.mxu0 0
  %742 = vmatprep.subr.bf16.mxu0 0
  %743 = vmatpush2.bf16.msra.mxu0 0
  %744 = vmatprep.subr.bf16.mxu0 0
  %745 = vmatpush2.bf16.msra.mxu0 0
  %746 = vmatprep.subr.bf16.mxu0 0
  %747 = vmatpush2.bf16.msra.mxu0 0
  %748 = vmatprep.subr.bf16.mxu0 0
  %749 = vmatpush2.bf16.msra.mxu0 0
  %750 = vmatprep.mubr.bf16.mxu0 0
  %751 = vmatmul.mubr.bf16.gmra.mxu0 %v710
  %v752 = vpop.f32.mrf.mxu0
  %v753 = vadd.f32 0.0, %v752
  %v754 = vpop.f32.mrf.mxu0
  %v755 = vadd.f32 0.0, %v754
  %v756 = vpop.f32.mrf.mxu0
  %v757 = vpop.f32.mrf.mxu0
  %758 = vdwg.mxu0
  %759 = vmatprep.subr.bf16.mxu0 %v567
  %760 = vmatpush1.bf16.msra.mxu0 %v566
  %761 = vmatprep.subr.bf16.mxu0 %v563
  %762 = vmatpush1.bf16.msra.mxu0 %v562
  %763 = vmatprep.subr.bf16.mxu0 %v559
  %764 = vmatpush1.bf16.msra.mxu0 %v558
  %765 = vmatprep.subr.bf16.mxu0 %v555
  %766 = vmatpush1.bf16.msra.mxu0 %v554
  %767 = vmatprep.subr.bf16.mxu0 %v551
  %768 = vmatpush1.bf16.msra.mxu0 %v550
  %769 = vmatprep.subr.bf16.mxu0 %v547
  %770 = vmatpush1.bf16.msra.mxu0 %v546
  %771 = vmatprep.subr.bf16.mxu0 %v543
  %772 = vmatpush1.bf16.msra.mxu0 %v542
  %773 = vmatprep.subr.bf16.mxu0 %v539
  %774 = vmatpush1.bf16.msra.mxu0 %v538
  %775 = vmatprep.subr.bf16.mxu0 0
  %776 = vmatpush2.bf16.msra.mxu0 0
  %777 = vmatprep.subr.bf16.mxu0 0
  %778 = vmatpush2.bf16.msra.mxu0 0
  %779 = vmatprep.subr.bf16.mxu0 0
  %780 = vmatpush2.bf16.msra.mxu0 0
  %781 = vmatprep.subr.bf16.mxu0 0
  %782 = vmatpush2.bf16.msra.mxu0 0
  %783 = vmatprep.subr.bf16.mxu0 0
  %784 = vmatpush2.bf16.msra.mxu0 0
  %785 = vmatprep.subr.bf16.mxu0 0
  %786 = vmatpush2.bf16.msra.mxu0 0
  %787 = vmatprep.subr.bf16.mxu0 0
  %788 = vmatpush2.bf16.msra.mxu0 0
  %789 = vmatprep.subr.bf16.mxu0 0
  %790 = vmatpush2.bf16.msra.mxu0 0
  %791 = vmatprep.mubr.bf16.mxu0 0
  %792 = vmatmul.mubr.bf16.gmra.mxu0 %v710
  %v793 = vpop.f32.mrf.mxu0
  %v794 = vadd.f32 0.0, %v793
  %v795 = vpop.f32.mrf.mxu0
  %v796 = vadd.f32 0.0, %v795
  %v797 = vpop.f32.mrf.mxu0
  %v798 = vpop.f32.mrf.mxu0
  %799 = vdwg.mxu0
  %v800 = vadd.f32 %v714, %v753
  %v801 = vadd.f32 %v715, %v755
  %v802 = vadd.f32 %v716, %v794
  %v803 = vadd.f32 %v717, %v796
  %v804 = vxor.u32 %v800, 2147483648
  %v805 = vxor.u32 %v801, 2147483648
  %v806 = vxor.u32 %v802, 2147483648
  %v807 = vmul.f32 %v804, 1.442695
  %v808 = vpow.pop %v807
  %v809 = vmul.f32 %v805, 1.442695
  %v810 = vpow.pop %v809
  %v811 = vmul.f32 %v806, 1.442695
  %v812 = vpow.pop %v811
  %v813 = vadd.f32 %v808, 1.0
  %v814 = vadd.f32 %v810, 1.0
  %v815 = vadd.f32 %v812, 1.0
  %v816 = vrcp.pop %v813
  %v817 = vmul.f32 1.0, %v816
  %v818 = vrcp.pop %v814
  %v819 = vmul.f32 1.0, %v818
  %v820 = vrcp.pop %v815
  %v821 = vmul.f32 1.0, %v820
  %v822 = vtanh.pop %v803
  %v823 = vmul.f32 %v819, %v707
  %v824 = vmul.f32 %v817, %v822
  %v825 = vadd.f32 %v823, %v824
  %v826 = vtanh.pop %v825
  %v827 = vmul.f32 %v821, %v826
  %v828 = vpack.c.bf16 %v827, %v827
  %829 = vst [vmem:[#allocation3 + $0x4] sm:$0xf] %v828
  %v830 = vld [vmem:[#allocation2 + $0x20] sm:$0xff]
  %v831 = vld [vmem:[#allocation2 + $0x28] sm:$0xff]
  %v832 = vunpack.c.l.bf16 %v830
  %v833 = vunpack.c.h.bf16 %v830
  %v834 = vunpack.c.l.bf16 %v831
  %v835 = vunpack.c.h.bf16 %v831
  %836 = vmatprep.subr.bf16.mxu0 %v565
  %837 = vmatpush1.bf16.msra.mxu0 %v564
  %838 = vmatprep.subr.bf16.mxu0 %v561
  %839 = vmatpush1.bf16.msra.mxu0 %v560
  %840 = vmatprep.subr.bf16.mxu0 %v557
  %841 = vmatpush1.bf16.msra.mxu0 %v556
  %842 = vmatprep.subr.bf16.mxu0 %v553
  %843 = vmatpush1.bf16.msra.mxu0 %v552
  %844 = vmatprep.subr.bf16.mxu0 %v549
  %845 = vmatpush1.bf16.msra.mxu0 %v548
  %846 = vmatprep.subr.bf16.mxu0 %v545
  %847 = vmatpush1.bf16.msra.mxu0 %v544
  %848 = vmatprep.subr.bf16.mxu0 %v541
  %849 = vmatpush1.bf16.msra.mxu0 %v540
  %850 = vmatprep.subr.bf16.mxu0 %v537
  %851 = vmatpush1.bf16.msra.mxu0 %v536
  %852 = vmatprep.subr.bf16.mxu0 0
  %853 = vmatpush2.bf16.msra.mxu0 0
  %854 = vmatprep.subr.bf16.mxu0 0
  %855 = vmatpush2.bf16.msra.mxu0 0
  %856 = vmatprep.subr.bf16.mxu0 0
  %857 = vmatpush2.bf16.msra.mxu0 0
  %858 = vmatprep.subr.bf16.mxu0 0
  %859 = vmatpush2.bf16.msra.mxu0 0
  %860 = vmatprep.subr.bf16.mxu0 0
  %861 = vmatpush2.bf16.msra.mxu0 0
  %862 = vmatprep.subr.bf16.mxu0 0
  %863 = vmatpush2.bf16.msra.mxu0 0
  %864 = vmatprep.subr.bf16.mxu0 0
  %865 = vmatpush2.bf16.msra.mxu0 0
  %866 = vmatprep.subr.bf16.mxu0 0
  %867 = vmatpush2.bf16.msra.mxu0 0
  %868 = vmatprep.mubr.bf16.mxu0 0
  %869 = vmatmul.mubr.bf16.gmra.mxu0 %v828
  %v870 = vpop.f32.mrf.mxu0
  %v871 = vadd.f32 0.0, %v870
  %v872 = vpop.f32.mrf.mxu0
  %v873 = vadd.f32 0.0, %v872
  %v874 = vpop.f32.mrf.mxu0
  %v875 = vpop.f32.mrf.mxu0
  %876 = vdwg.mxu0
  %877 = vmatprep.subr.bf16.mxu0 %v567
  %878 = vmatpush1.bf16.msra.mxu0 %v566
  %879 = vmatprep.subr.bf16.mxu0 %v563
  %880 = vmatpush1.bf16.msra.mxu0 %v562
  %881 = vmatprep.subr.bf16.mxu0 %v559
  %882 = vmatpush1.bf16.msra.mxu0 %v558
  %883 = vmatprep.subr.bf16.mxu0 %v555
  %884 = vmatpush1.bf16.msra.mxu0 %v554
  %885 = vmatprep.subr.bf16.mxu0 %v551
  %886 = vmatpush1.bf16.msra.mxu0 %v550
  %887 = vmatprep.subr.bf16.mxu0 %v547
  %888 = vmatpush1.bf16.msra.mxu0 %v546
  %889 = vmatprep.subr.bf16.mxu0 %v543
  %890 = vmatpush1.bf16.msra.mxu0 %v542
  %891 = vmatprep.subr.bf16.mxu0 %v539
  %892 = vmatpush1.bf16.msra.mxu0 %v538
  %893 = vmatprep.subr.bf16.mxu0 0
  %894 = vmatpush2.bf16.msra.mxu0 0
  %895 = vmatprep.subr.bf16.mxu0 0
  %896 = vmatpush2.bf16.msra.mxu0 0
  %897 = vmatprep.subr.bf16.mxu0 0
  %898 = vmatpush2.bf16.msra.mxu0 0
  %899 = vmatprep.subr.bf16.mxu0 0
  %900 = vmatpush2.bf16.msra.mxu0 0
  %901 = vmatprep.subr.bf16.mxu0 0
  %902 = vmatpush2.bf16.msra.mxu0 0
  %903 = vmatprep.subr.bf16.mxu0 0
  %904 = vmatpush2.bf16.msra.mxu0 0
  %905 = vmatprep.subr.bf16.mxu0 0
  %906 = vmatpush2.bf16.msra.mxu0 0
  %907 = vmatprep.subr.bf16.mxu0 0
  %908 = vmatpush2.bf16.msra.mxu0 0
  %909 = vmatprep.mubr.bf16.mxu0 0
  %910 = vmatmul.mubr.bf16.gmra.mxu0 %v828
  %v911 = vpop.f32.mrf.mxu0
  %v912 = vadd.f32 0.0, %v911
  %v913 = vpop.f32.mrf.mxu0
  %v914 = vadd.f32 0.0, %v913
  %v915 = vpop.f32.mrf.mxu0
  %v916 = vpop.f32.mrf.mxu0
  %917 = vdwg.mxu0
  %v918 = vadd.f32 %v832, %v871
  %v919 = vadd.f32 %v833, %v873
  %v920 = vadd.f32 %v834, %v912
  %v921 = vadd.f32 %v835, %v914
  %v922 = vxor.u32 %v918, 2147483648
  %v923 = vxor.u32 %v919, 2147483648
  %v924 = vxor.u32 %v920, 2147483648
  %v925 = vmul.f32 %v922, 1.442695
  %v926 = vpow.pop %v925
  %v927 = vmul.f32 %v923, 1.442695
  %v928 = vpow.pop %v927
  %v929 = vmul.f32 %v924, 1.442695
  %v930 = vpow.pop %v929
  %v931 = vadd.f32 %v926, 1.0
  %v932 = vadd.f32 %v928, 1.0
  %v933 = vadd.f32 %v930, 1.0
  %v934 = vrcp.pop %v931
  %v935 = vmul.f32 1.0, %v934
  %v936 = vrcp.pop %v932
  %v937 = vmul.f32 1.0, %v936
  %v938 = vrcp.pop %v933
  %v939 = vmul.f32 1.0, %v938
  %v940 = vtanh.pop %v921
  %v941 = vmul.f32 %v937, %v825
  %v942 = vmul.f32 %v935, %v940
  %v943 = vadd.f32 %v941, %v942
  %v944 = vtanh.pop %v943
  %v945 = vmul.f32 %v939, %v944
  %v946 = vpack.c.bf16 %v945, %v945
  %947 = vst [vmem:[#allocation3 + $0x8] sm:$0xf] %v946
  %v948 = vld [vmem:[#allocation2 + $0x30] sm:$0xff]
  %v949 = vld [vmem:[#allocation2 + $0x38] sm:$0xff]
  %v950 = vunpack.c.l.bf16 %v948
  %v951 = vunpack.c.h.bf16 %v948
  %v952 = vunpack.c.l.bf16 %v949
  %v953 = vunpack.c.h.bf16 %v949
  %954 = vmatprep.subr.bf16.mxu0 %v565
  %955 = vmatpush1.bf16.msra.mxu0 %v564
  %956 = vmatprep.subr.bf16.mxu0 %v561
  %957 = vmatpush1.bf16.msra.mxu0 %v560
  %958 = vmatprep.subr.bf16.mxu0 %v557
  %959 = vmatpush1.bf16.msra.mxu0 %v556
  %960 = vmatprep.subr.bf16.mxu0 %v553
  %961 = vmatpush1.bf16.msra.mxu0 %v552
  %962 = vmatprep.subr.bf16.mxu0 %v549
  %963 = vmatpush1.bf16.msra.mxu0 %v548
  %964 = vmatprep.subr.bf16.mxu0 %v545
  %965 = vmatpush1.bf16.msra.mxu0 %v544
  %966 = vmatprep.subr.bf16.mxu0 %v541
  %967 = vmatpush1.bf16.msra.mxu0 %v540
  %968 = vmatprep.subr.bf16.mxu0 %v537
  %969 = vmatpush1.bf16.msra.mxu0 %v536
  %970 = vmatprep.subr.bf16.mxu0 0
  %971 = vmatpush2.bf16.msra.mxu0 0
  %972 = vmatprep.subr.bf16.mxu0 0
  %973 = vmatpush2.bf16.msra.mxu0 0
  %974 = vmatprep.subr.bf16.mxu0 0
  %975 = vmatpush2.bf16.msra.mxu0 0
  %976 = vmatprep.subr.bf16.mxu0 0
  %977 = vmatpush2.bf16.msra.mxu0 0
  %978 = vmatprep.subr.bf16.mxu0 0
  %979 = vmatpush2.bf16.msra.mxu0 0
  %980 = vmatprep.subr.bf16.mxu0 0
  %981 = vmatpush2.bf16.msra.mxu0 0
  %982 = vmatprep.subr.bf16.mxu0 0
  %983 = vmatpush2.bf16.msra.mxu0 0
  %984 = vmatprep.subr.bf16.mxu0 0
  %985 = vmatpush2.bf16.msra.mxu0 0
  %986 = vmatprep.mubr.bf16.mxu0 0
  %987 = vmatmul.mubr.bf16.gmra.mxu0 %v946
  %v988 = vpop.f32.mrf.mxu0
  %v989 = vadd.f32 0.0, %v988
  %v990 = vpop.f32.mrf.mxu0
  %v991 = vadd.f32 0.0, %v990
  %v992 = vpop.f32.mrf.mxu0
  %v993 = vpop.f32.mrf.mxu0
  %994 = vdwg.mxu0
  %995 = vmatprep.subr.bf16.mxu0 %v567
  %996 = vmatpush1.bf16.msra.mxu0 %v566
  %997 = vmatprep.subr.bf16.mxu0 %v563
  %998 = vmatpush1.bf16.msra.mxu0 %v562
  %999 = vmatprep.subr.bf16.mxu0 %v559
  %1000 = vmatpush1.bf16.msra.mxu0 %v558
  %1001 = vmatprep.subr.bf16.mxu0 %v555
  %1002 = vmatpush1.bf16.msra.mxu0 %v554
  %1003 = vmatprep.subr.bf16.mxu0 %v551
  %1004 = vmatpush1.bf16.msra.mxu0 %v550
  %1005 = vmatprep.subr.bf16.mxu0 %v547
  %1006 = vmatpush1.bf16.msra.mxu0 %v546
  %1007 = vmatprep.subr.bf16.mxu0 %v543
  %1008 = vmatpush1.bf16.msra.mxu0 %v542
  %1009 = vmatprep.subr.bf16.mxu0 %v539
  %1010 = vmatpush1.bf16.msra.mxu0 %v538
  %1011 = vmatprep.subr.bf16.mxu0 0
  %1012 = vmatpush2.bf16.msra.mxu0 0
  %1013 = vmatprep.subr.bf16.mxu0 0
  %1014 = vmatpush2.bf16.msra.mxu0 0
  %1015 = vmatprep.subr.bf16.mxu0 0
  %1016 = vmatpush2.bf16.msra.mxu0 0
  %1017 = vmatprep.subr.bf16.mxu0 0
  %1018 = vmatpush2.bf16.msra.mxu0 0
  %1019 = vmatprep.subr.bf16.mxu0 0
  %1020 = vmatpush2.bf16.msra.mxu0 0
  %1021 = vmatprep.subr.bf16.mxu0 0
  %1022 = vmatpush2.bf16.msra.mxu0 0
  %1023 = vmatprep.subr.bf16.mxu0 0
  %1024 = vmatpush2.bf16.msra.mxu0 0
  %1025 = vmatprep.subr.bf16.mxu0 0
  %1026 = vmatpush2.bf16.msra.mxu0 0
  %1027 = vmatprep.mubr.bf16.mxu0 0
  %1028 = vmatmul.mubr.bf16.gmra.mxu0 %v946
  %v1029 = vpop.f32.mrf.mxu0
  %v1030 = vadd.f32 0.0, %v1029
  %v1031 = vpop.f32.mrf.mxu0
  %v1032 = vadd.f32 0.0, %v1031
  %v1033 = vpop.f32.mrf.mxu0
  %v1034 = vpop.f32.mrf.mxu0
  %1035 = vdwg.mxu0
  %v1036 = vadd.f32 %v950, %v989
  %v1037 = vadd.f32 %v951, %v991
  %v1038 = vadd.f32 %v952, %v1030
  %v1039 = vadd.f32 %v953, %v1032
  %v1040 = vxor.u32 %v1036, 2147483648
  %v1041 = vxor.u32 %v1037, 2147483648
  %v1042 = vxor.u32 %v1038, 2147483648
  %v1043 = vmul.f32 %v1040, 1.442695
  %v1044 = vpow.pop %v1043
  %v1045 = vmul.f32 %v1041, 1.442695
  %v1046 = vpow.pop %v1045
  %v1047 = vmul.f32 %v1042, 1.442695
  %v1048 = vpow.pop %v1047
  %v1049 = vadd.f32 %v1044, 1.0
  %v1050 = vadd.f32 %v1046, 1.0
  %v1051 = vadd.f32 %v1048, 1.0
  %v1052 = vrcp.pop %v1049
  %v1053 = vmul.f32 1.0, %v1052
  %v1054 = vrcp.pop %v1050
  %v1055 = vmul.f32 1.0, %v1054
  %v1056 = vrcp.pop %v1051
  %v1057 = vmul.f32 1.0, %v1056
  %v1058 = vtanh.pop %v1039
  %v1059 = vmul.f32 %v1055, %v943
  %v1060 = vmul.f32 %v1053, %v1058
  %v1061 = vadd.f32 %v1059, %v1060
  %v1062 = vtanh.pop %v1061
  %v1063 = vmul.f32 %v1057, %v1062
  %v1064 = vpack.c.bf16 %v1063, %v1063
  %1065 = vst [vmem:[#allocation3 + $0xc] sm:$0xf] %v1064
  %v1066 = vld [vmem:[#allocation2 + $0x40] sm:$0xff]
  %v1067 = vld [vmem:[#allocation2 + $0x48] sm:$0xff]
  %v1068 = vunpack.c.l.bf16 %v1066
  %v1069 = vunpack.c.h.bf16 %v1066
  %v1070 = vunpack.c.l.bf16 %v1067
  %v1071 = vunpack.c.h.bf16 %v1067
  %1072 = vmatprep.subr.bf16.mxu0 %v565
  %1073 = vmatpush1.bf16.msra.mxu0 %v564
  %1074 = vmatprep.subr.bf16.mxu0 %v561
  %1075 = vmatpush1.bf16.msra.mxu0 %v560
  %1076 = vmatprep.subr.bf16.mxu0 %v557
  %1077 = vmatpush1.bf16.msra.mxu0 %v556
  %1078 = vmatprep.subr.bf16.mxu0 %v553
  %1079 = vmatpush1.bf16.msra.mxu0 %v552
  %1080 = vmatprep.subr.bf16.mxu0 %v549
  %1081 = vmatpush1.bf16.msra.mxu0 %v548
  %1082 = vmatprep.subr.bf16.mxu0 %v545
  %1083 = vmatpush1.bf16.msra.mxu0 %v544
  %1084 = vmatprep.subr.bf16.mxu0 %v541
  %1085 = vmatpush1.bf16.msra.mxu0 %v540
  %1086 = vmatprep.subr.bf16.mxu0 %v537
  %1087 = vmatpush1.bf16.msra.mxu0 %v536
  %1088 = vmatprep.subr.bf16.mxu0 0
  %1089 = vmatpush2.bf16.msra.mxu0 0
  %1090 = vmatprep.subr.bf16.mxu0 0
  %1091 = vmatpush2.bf16.msra.mxu0 0
  %1092 = vmatprep.subr.bf16.mxu0 0
  %1093 = vmatpush2.bf16.msra.mxu0 0
  %1094 = vmatprep.subr.bf16.mxu0 0
  %1095 = vmatpush2.bf16.msra.mxu0 0
  %1096 = vmatprep.subr.bf16.mxu0 0
  %1097 = vmatpush2.bf16.msra.mxu0 0
  %1098 = vmatprep.subr.bf16.mxu0 0
  %1099 = vmatpush2.bf16.msra.mxu0 0
  %1100 = vmatprep.subr.bf16.mxu0 0
  %1101 = vmatpush2.bf16.msra.mxu0 0
  %1102 = vmatprep.subr.bf16.mxu0 0
  %1103 = vmatpush2.bf16.msra.mxu0 0
  %1104 = vmatprep.mubr.bf16.mxu0 0
  %1105 = vmatmul.mubr.bf16.gmra.mxu0 %v1064
  %v1106 = vpop.f32.mrf.mxu0
  %v1107 = vadd.f32 0.0, %v1106
  %v1108 = vpop.f32.mrf.mxu0
  %v1109 = vadd.f32 0.0, %v1108
  %v1110 = vpop.f32.mrf.mxu0
  %v1111 = vpop.f32.mrf.mxu0
  %1112 = vdwg.mxu0
  %1113 = vmatprep.subr.bf16.mxu0 %v567
  %1114 = vmatpush1.bf16.msra.mxu0 %v566
  %1115 = vmatprep.subr.bf16.mxu0 %v563
  %1116 = vmatpush1.bf16.msra.mxu0 %v562
  %1117 = vmatprep.subr.bf16.mxu0 %v559
  %1118 = vmatpush1.bf16.msra.mxu0 %v558
  %1119 = vmatprep.subr.bf16.mxu0 %v555
  %1120 = vmatpush1.bf16.msra.mxu0 %v554
  %1121 = vmatprep.subr.bf16.mxu0 %v551
  %1122 = vmatpush1.bf16.msra.mxu0 %v550
  %1123 = vmatprep.subr.bf16.mxu0 %v547
  %1124 = vmatpush1.bf16.msra.mxu0 %v546
  %1125 = vmatprep.subr.bf16.mxu0 %v543
  %1126 = vmatpush1.bf16.msra.mxu0 %v542
  %1127 = vmatprep.subr.bf16.mxu0 %v539
  %1128 = vmatpush1.bf16.msra.mxu0 %v538
  %1129 = vmatprep.subr.bf16.mxu0 0
  %1130 = vmatpush2.bf16.msra.mxu0 0
  %1131 = vmatprep.subr.bf16.mxu0 0
  %1132 = vmatpush2.bf16.msra.mxu0 0
  %1133 = vmatprep.subr.bf16.mxu0 0
  %1134 = vmatpush2.bf16.msra.mxu0 0
  %1135 = vmatprep.subr.bf16.mxu0 0
  %1136 = vmatpush2.bf16.msra.mxu0 0
  %1137 = vmatprep.subr.bf16.mxu0 0
  %1138 = vmatpush2.bf16.msra.mxu0 0
  %1139 = vmatprep.subr.bf16.mxu0 0
  %1140 = vmatpush2.bf16.msra.mxu0 0
  %1141 = vmatprep.subr.bf16.mxu0 0
  %1142 = vmatpush2.bf16.msra.mxu0 0
  %1143 = vmatprep.subr.bf16.mxu0 0
  %1144 = vmatpush2.bf16.msra.mxu0 0
  %1145 = vmatprep.mubr.bf16.mxu0 0
  %1146 = vmatmul.mubr.bf16.gmra.mxu0 %v1064
  %v1147 = vpop.f32.mrf.mxu0
  %v1148 = vadd.f32 0.0, %v1147
  %v1149 = vpop.f32.mrf.mxu0
  %v1150 = vadd.f32 0.0, %v1149
  %v1151 = vpop.f32.mrf.mxu0
  %v1152 = vpop.f32.mrf.mxu0
  %1153 = vdwg.mxu0
  %v1154 = vadd.f32 %v1068, %v1107
  %v1155 = vadd.f32 %v1069, %v1109
  %v1156 = vadd.f32 %v1070, %v1148
  %v1157 = vadd.f32 %v1071, %v1150
  %v1158 = vxor.u32 %v1154, 2147483648
  %v1159 = vxor.u32 %v1155, 2147483648
  %v1160 = vxor.u32 %v1156, 2147483648
  %v1161 = vmul.f32 %v1158, 1.442695
  %v1162 = vpow.pop %v1161
  %v1163 = vmul.f32 %v1159, 1.442695
  %v1164 = vpow.pop %v1163
  %v1165 = vmul.f32 %v1160, 1.442695
  %v1166 = vpow.pop %v1165
  %v1167 = vadd.f32 %v1162, 1.0
  %v1168 = vadd.f32 %v1164, 1.0
  %v1169 = vadd.f32 %v1166, 1.0
  %v1170 = vrcp.pop %v1167
  %v1171 = vmul.f32 1.0, %v1170
  %v1172 = vrcp.pop %v1168
  %v1173 = vmul.f32 1.0, %v1172
  %v1174 = vrcp.pop %v1169
  %v1175 = vmul.f32 1.0, %v1174
  %v1176 = vtanh.pop %v1157
  %v1177 = vmul.f32 %v1173, %v1061
  %v1178 = vmul.f32 %v1171, %v1176
  %v1179 = vadd.f32 %v1177, %v1178
  %v1180 = vtanh.pop %v1179
  %v1181 = vmul.f32 %v1175, %v1180
  %v1182 = vpack.c.bf16 %v1181, %v1181
  %1183 = vst [vmem:[#allocation3 + $0x10] sm:$0xf] %v1182
  %v1184 = vld [vmem:[#allocation2 + $0x50] sm:$0xff]
  %v1185 = vld [vmem:[#allocation2 + $0x58] sm:$0xff]
  %v1186 = vunpack.c.l.bf16 %v1184
  %v1187 = vunpack.c.h.bf16 %v1184
  %v1188 = vunpack.c.l.bf16 %v1185
  %v1189 = vunpack.c.h.bf16 %v1185
  %1190 = vmatprep.subr.bf16.mxu0 %v565
  %1191 = vmatpush1.bf16.msra.mxu0 %v564
  %1192 = vmatprep.subr.bf16.mxu0 %v561
  %1193 = vmatpush1.bf16.msra.mxu0 %v560
  %1194 = vmatprep.subr.bf16.mxu0 %v557
  %1195 = vmatpush1.bf16.msra.mxu0 %v556
  %1196 = vmatprep.subr.bf16.mxu0 %v553
  %1197 = vmatpush1.bf16.msra.mxu0 %v552
  %1198 = vmatprep.subr.bf16.mxu0 %v549
  %1199 = vmatpush1.bf16.msra.mxu0 %v548
  %1200 = vmatprep.subr.bf16.mxu0 %v545
  %1201 = vmatpush1.bf16.msra.mxu0 %v544
  %1202 = vmatprep.subr.bf16.mxu0 %v541
  %1203 = vmatpush1.bf16.msra.mxu0 %v540
  %1204 = vmatprep.subr.bf16.mxu0 %v537
  %1205 = vmatpush1.bf16.msra.mxu0 %v536
  %1206 = vmatprep.subr.bf16.mxu0 0
  %1207 = vmatpush2.bf16.msra.mxu0 0
  %1208 = vmatprep.subr.bf16.mxu0 0
  %1209 = vmatpush2.bf16.msra.mxu0 0
  %1210 = vmatprep.subr.bf16.mxu0 0
  %1211 = vmatpush2.bf16.msra.mxu0 0
  %1212 = vmatprep.subr.bf16.mxu0 0
  %1213 = vmatpush2.bf16.msra.mxu0 0
  %1214 = vmatprep.subr.bf16.mxu0 0
  %1215 = vmatpush2.bf16.msra.mxu0 0
  %1216 = vmatprep.subr.bf16.mxu0 0
  %1217 = vmatpush2.bf16.msra.mxu0 0
  %1218 = vmatprep.subr.bf16.mxu0 0
  %1219 = vmatpush2.bf16.msra.mxu0 0
  %1220 = vmatprep.subr.bf16.mxu0 0
  %1221 = vmatpush2.bf16.msra.mxu0 0
  %1222 = vmatprep.mubr.bf16.mxu0 0
  %1223 = vmatmul.mubr.bf16.gmra.mxu0 %v1182
  %v1224 = vpop.f32.mrf.mxu0
  %v1225 = vadd.f32 0.0, %v1224
  %v1226 = vpop.f32.mrf.mxu0
  %v1227 = vadd.f32 0.0, %v1226
  %v1228 = vpop.f32.mrf.mxu0
  %v1229 = vpop.f32.mrf.mxu0
  %1230 = vdwg.mxu0
  %1231 = vmatprep.subr.bf16.mxu0 %v567
  %1232 = vmatpush1.bf16.msra.mxu0 %v566
  %1233 = vmatprep.subr.bf16.mxu0 %v563
  %1234 = vmatpush1.bf16.msra.mxu0 %v562
  %1235 = vmatprep.subr.bf16.mxu0 %v559
  %1236 = vmatpush1.bf16.msra.mxu0 %v558
  %1237 = vmatprep.subr.bf16.mxu0 %v555
  %1238 = vmatpush1.bf16.msra.mxu0 %v554
  %1239 = vmatprep.subr.bf16.mxu0 %v551
  %1240 = vmatpush1.bf16.msra.mxu0 %v550
  %1241 = vmatprep.subr.bf16.mxu0 %v547
  %1242 = vmatpush1.bf16.msra.mxu0 %v546
  %1243 = vmatprep.subr.bf16.mxu0 %v543
  %1244 = vmatpush1.bf16.msra.mxu0 %v542
  %1245 = vmatprep.subr.bf16.mxu0 %v539
  %1246 = vmatpush1.bf16.msra.mxu0 %v538
  %1247 = vmatprep.subr.bf16.mxu0 0
  %1248 = vmatpush2.bf16.msra.mxu0 0
  %1249 = vmatprep.subr.bf16.mxu0 0
  %1250 = vmatpush2.bf16.msra.mxu0 0
  %1251 = vmatprep.subr.bf16.mxu0 0
  %1252 = vmatpush2.bf16.msra.mxu0 0
  %1253 = vmatprep.subr.bf16.mxu0 0
  %1254 = vmatpush2.bf16.msra.mxu0 0
  %1255 = vmatprep.subr.bf16.mxu0 0
  %1256 = vmatpush2.bf16.msra.mxu0 0
  %1257 = vmatprep.subr.bf16.mxu0 0
  %1258 = vmatpush2.bf16.msra.mxu0 0
  %1259 = vmatprep.subr.bf16.mxu0 0
  %1260 = vmatpush2.bf16.msra.mxu0 0
  %1261 = vmatprep.subr.bf16.mxu0 0
  %1262 = vmatpush2.bf16.msra.mxu0 0
  %1263 = vmatprep.mubr.bf16.mxu0 0
  %1264 = vmatmul.mubr.bf16.gmra.mxu0 %v1182
  %v1265 = vpop.f32.mrf.mxu0
  %v1266 = vadd.f32 0.0, %v1265
  %v1267 = vpop.f32.mrf.mxu0
  %v1268 = vadd.f32 0.0, %v1267
  %v1269 = vpop.f32.mrf.mxu0
  %v1270 = vpop.f32.mrf.mxu0
  %1271 = vdwg.mxu0
  %v1272 = vadd.f32 %v1186, %v1225
  %v1273 = vadd.f32 %v1187, %v1227
  %v1274 = vadd.f32 %v1188, %v1266
  %v1275 = vadd.f32 %v1189, %v1268
  %v1276 = vxor.u32 %v1272, 2147483648
  %v1277 = vxor.u32 %v1273, 2147483648
  %v1278 = vxor.u32 %v1274, 2147483648
  %v1279 = vmul.f32 %v1276, 1.442695
  %v1280 = vpow.pop %v1279
  %v1281 = vmul.f32 %v1277, 1.442695
  %v1282 = vpow.pop %v1281
  %v1283 = vmul.f32 %v1278, 1.442695
  %v1284 = vpow.pop %v1283
  %v1285 = vadd.f32 %v1280, 1.0
  %v1286 = vadd.f32 %v1282, 1.0
  %v1287 = vadd.f32 %v1284, 1.0
  %v1288 = vrcp.pop %v1285
  %v1289 = vmul.f32 1.0, %v1288
  %v1290 = vrcp.pop %v1286
  %v1291 = vmul.f32 1.0, %v1290
  %v1292 = vrcp.pop %v1287
  %v1293 = vmul.f32 1.0, %v1292
  %v1294 = vtanh.pop %v1275
  %v1295 = vmul.f32 %v1291, %v1179
  %v1296 = vmul.f32 %v1289, %v1294
  %v1297 = vadd.f32 %v1295, %v1296
  %v1298 = vtanh.pop %v1297
  %v1299 = vmul.f32 %v1293, %v1298
  %v1300 = vpack.c.bf16 %v1299, %v1299
  %1301 = vst [vmem:[#allocation3 + $0x14] sm:$0xf] %v1300
  %v1302 = vld [vmem:[#allocation2 + $0x60] sm:$0xff]
  %v1303 = vld [vmem:[#allocation2 + $0x68] sm:$0xff]
  %v1304 = vunpack.c.l.bf16 %v1302
  %v1305 = vunpack.c.h.bf16 %v1302
  %v1306 = vunpack.c.l.bf16 %v1303
  %v1307 = vunpack.c.h.bf16 %v1303
  %1308 = vmatprep.subr.bf16.mxu0 %v565
  %1309 = vmatpush1.bf16.msra.mxu0 %v564
  %1310 = vmatprep.subr.bf16.mxu0 %v561
  %1311 = vmatpush1.bf16.msra.mxu0 %v560
  %1312 = vmatprep.subr.bf16.mxu0 %v557
  %1313 = vmatpush1.bf16.msra.mxu0 %v556
  %1314 = vmatprep.subr.bf16.mxu0 %v553
  %1315 = vmatpush1.bf16.msra.mxu0 %v552
  %1316 = vmatprep.subr.bf16.mxu0 %v549
  %1317 = vmatpush1.bf16.msra.mxu0 %v548
  %1318 = vmatprep.subr.bf16.mxu0 %v545
  %1319 = vmatpush1.bf16.msra.mxu0 %v544
  %1320 = vmatprep.subr.bf16.mxu0 %v541
  %1321 = vmatpush1.bf16.msra.mxu0 %v540
  %1322 = vmatprep.subr.bf16.mxu0 %v537
  %1323 = vmatpush1.bf16.msra.mxu0 %v536
  %1324 = vmatprep.subr.bf16.mxu0 0
  %1325 = vmatpush2.bf16.msra.mxu0 0
  %1326 = vmatprep.subr.bf16.mxu0 0
  %1327 = vmatpush2.bf16.msra.mxu0 0
  %1328 = vmatprep.subr.bf16.mxu0 0
  %1329 = vmatpush2.bf16.msra.mxu0 0
  %1330 = vmatprep.subr.bf16.mxu0 0
  %1331 = vmatpush2.bf16.msra.mxu0 0
  %1332 = vmatprep.subr.bf16.mxu0 0
  %1333 = vmatpush2.bf16.msra.mxu0 0
  %1334 = vmatprep.subr.bf16.mxu0 0
  %1335 = vmatpush2.bf16.msra.mxu0 0
  %1336 = vmatprep.subr.bf16.mxu0 0
  %1337 = vmatpush2.bf16.msra.mxu0 0
  %1338 = vmatprep.subr.bf16.mxu0 0
  %1339 = vmatpush2.bf16.msra.mxu0 0
  %1340 = vmatprep.mubr.bf16.mxu0 0
  %1341 = vmatmul.mubr.bf16.gmra.mxu0 %v1300
  %v1342 = vpop.f32.mrf.mxu0
  %v1343 = vadd.f32 0.0, %v1342
  %v1344 = vpop.f32.mrf.mxu0
  %v1345 = vadd.f32 0.0, %v1344
  %v1346 = vpop.f32.mrf.mxu0
  %v1347 = vpop.f32.mrf.mxu0
  %1348 = vdwg.mxu0
  %1349 = vmatprep.subr.bf16.mxu0 %v567
  %1350 = vmatpush1.bf16.msra.mxu0 %v566
  %1351 = vmatprep.subr.bf16.mxu0 %v563
  %1352 = vmatpush1.bf16.msra.mxu0 %v562
  %1353 = vmatprep.subr.bf16.mxu0 %v559
  %1354 = vmatpush1.bf16.msra.mxu0 %v558
  %1355 = vmatprep.subr.bf16.mxu0 %v555
  %1356 = vmatpush1.bf16.msra.mxu0 %v554
  %1357 = vmatprep.subr.bf16.mxu0 %v551
  %1358 = vmatpush1.bf16.msra.mxu0 %v550
  %1359 = vmatprep.subr.bf16.mxu0 %v547
  %1360 = vmatpush1.bf16.msra.mxu0 %v546
  %1361 = vmatprep.subr.bf16.mxu0 %v543
  %1362 = vmatpush1.bf16.msra.mxu0 %v542
  %1363 = vmatprep.subr.bf16.mxu0 %v539
  %1364 = vmatpush1.bf16.msra.mxu0 %v538
  %1365 = vmatprep.subr.bf16.mxu0 0
  %1366 = vmatpush2.bf16.msra.mxu0 0
  %1367 = vmatprep.subr.bf16.mxu0 0
  %1368 = vmatpush2.bf16.msra.mxu0 0
  %1369 = vmatprep.subr.bf16.mxu0 0
  %1370 = vmatpush2.bf16.msra.mxu0 0
  %1371 = vmatprep.subr.bf16.mxu0 0
  %1372 = vmatpush2.bf16.msra.mxu0 0
  %1373 = vmatprep.subr.bf16.mxu0 0
  %1374 = vmatpush2.bf16.msra.mxu0 0
  %1375 = vmatprep.subr.bf16.mxu0 0
  %1376 = vmatpush2.bf16.msra.mxu0 0
  %1377 = vmatprep.subr.bf16.mxu0 0
  %1378 = vmatpush2.bf16.msra.mxu0 0
  %1379 = vmatprep.subr.bf16.mxu0 0
  %1380 = vmatpush2.bf16.msra.mxu0 0
  %1381 = vmatprep.mubr.bf16.mxu0 0
  %1382 = vmatmul.mubr.bf16.gmra.mxu0 %v1300
  %v1383 = vpop.f32.mrf.mxu0
  %v1384 = vadd.f32 0.0, %v1383
  %v1385 = vpop.f32.mrf.mxu0
  %v1386 = vadd.f32 0.0, %v1385
  %v1387 = vpop.f32.mrf.mxu0
  %v1388 = vpop.f32.mrf.mxu0
  %1389 = vdwg.mxu0
  %v1390 = vadd.f32 %v1304, %v1343
  %v1391 = vadd.f32 %v1305, %v1345
  %v1392 = vadd.f32 %v1306, %v1384
  %v1393 = vadd.f32 %v1307, %v1386
  %v1394 = vxor.u32 %v1390, 2147483648
  %v1395 = vxor.u32 %v1391, 2147483648
  %v1396 = vxor.u32 %v1392, 2147483648
  %v1397 = vmul.f32 %v1394, 1.442695
  %v1398 = vpow.pop %v1397
  %v1399 = vmul.f32 %v1395, 1.442695
  %v1400 = vpow.pop %v1399
  %v1401 = vmul.f32 %v1396, 1.442695
  %v1402 = vpow.pop %v1401
  %v1403 = vadd.f32 %v1398, 1.0
  %v1404 = vadd.f32 %v1400, 1.0
  %v1405 = vadd.f32 %v1402, 1.0
  %v1406 = vrcp.pop %v1403
  %v1407 = vmul.f32 1.0, %v1406
  %v1408 = vrcp.pop %v1404
  %v1409 = vmul.f32 1.0, %v1408
  %v1410 = vrcp.pop %v1405
  %v1411 = vmul.f32 1.0, %v1410
  %v1412 = vtanh.pop %v1393
  %v1413 = vmul.f32 %v1409, %v1297
  %v1414 = vmul.f32 %v1407, %v1412
  %v1415 = vadd.f32 %v1413, %v1414
  %v1416 = vtanh.pop %v1415
  %v1417 = vmul.f32 %v1411, %v1416
  %v1418 = vpack.c.bf16 %v1417, %v1417
  %1419 = vst [vmem:[#allocation3 + $0x18] sm:$0xf] %v1418
  %v1420 = vld [vmem:[#allocation2 + $0x70] sm:$0xff]
  %v1421 = vld [vmem:[#allocation2 + $0x78] sm:$0xff]
  %v1422 = vunpack.c.l.bf16 %v1420
  %v1423 = vunpack.c.h.bf16 %v1420
  %v1424 = vunpack.c.l.bf16 %v1421
  %v1425 = vunpack.c.h.bf16 %v1421
  %1426 = vmatprep.subr.bf16.mxu0 %v565
  %1427 = vmatpush1.bf16.msra.mxu0 %v564
  %1428 = vmatprep.subr.bf16.mxu0 %v561
  %1429 = vmatpush1.bf16.msra.mxu0 %v560
  %1430 = vmatprep.subr.bf16.mxu0 %v557
  %1431 = vmatpush1.bf16.msra.mxu0 %v556
  %1432 = vmatprep.subr.bf16.mxu0 %v553
  %1433 = vmatpush1.bf16.msra.mxu0 %v552
  %1434 = vmatprep.subr.bf16.mxu0 %v549
  %1435 = vmatpush1.bf16.msra.mxu0 %v548
  %1436 = vmatprep.subr.bf16.mxu0 %v545
  %1437 = vmatpush1.bf16.msra.mxu0 %v544
  %1438 = vmatprep.subr.bf16.mxu0 %v541
  %1439 = vmatpush1.bf16.msra.mxu0 %v540
  %1440 = vmatprep.subr.bf16.mxu0 %v537
  %1441 = vmatpush1.bf16.msra.mxu0 %v536
  %1442 = vmatprep.subr.bf16.mxu0 0
  %1443 = vmatpush2.bf16.msra.mxu0 0
  %1444 = vmatprep.subr.bf16.mxu0 0
  %1445 = vmatpush2.bf16.msra.mxu0 0
  %1446 = vmatprep.subr.bf16.mxu0 0
  %1447 = vmatpush2.bf16.msra.mxu0 0
  %1448 = vmatprep.subr.bf16.mxu0 0
  %1449 = vmatpush2.bf16.msra.mxu0 0
  %1450 = vmatprep.subr.bf16.mxu0 0
  %1451 = vmatpush2.bf16.msra.mxu0 0
  %1452 = vmatprep.subr.bf16.mxu0 0
  %1453 = vmatpush2.bf16.msra.mxu0 0
  %1454 = vmatprep.subr.bf16.mxu0 0
  %1455 = vmatpush2.bf16.msra.mxu0 0
  %1456 = vmatprep.subr.bf16.mxu0 0
  %1457 = vmatpush2.bf16.msra.mxu0 0
  %1458 = vmatprep.mubr.bf16.mxu0 0
  %1459 = vmatmul.mubr.bf16.gmra.mxu0 %v1418
  %v1460 = vpop.f32.mrf.mxu0
  %v1461 = vadd.f32 0.0, %v1460
  %v1462 = vpop.f32.mrf.mxu0
  %v1463 = vadd.f32 0.0, %v1462
  %v1464 = vpop.f32.mrf.mxu0
  %v1465 = vpop.f32.mrf.mxu0
  %1466 = vdwg.mxu0
  %1467 = vmatprep.subr.bf16.mxu0 %v567
  %1468 = vmatpush1.bf16.msra.mxu0 %v566
  %1469 = vmatprep.subr.bf16.mxu0 %v563
  %1470 = vmatpush1.bf16.msra.mxu0 %v562
  %1471 = vmatprep.subr.bf16.mxu0 %v559
  %1472 = vmatpush1.bf16.msra.mxu0 %v558
  %1473 = vmatprep.subr.bf16.mxu0 %v555
  %1474 = vmatpush1.bf16.msra.mxu0 %v554
  %1475 = vmatprep.subr.bf16.mxu0 %v551
  %1476 = vmatpush1.bf16.msra.mxu0 %v550
  %1477 = vmatprep.subr.bf16.mxu0 %v547
  %1478 = vmatpush1.bf16.msra.mxu0 %v546
  %1479 = vmatprep.subr.bf16.mxu0 %v543
  %1480 = vmatpush1.bf16.msra.mxu0 %v542
  %1481 = vmatprep.subr.bf16.mxu0 %v539
  %1482 = vmatpush1.bf16.msra.mxu0 %v538
  %1483 = vmatprep.subr.bf16.mxu0 0
  %1484 = vmatpush2.bf16.msra.mxu0 0
  %1485 = vmatprep.subr.bf16.mxu0 0
  %1486 = vmatpush2.bf16.msra.mxu0 0
  %1487 = vmatprep.subr.bf16.mxu0 0
  %1488 = vmatpush2.bf16.msra.mxu0 0
  %1489 = vmatprep.subr.bf16.mxu0 0
  %1490 = vmatpush2.bf16.msra.mxu0 0
  %1491 = vmatprep.subr.bf16.mxu0 0
  %1492 = vmatpush2.bf16.msra.mxu0 0
  %1493 = vmatprep.subr.bf16.mxu0 0
  %1494 = vmatpush2.bf16.msra.mxu0 0
  %1495 = vmatprep.subr.bf16.mxu0 0
  %1496 = vmatpush2.bf16.msra.mxu0 0
  %1497 = vmatprep.subr.bf16.mxu0 0
  %1498 = vmatpush2.bf16.msra.mxu0 0
  %1499 = vmatprep.mubr.bf16.mxu0 0
  %1500 = vmatmul.mubr.bf16.gmra.mxu0 %v1418
  %v1501 = vpop.f32.mrf.mxu0
  %v1502 = vadd.f32 0.0, %v1501
  %v1503 = vpop.f32.mrf.mxu0
  %v1504 = vadd.f32 0.0, %v1503
  %v1505 = vpop.f32.mrf.mxu0
  %v1506 = vpop.f32.mrf.mxu0
  %1507 = vdwg.mxu0
  %v1508 = vadd.f32 %v1422, %v1461
  %v1509 = vadd.f32 %v1423, %v1463
  %v1510 = vadd.f32 %v1424, %v1502
  %v1511 = vadd.f32 %v1425, %v1504
  %v1512 = vxor.u32 %v1508, 2147483648
  %v1513 = vxor.u32 %v1509, 2147483648
  %v1514 = vxor.u32 %v1510, 2147483648
  %v1515 = vmul.f32 %v1512, 1.442695
  %v1516 = vpow.pop %v1515
  %v1517 = vmul.f32 %v1513, 1.442695
  %v1518 = vpow.pop %v1517
  %v1519 = vmul.f32 %v1514, 1.442695
  %v1520 = vpow.pop %v1519
  %v1521 = vadd.f32 %v1516, 1.0
  %v1522 = vadd.f32 %v1518, 1.0
  %v1523 = vadd.f32 %v1520, 1.0
  %v1524 = vrcp.pop %v1521
  %v1525 = vmul.f32 1.0, %v1524
  %v1526 = vrcp.pop %v1522
  %v1527 = vmul.f32 1.0, %v1526
  %v1528 = vrcp.pop %v1523
  %v1529 = vmul.f32 1.0, %v1528
  %v1530 = vtanh.pop %v1511
  %v1531 = vmul.f32 %v1527, %v1415
  %v1532 = vmul.f32 %v1525, %v1530
  %v1533 = vadd.f32 %v1531, %v1532
  %v1534 = vtanh.pop %v1533
  %v1535 = vmul.f32 %v1529, %v1534
  %v1536 = vpack.c.bf16 %v1535, %v1535
  %1537 = vst [vmem:[#allocation3 + $0x1c] sm:$0xf] %v1536
  %v1538 = vld [vmem:[%s4] sm:$0xff]
  %v1539 = vld [vmem:[%s4 + $0x8] sm:$0xff]
  %v1540 = vld [vmem:[%s4 + $0x10] sm:$0xff]
  %v1541 = vld [vmem:[%s4 + $0x18] sm:$0xff]
  %v1542 = vld [vmem:[%s4 + $0x20] sm:$0xff]
  %v1543 = vld [vmem:[%s4 + $0x28] sm:$0xff]
  %v1544 = vld [vmem:[%s4 + $0x30] sm:$0xff]
  %v1545 = vld [vmem:[%s4 + $0x38] sm:$0xff]
  %v1546 = vld [vmem:[%s4 + $0x40] sm:$0xff]
  %v1547 = vld [vmem:[%s4 + $0x48] sm:$0xff]
  %v1548 = vld [vmem:[%s4 + $0x50] sm:$0xff]
  %v1549 = vld [vmem:[%s4 + $0x58] sm:$0xff]
  %v1550 = vld [vmem:[%s4 + $0x60] sm:$0xff]
  %v1551 = vld [vmem:[%s4 + $0x68] sm:$0xff]
  %v1552 = vld [vmem:[%s4 + $0x70] sm:$0xff]
  %v1553 = vld [vmem:[%s4 + $0x78] sm:$0xff]
  %v1554 = vld [vmem:[%s4 + $0x80] sm:$0xff]
  %v1555 = vld [vmem:[%s4 + $0x88] sm:$0xff]
  %v1556 = vld [vmem:[%s4 + $0x90] sm:$0xff]
  %v1557 = vld [vmem:[%s4 + $0x98] sm:$0xff]
  %v1558 = vld [vmem:[%s4 + $0xa0] sm:$0xff]
  %v1559 = vld [vmem:[%s4 + $0xa8] sm:$0xff]
  %v1560 = vld [vmem:[%s4 + $0xb0] sm:$0xff]
  %v1561 = vld [vmem:[%s4 + $0xb8] sm:$0xff]
  %v1562 = vld [vmem:[%s4 + $0xc0] sm:$0xff]
  %v1563 = vld [vmem:[%s4 + $0xc8] sm:$0xff]
  %v1564 = vld [vmem:[%s4 + $0xd0] sm:$0xff]
  %v1565 = vld [vmem:[%s4 + $0xd8] sm:$0xff]
  %v1566 = vld [vmem:[%s4 + $0xe0] sm:$0xff]
  %v1567 = vld [vmem:[%s4 + $0xe8] sm:$0xff]
  %v1568 = vld [vmem:[%s4 + $0xf0] sm:$0xff]
  %v1569 = vld [vmem:[%s4 + $0xf8] sm:$0xff]
  %v1570 = vld [vmem:[%s5] sm:$0xff]
  %v1571 = vld [vmem:[%s5 + $0x8] sm:$0xff]
  %v1572 = vld [vmem:[%s5 + $0x10] sm:$0xff]
  %v1573 = vld [vmem:[%s5 + $0x18] sm:$0xff]
  %v1574 = vld [vmem:[%s5 + $0x20] sm:$0xff]
  %v1575 = vld [vmem:[%s5 + $0x28] sm:$0xff]
  %v1576 = vld [vmem:[%s5 + $0x30] sm:$0xff]
  %v1577 = vld [vmem:[%s5 + $0x38] sm:$0xff]
  %v1578 = vld [vmem:[%s5 + $0x40] sm:$0xff]
  %v1579 = vld [vmem:[%s5 + $0x48] sm:$0xff]
  %v1580 = vld [vmem:[%s5 + $0x50] sm:$0xff]
  %v1581 = vld [vmem:[%s5 + $0x58] sm:$0xff]
  %v1582 = vld [vmem:[%s5 + $0x60] sm:$0xff]
  %v1583 = vld [vmem:[%s5 + $0x68] sm:$0xff]
  %v1584 = vld [vmem:[%s5 + $0x70] sm:$0xff]
  %v1585 = vld [vmem:[%s5 + $0x78] sm:$0xff]
  %v1586 = vld [vmem:[%s5 + $0x80] sm:$0xff]
  %v1587 = vld [vmem:[%s5 + $0x88] sm:$0xff]
  %v1588 = vld [vmem:[%s5 + $0x90] sm:$0xff]
  %v1589 = vld [vmem:[%s5 + $0x98] sm:$0xff]
  %v1590 = vld [vmem:[%s5 + $0xa0] sm:$0xff]
  %v1591 = vld [vmem:[%s5 + $0xa8] sm:$0xff]
  %v1592 = vld [vmem:[%s5 + $0xb0] sm:$0xff]
  %v1593 = vld [vmem:[%s5 + $0xb8] sm:$0xff]
  %v1594 = vld [vmem:[%s5 + $0xc0] sm:$0xff]
  %v1595 = vld [vmem:[%s5 + $0xc8] sm:$0xff]
  %v1596 = vld [vmem:[%s5 + $0xd0] sm:$0xff]
  %v1597 = vld [vmem:[%s5 + $0xd8] sm:$0xff]
  %v1598 = vld [vmem:[%s5 + $0xe0] sm:$0xff]
  %v1599 = vld [vmem:[%s5 + $0xe8] sm:$0xff]
  %v1600 = vld [vmem:[%s5 + $0xf0] sm:$0xff]
  %v1601 = vld [vmem:[%s5 + $0xf8] sm:$0xff]
  %v1602 = vld [vmem:[%s6] sm:$0xf]
  %v1603 = vld [vmem:[#allocation3] sm:$0xf]
  %v1604 = vld [vmem:[#allocation3 + $0x4] sm:$0xf]
  %v1605 = vld [vmem:[#allocation3 + $0x8] sm:$0xf]
  %v1606 = vld [vmem:[#allocation3 + $0xc] sm:$0xf]
  %v1607 = vld [vmem:[#allocation3 + $0x10] sm:$0xf]
  %v1608 = vld [vmem:[#allocation3 + $0x14] sm:$0xf]
  %v1609 = vld [vmem:[#allocation3 + $0x18] sm:$0xf]
  %v1610 = vld [vmem:[#allocation3 + $0x1c] sm:$0xf]
  %v1612 = vlaneseq
  %v1613 = vshrl.u32 %v1612, 7
  %v1614 = vsub.s32 0, %v1613
  %v1615 = vrot.slane %v1602, %v1614
  %v1616 = vlaneseq
  %v1617 = vshrl.u32 %v1616, 7
  %v1618 = vsub.s32 1, %v1617
  %v1619 = vrot.slane %v1602, %v1618
  %v1620 = vlaneseq
  %v1621 = vshrl.u32 %v1620, 7
  %v1622 = vsub.s32 2, %v1621
  %v1623 = vrot.slane %v1602, %v1622
  %v1624 = vlaneseq
  %v1625 = vshrl.u32 %v1624, 7
  %v1626 = vsub.s32 3, %v1625
  %v1627 = vrot.slane %v1602, %v1626
  %v1640 = vunpack.c.l.b16 %v1603
  %v1641 = vunpack.c.l.b16 %v1604
  %v1642 = vunpack.c.l.b16 %v1605
  %v1643 = vunpack.c.l.b16 %v1606
  %v1644 = vunpack.c.l.b16 %v1607
  %v1645 = vunpack.c.l.b16 %v1608
  %v1646 = vunpack.c.l.b16 %v1609
  %v1647 = vunpack.c.l.b16 %v1610
  %v1648 = vpack.c.b16 %v1641, %v1640
  %v1649 = vpack.c.b16 %v1643, %v1642
  %v1650 = vpack.c.b16 %v1645, %v1644
  %v1651 = vpack.c.b16 %v1647, %v1646
  %v1688 = vunpack.c.l.b16 %v1538
  %v1689 = vunpack.c.h.b16 %v1538
  %v1690 = vunpack.c.l.b16 %v1539
  %v1691 = vunpack.c.h.b16 %v1539
  %v1692 = vunpack.c.l.b16 %v1540
  %v1693 = vunpack.c.h.b16 %v1540
  %v1694 = vunpack.c.l.b16 %v1541
  %v1695 = vunpack.c.h.b16 %v1541
  %v1696 = vunpack.c.l.b16 %v1542
  %v1697 = vunpack.c.h.b16 %v1542
  %v1698 = vunpack.c.l.b16 %v1543
  %v1699 = vunpack.c.h.b16 %v1543
  %v1700 = vunpack.c.l.b16 %v1544
  %v1701 = vunpack.c.h.b16 %v1544
  %v1702 = vunpack.c.l.b16 %v1545
  %v1703 = vunpack.c.h.b16 %v1545
  %v1704 = vunpack.c.l.b16 %v1546
  %v1705 = vunpack.c.h.b16 %v1546
  %v1706 = vunpack.c.l.b16 %v1547
  %v1707 = vunpack.c.h.b16 %v1547
  %v1708 = vunpack.c.l.b16 %v1548
  %v1709 = vunpack.c.h.b16 %v1548
  %v1710 = vunpack.c.l.b16 %v1549
  %v1711 = vunpack.c.h.b16 %v1549
  %v1712 = vunpack.c.l.b16 %v1550
  %v1713 = vunpack.c.h.b16 %v1550
  %v1714 = vunpack.c.l.b16 %v1551
  %v1715 = vunpack.c.h.b16 %v1551
  %v1716 = vunpack.c.l.b16 %v1552
  %v1717 = vunpack.c.h.b16 %v1552
  %v1718 = vunpack.c.l.b16 %v1553
  %v1719 = vunpack.c.h.b16 %v1553
  %v1720 = vunpack.c.l.b16 %v1554
  %v1721 = vunpack.c.h.b16 %v1554
  %v1722 = vunpack.c.l.b16 %v1555
  %v1723 = vunpack.c.h.b16 %v1555
  %v1724 = vunpack.c.l.b16 %v1556
  %v1725 = vunpack.c.h.b16 %v1556
  %v1726 = vunpack.c.l.b16 %v1557
  %v1727 = vunpack.c.h.b16 %v1557
  %v1728 = vunpack.c.l.b16 %v1558
  %v1729 = vunpack.c.h.b16 %v1558
  %v1730 = vunpack.c.l.b16 %v1559
  %v1731 = vunpack.c.h.b16 %v1559
  %v1732 = vunpack.c.l.b16 %v1560
  %v1733 = vunpack.c.h.b16 %v1560
  %v1734 = vunpack.c.l.b16 %v1561
  %v1735 = vunpack.c.h.b16 %v1561
  %v1736 = vunpack.c.l.b16 %v1562
  %v1737 = vunpack.c.h.b16 %v1562
  %v1738 = vunpack.c.l.b16 %v1563
  %v1739 = vunpack.c.h.b16 %v1563
  %v1740 = vunpack.c.l.b16 %v1564
  %v1741 = vunpack.c.h.b16 %v1564
  %v1742 = vunpack.c.l.b16 %v1565
  %v1743 = vunpack.c.h.b16 %v1565
  %v1744 = vunpack.c.l.b16 %v1566
  %v1745 = vunpack.c.h.b16 %v1566
  %v1746 = vunpack.c.l.b16 %v1567
  %v1747 = vunpack.c.h.b16 %v1567
  %v1748 = vunpack.c.l.b16 %v1568
  %v1749 = vunpack.c.h.b16 %v1568
  %v1750 = vunpack.c.l.b16 %v1569
  %v1751 = vunpack.c.h.b16 %v1569
  %v1752 = vpack.c.b16 %v1692, %v1688
  %v1753 = vpack.c.b16 %v1693, %v1689
  %v1754 = vpack.c.b16 %v1694, %v1690
  %v1755 = vpack.c.b16 %v1695, %v1691
  %v1756 = vpack.c.b16 %v1700, %v1696
  %v1757 = vpack.c.b16 %v1701, %v1697
  %v1758 = vpack.c.b16 %v1702, %v1698
  %v1759 = vpack.c.b16 %v1703, %v1699
  %v1760 = vpack.c.b16 %v1708, %v1704
  %v1761 = vpack.c.b16 %v1709, %v1705
  %v1762 = vpack.c.b16 %v1710, %v1706
  %v1763 = vpack.c.b16 %v1711, %v1707
  %v1764 = vpack.c.b16 %v1716, %v1712
  %v1765 = vpack.c.b16 %v1717, %v1713
  %v1766 = vpack.c.b16 %v1718, %v1714
  %v1767 = vpack.c.b16 %v1719, %v1715
  %v1768 = vpack.c.b16 %v1724, %v1720
  %v1769 = vpack.c.b16 %v1725, %v1721
  %v1770 = vpack.c.b16 %v1726, %v1722
  %v1771 = vpack.c.b16 %v1727, %v1723
  %v1772 = vpack.c.b16 %v1732, %v1728
  %v1773 = vpack.c.b16 %v1733, %v1729
  %v1774 = vpack.c.b16 %v1734, %v1730
  %v1775 = vpack.c.b16 %v1735, %v1731
  %v1776 = vpack.c.b16 %v1740, %v1736
  %v1777 = vpack.c.b16 %v1741, %v1737
  %v1778 = vpack.c.b16 %v1742, %v1738
  %v1779 = vpack.c.b16 %v1743, %v1739
  %v1780 = vpack.c.b16 %v1748, %v1744
  %v1781 = vpack.c.b16 %v1749, %v1745
  %v1782 = vpack.c.b16 %v1750, %v1746
  %v1783 = vpack.c.b16 %v1751, %v1747
  %1816 = vmatprep.subr.bf16.mxu0 %v1781
  %1817 = vmatpush1.bf16.msra.mxu0 %v1780
  %1818 = vmatprep.subr.bf16.mxu0 %v1777
  %1819 = vmatpush1.bf16.msra.mxu0 %v1776
  %1820 = vmatprep.subr.bf16.mxu0 %v1773
  %1821 = vmatpush1.bf16.msra.mxu0 %v1772
  %1822 = vmatprep.subr.bf16.mxu0 %v1769
  %1823 = vmatpush1.bf16.msra.mxu0 %v1768
  %1824 = vmatprep.subr.bf16.mxu0 %v1765
  %1825 = vmatpush1.bf16.msra.mxu0 %v1764
  %1826 = vmatprep.subr.bf16.mxu0 %v1761
  %1827 = vmatpush1.bf16.msra.mxu0 %v1760
  %1828 = vmatprep.subr.bf16.mxu0 %v1757
  %1829 = vmatpush1.bf16.msra.mxu0 %v1756
  %1830 = vmatprep.subr.bf16.mxu0 %v1753
  %1831 = vmatpush1.bf16.msra.mxu0 %v1752
  %1832 = vmatprep.subr.bf16.mxu0 0
  %1833 = vmatpush2.bf16.msra.mxu0 0
  %1834 = vmatprep.subr.bf16.mxu0 0
  %1835 = vmatpush2.bf16.msra.mxu0 0
  %1836 = vmatprep.subr.bf16.mxu0 0
  %1837 = vmatpush2.bf16.msra.mxu0 0
  %1838 = vmatprep.subr.bf16.mxu0 0
  %1839 = vmatpush2.bf16.msra.mxu0 0
  %1840 = vmatprep.subr.bf16.mxu0 0
  %1841 = vmatpush2.bf16.msra.mxu0 0
  %1842 = vmatprep.subr.bf16.mxu0 0
  %1843 = vmatpush2.bf16.msra.mxu0 0
  %1844 = vmatprep.subr.bf16.mxu0 0
  %1845 = vmatpush2.bf16.msra.mxu0 0
  %1846 = vmatprep.subr.bf16.mxu0 0
  %1847 = vmatpush2.bf16.msra.mxu0 0
  %1848 = vmatprep.mubr.bf16.mxu0 0
  %1849 = vmatmul.mubr.bf16.gmra.mxu0 %v1648
  %v1850 = vpop.f32.mrf.mxu0
  %v1851 = vadd.f32 %v1615, %v1850
  %v1852 = vpop.f32.mrf.mxu0
  %v1853 = vadd.f32 %v1619, %v1852
  %v1854 = vpop.f32.mrf.mxu0
  %v1855 = vadd.f32 %v1615, %v1854
  %v1856 = vpop.f32.mrf.mxu0
  %v1857 = vadd.f32 %v1619, %v1856
  %1858 = vmatprep.mubr.bf16.mxu0 0
  %1859 = vmatmul.mubr.bf16.gmra.mxu0 %v1649
  %v1860 = vpop.f32.mrf.mxu0
  %v1861 = vadd.f32 %v1615, %v1860
  %v1862 = vpop.f32.mrf.mxu0
  %v1863 = vadd.f32 %v1619, %v1862
  %v1864 = vpop.f32.mrf.mxu0
  %v1865 = vadd.f32 %v1615, %v1864
  %v1866 = vpop.f32.mrf.mxu0
  %v1867 = vadd.f32 %v1619, %v1866
  %1868 = vmatprep.mubr.bf16.mxu0 0
  %1869 = vmatmul.mubr.bf16.gmra.mxu0 %v1650
  %v1870 = vpop.f32.mrf.mxu0
  %v1871 = vadd.f32 %v1615, %v1870
  %v1872 = vpop.f32.mrf.mxu0
  %v1873 = vadd.f32 %v1619, %v1872
  %v1874 = vpop.f32.mrf.mxu0
  %v1875 = vadd.f32 %v1615, %v1874
  %v1876 = vpop.f32.mrf.mxu0
  %v1877 = vadd.f32 %v1619, %v1876
  %1878 = vmatprep.mubr.bf16.mxu0 0
  %1879 = vmatmul.mubr.bf16.gmra.mxu0 %v1651
  %v1880 = vpop.f32.mrf.mxu0
  %v1881 = vadd.f32 %v1615, %v1880
  %v1882 = vpop.f32.mrf.mxu0
  %v1883 = vadd.f32 %v1619, %v1882
  %v1884 = vpop.f32.mrf.mxu0
  %v1885 = vadd.f32 %v1615, %v1884
  %v1886 = vpop.f32.mrf.mxu0
  %v1887 = vadd.f32 %v1619, %v1886
  %1888 = vdwg.mxu0
  %1889 = vmatprep.subr.bf16.mxu0 %v1783
  %1890 = vmatpush1.bf16.msra.mxu0 %v1782
  %1891 = vmatprep.subr.bf16.mxu0 %v1779
  %1892 = vmatpush1.bf16.msra.mxu0 %v1778
  %1893 = vmatprep.subr.bf16.mxu0 %v1775
  %1894 = vmatpush1.bf16.msra.mxu0 %v1774
  %1895 = vmatprep.subr.bf16.mxu0 %v1771
  %1896 = vmatpush1.bf16.msra.mxu0 %v1770
  %1897 = vmatprep.subr.bf16.mxu0 %v1767
  %1898 = vmatpush1.bf16.msra.mxu0 %v1766
  %1899 = vmatprep.subr.bf16.mxu0 %v1763
  %1900 = vmatpush1.bf16.msra.mxu0 %v1762
  %1901 = vmatprep.subr.bf16.mxu0 %v1759
  %1902 = vmatpush1.bf16.msra.mxu0 %v1758
  %1903 = vmatprep.subr.bf16.mxu0 %v1755
  %1904 = vmatpush1.bf16.msra.mxu0 %v1754
  %1905 = vmatprep.subr.bf16.mxu0 0
  %1906 = vmatpush2.bf16.msra.mxu0 0
  %1907 = vmatprep.subr.bf16.mxu0 0
  %1908 = vmatpush2.bf16.msra.mxu0 0
  %1909 = vmatprep.subr.bf16.mxu0 0
  %1910 = vmatpush2.bf16.msra.mxu0 0
  %1911 = vmatprep.subr.bf16.mxu0 0
  %1912 = vmatpush2.bf16.msra.mxu0 0
  %1913 = vmatprep.subr.bf16.mxu0 0
  %1914 = vmatpush2.bf16.msra.mxu0 0
  %1915 = vmatprep.subr.bf16.mxu0 0
  %1916 = vmatpush2.bf16.msra.mxu0 0
  %1917 = vmatprep.subr.bf16.mxu0 0
  %1918 = vmatpush2.bf16.msra.mxu0 0
  %1919 = vmatprep.subr.bf16.mxu0 0
  %1920 = vmatpush2.bf16.msra.mxu0 0
  %1921 = vmatprep.mubr.bf16.mxu0 0
  %1922 = vmatmul.mubr.bf16.gmra.mxu0 %v1648
  %v1923 = vpop.f32.mrf.mxu0
  %v1924 = vadd.f32 %v1623, %v1923
  %v1925 = vpop.f32.mrf.mxu0
  %v1926 = vadd.f32 %v1627, %v1925
  %v1927 = vpop.f32.mrf.mxu0
  %v1928 = vadd.f32 %v1623, %v1927
  %v1929 = vpop.f32.mrf.mxu0
  %v1930 = vadd.f32 %v1627, %v1929
  %1931 = vmatprep.mubr.bf16.mxu0 0
  %1932 = vmatmul.mubr.bf16.gmra.mxu0 %v1649
  %v1933 = vpop.f32.mrf.mxu0
  %v1934 = vadd.f32 %v1623, %v1933
  %v1935 = vpop.f32.mrf.mxu0
  %v1936 = vadd.f32 %v1627, %v1935
  %v1937 = vpop.f32.mrf.mxu0
  %v1938 = vadd.f32 %v1623, %v1937
  %v1939 = vpop.f32.mrf.mxu0
  %v1940 = vadd.f32 %v1627, %v1939
  %1941 = vmatprep.mubr.bf16.mxu0 0
  %1942 = vmatmul.mubr.bf16.gmra.mxu0 %v1650
  %v1943 = vpop.f32.mrf.mxu0
  %v1944 = vadd.f32 %v1623, %v1943
  %v1945 = vpop.f32.mrf.mxu0
  %v1946 = vadd.f32 %v1627, %v1945
  %v1947 = vpop.f32.mrf.mxu0
  %v1948 = vadd.f32 %v1623, %v1947
  %v1949 = vpop.f32.mrf.mxu0
  %v1950 = vadd.f32 %v1627, %v1949
  %1951 = vmatprep.mubr.bf16.mxu0 0
  %1952 = vmatmul.mubr.bf16.gmra.mxu0 %v1651
  %v1953 = vpop.f32.mrf.mxu0
  %v1954 = vadd.f32 %v1623, %v1953
  %v1955 = vpop.f32.mrf.mxu0
  %v1956 = vadd.f32 %v1627, %v1955
  %v1957 = vpop.f32.mrf.mxu0
  %v1958 = vadd.f32 %v1623, %v1957
  %v1959 = vpop.f32.mrf.mxu0
  %v1960 = vadd.f32 %v1627, %v1959
  %1961 = vdwg.mxu0
  %v1962 = vpack.c.bf16 %v1855, %v1851
  %v1963 = vpack.c.bf16 %v1857, %v1853
  %v1964 = vpack.c.bf16 %v1928, %v1924
  %v1965 = vpack.c.bf16 %v1930, %v1926
  %v1966 = vpack.c.bf16 %v1865, %v1861
  %v1967 = vpack.c.bf16 %v1867, %v1863
  %v1968 = vpack.c.bf16 %v1938, %v1934
  %v1969 = vpack.c.bf16 %v1940, %v1936
  %v1970 = vpack.c.bf16 %v1875, %v1871
  %v1971 = vpack.c.bf16 %v1877, %v1873
  %v1972 = vpack.c.bf16 %v1948, %v1944
  %v1973 = vpack.c.bf16 %v1950, %v1946
  %v1974 = vpack.c.bf16 %v1885, %v1881
  %v1975 = vpack.c.bf16 %v1887, %v1883
  %v1976 = vpack.c.bf16 %v1958, %v1954
  %v1977 = vpack.c.bf16 %v1960, %v1956
  %v1994 = vunpack.c.l.b16 %v1962
  %v1995 = vunpack.c.l.b16 %v1963
  %v1996 = vunpack.c.l.b16 %v1964
  %v1997 = vunpack.c.l.b16 %v1965
  %v1998 = vunpack.c.h.b16 %v1962
  %v1999 = vunpack.c.h.b16 %v1963
  %v2000 = vunpack.c.h.b16 %v1964
  %v2001 = vunpack.c.h.b16 %v1965
  %v2002 = vunpack.c.l.b16 %v1966
  %v2003 = vunpack.c.l.b16 %v1967
  %v2004 = vunpack.c.l.b16 %v1968
  %v2005 = vunpack.c.l.b16 %v1969
  %v2006 = vunpack.c.h.b16 %v1966
  %v2007 = vunpack.c.h.b16 %v1967
  %v2008 = vunpack.c.h.b16 %v1968
  %v2009 = vunpack.c.h.b16 %v1969
  %v2010 = vunpack.c.l.b16 %v1970
  %v2011 = vunpack.c.l.b16 %v1971
  %v2012 = vunpack.c.l.b16 %v1972
  %v2013 = vunpack.c.l.b16 %v1973
  %v2014 = vunpack.c.h.b16 %v1970
  %v2015 = vunpack.c.h.b16 %v1971
  %v2016 = vunpack.c.h.b16 %v1972
  %v2017 = vunpack.c.h.b16 %v1973
  %v2018 = vunpack.c.l.b16 %v1974
  %v2019 = vunpack.c.l.b16 %v1975
  %v2020 = vunpack.c.l.b16 %v1976
  %v2021 = vunpack.c.l.b16 %v1977
  %v2022 = vunpack.c.h.b16 %v1974
  %v2023 = vunpack.c.h.b16 %v1975
  %v2024 = vunpack.c.h.b16 %v1976
  %v2025 = vunpack.c.h.b16 %v1977
  %v2026 = vpack.c.b16 %v1995, %v1994
  %v2027 = vpack.c.b16 %v1997, %v1996
  %v2028 = vpack.c.b16 %v1999, %v1998
  %v2029 = vpack.c.b16 %v2001, %v2000
  %v2030 = vpack.c.b16 %v2003, %v2002
  %v2031 = vpack.c.b16 %v2005, %v2004
  %v2032 = vpack.c.b16 %v2007, %v2006
  %v2033 = vpack.c.b16 %v2009, %v2008
  %v2034 = vpack.c.b16 %v2011, %v2010
  %v2035 = vpack.c.b16 %v2013, %v2012
  %v2036 = vpack.c.b16 %v2015, %v2014
  %v2037 = vpack.c.b16 %v2017, %v2016
  %v2038 = vpack.c.b16 %v2019, %v2018
  %v2039 = vpack.c.b16 %v2021, %v2020
  %v2040 = vpack.c.b16 %v2023, %v2022
  %v2041 = vpack.c.b16 %v2025, %v2024
  %2058 = vst [vmem:[#allocation2] sm:$0xff] %v2026
  %2059 = vst [vmem:[#allocation2 + $0x8] sm:$0xff] %v2027
  %2060 = vst [vmem:[#allocation2 + $0x10] sm:$0xff] %v2028
  %2061 = vst [vmem:[#allocation2 + $0x18] sm:$0xff] %v2029
  %2062 = vst [vmem:[#allocation2 + $0x20] sm:$0xff] %v2030
  %2063 = vst [vmem:[#allocation2 + $0x28] sm:$0xff] %v2031
  %2064 = vst [vmem:[#allocation2 + $0x30] sm:$0xff] %v2032
  %2065 = vst [vmem:[#allocation2 + $0x38] sm:$0xff] %v2033
  %2066 = vst [vmem:[#allocation2 + $0x40] sm:$0xff] %v2034
  %2067 = vst [vmem:[#allocation2 + $0x48] sm:$0xff] %v2035
  %2068 = vst [vmem:[#allocation2 + $0x50] sm:$0xff] %v2036
  %2069 = vst [vmem:[#allocation2 + $0x58] sm:$0xff] %v2037
  %2070 = vst [vmem:[#allocation2 + $0x60] sm:$0xff] %v2038
  %2071 = vst [vmem:[#allocation2 + $0x68] sm:$0xff] %v2039
  %2072 = vst [vmem:[#allocation2 + $0x70] sm:$0xff] %v2040
  %2073 = vst [vmem:[#allocation2 + $0x78] sm:$0xff] %v2041
  %v2074 = vld [vmem:[#allocation2] sm:$0xff]
  %v2075 = vld [vmem:[#allocation2 + $0x8] sm:$0xff]
  %v2076 = vunpack.c.l.bf16 %v2074
  %v2077 = vunpack.c.h.bf16 %v2074
  %v2078 = vunpack.c.l.bf16 %v2075
  %v2079 = vunpack.c.h.bf16 %v2075
  %v2112 = vunpack.c.l.b16 %v1570
  %v2113 = vunpack.c.h.b16 %v1570
  %v2114 = vunpack.c.l.b16 %v1571
  %v2115 = vunpack.c.h.b16 %v1571
  %v2116 = vunpack.c.l.b16 %v1572
  %v2117 = vunpack.c.h.b16 %v1572
  %v2118 = vunpack.c.l.b16 %v1573
  %v2119 = vunpack.c.h.b16 %v1573
  %v2120 = vunpack.c.l.b16 %v1574
  %v2121 = vunpack.c.h.b16 %v1574
  %v2122 = vunpack.c.l.b16 %v1575
  %v2123 = vunpack.c.h.b16 %v1575
  %v2124 = vunpack.c.l.b16 %v1576
  %v2125 = vunpack.c.h.b16 %v1576
  %v2126 = vunpack.c.l.b16 %v1577
  %v2127 = vunpack.c.h.b16 %v1577
  %v2128 = vunpack.c.l.b16 %v1578
  %v2129 = vunpack.c.h.b16 %v1578
  %v2130 = vunpack.c.l.b16 %v1579
  %v2131 = vunpack.c.h.b16 %v1579
  %v2132 = vunpack.c.l.b16 %v1580
  %v2133 = vunpack.c.h.b16 %v1580
  %v2134 = vunpack.c.l.b16 %v1581
  %v2135 = vunpack.c.h.b16 %v1581
  %v2136 = vunpack.c.l.b16 %v1582
  %v2137 = vunpack.c.h.b16 %v1582
  %v2138 = vunpack.c.l.b16 %v1583
  %v2139 = vunpack.c.h.b16 %v1583
  %v2140 = vunpack.c.l.b16 %v1584
  %v2141 = vunpack.c.h.b16 %v1584
  %v2142 = vunpack.c.l.b16 %v1585
  %v2143 = vunpack.c.h.b16 %v1585
  %v2144 = vunpack.c.l.b16 %v1586
  %v2145 = vunpack.c.h.b16 %v1586
  %v2146 = vunpack.c.l.b16 %v1587
  %v2147 = vunpack.c.h.b16 %v1587
  %v2148 = vunpack.c.l.b16 %v1588
  %v2149 = vunpack.c.h.b16 %v1588
  %v2150 = vunpack.c.l.b16 %v1589
  %v2151 = vunpack.c.h.b16 %v1589
  %v2152 = vunpack.c.l.b16 %v1590
  %v2153 = vunpack.c.h.b16 %v1590
  %v2154 = vunpack.c.l.b16 %v1591
  %v2155 = vunpack.c.h.b16 %v1591
  %v2156 = vunpack.c.l.b16 %v1592
  %v2157 = vunpack.c.h.b16 %v1592
  %v2158 = vunpack.c.l.b16 %v1593
  %v2159 = vunpack.c.h.b16 %v1593
  %v2160 = vunpack.c.l.b16 %v1594
  %v2161 = vunpack.c.h.b16 %v1594
  %v2162 = vunpack.c.l.b16 %v1595
  %v2163 = vunpack.c.h.b16 %v1595
  %v2164 = vunpack.c.l.b16 %v1596
  %v2165 = vunpack.c.h.b16 %v1596
  %v2166 = vunpack.c.l.b16 %v1597
  %v2167 = vunpack.c.h.b16 %v1597
  %v2168 = vunpack.c.l.b16 %v1598
  %v2169 = vunpack.c.h.b16 %v1598
  %v2170 = vunpack.c.l.b16 %v1599
  %v2171 = vunpack.c.h.b16 %v1599
  %v2172 = vunpack.c.l.b16 %v1600
  %v2173 = vunpack.c.h.b16 %v1600
  %v2174 = vunpack.c.l.b16 %v1601
  %v2175 = vunpack.c.h.b16 %v1601
  %v2176 = vpack.c.b16 %v2116, %v2112
  %v2177 = vpack.c.b16 %v2117, %v2113
  %v2178 = vpack.c.b16 %v2118, %v2114
  %v2179 = vpack.c.b16 %v2119, %v2115
  %v2180 = vpack.c.b16 %v2124, %v2120
  %v2181 = vpack.c.b16 %v2125, %v2121
  %v2182 = vpack.c.b16 %v2126, %v2122
  %v2183 = vpack.c.b16 %v2127, %v2123
  %v2184 = vpack.c.b16 %v2132, %v2128
  %v2185 = vpack.c.b16 %v2133, %v2129
  %v2186 = vpack.c.b16 %v2134, %v2130
  %v2187 = vpack.c.b16 %v2135, %v2131
  %v2188 = vpack.c.b16 %v2140, %v2136
  %v2189 = vpack.c.b16 %v2141, %v2137
  %v2190 = vpack.c.b16 %v2142, %v2138
  %v2191 = vpack.c.b16 %v2143, %v2139
  %v2192 = vpack.c.b16 %v2148, %v2144
  %v2193 = vpack.c.b16 %v2149, %v2145
  %v2194 = vpack.c.b16 %v2150, %v2146
  %v2195 = vpack.c.b16 %v2151, %v2147
  %v2196 = vpack.c.b16 %v2156, %v2152
  %v2197 = vpack.c.b16 %v2157, %v2153
  %v2198 = vpack.c.b16 %v2158, %v2154
  %v2199 = vpack.c.b16 %v2159, %v2155
  %v2200 = vpack.c.b16 %v2164, %v2160
  %v2201 = vpack.c.b16 %v2165, %v2161
  %v2202 = vpack.c.b16 %v2166, %v2162
  %v2203 = vpack.c.b16 %v2167, %v2163
  %v2204 = vpack.c.b16 %v2172, %v2168
  %v2205 = vpack.c.b16 %v2173, %v2169
  %v2206 = vpack.c.b16 %v2174, %v2170
  %v2207 = vpack.c.b16 %v2175, %v2171
  %2240 = vmatprep.subr.bf16.mxu0 %v2205
  %2241 = vmatpush1.bf16.msra.mxu0 %v2204
  %2242 = vmatprep.subr.bf16.mxu0 %v2201
  %2243 = vmatpush1.bf16.msra.mxu0 %v2200
  %2244 = vmatprep.subr.bf16.mxu0 %v2197
  %2245 = vmatpush1.bf16.msra.mxu0 %v2196
  %2246 = vmatprep.subr.bf16.mxu0 %v2193
  %2247 = vmatpush1.bf16.msra.mxu0 %v2192
  %2248 = vmatprep.subr.bf16.mxu0 %v2189
  %2249 = vmatpush1.bf16.msra.mxu0 %v2188
  %2250 = vmatprep.subr.bf16.mxu0 %v2185
  %2251 = vmatpush1.bf16.msra.mxu0 %v2184
  %2252 = vmatprep.subr.bf16.mxu0 %v2181
  %2253 = vmatpush1.bf16.msra.mxu0 %v2180
  %2254 = vmatprep.subr.bf16.mxu0 %v2177
  %2255 = vmatpush1.bf16.msra.mxu0 %v2176
  %2256 = vmatprep.subr.bf16.mxu0 0
  %2257 = vmatpush2.bf16.msra.mxu0 0
  %2258 = vmatprep.subr.bf16.mxu0 0
  %2259 = vmatpush2.bf16.msra.mxu0 0
  %2260 = vmatprep.subr.bf16.mxu0 0
  %2261 = vmatpush2.bf16.msra.mxu0 0
  %2262 = vmatprep.subr.bf16.mxu0 0
  %2263 = vmatpush2.bf16.msra.mxu0 0
  %2264 = vmatprep.subr.bf16.mxu0 0
  %2265 = vmatpush2.bf16.msra.mxu0 0
  %2266 = vmatprep.subr.bf16.mxu0 0
  %2267 = vmatpush2.bf16.msra.mxu0 0
  %2268 = vmatprep.subr.bf16.mxu0 0
  %2269 = vmatpush2.bf16.msra.mxu0 0
  %2270 = vmatprep.subr.bf16.mxu0 0
  %2271 = vmatpush2.bf16.msra.mxu0 0
  %2272 = vmatprep.mubr.bf16.mxu0 0
  %2273 = vmatmul.mubr.bf16.gmra.mxu0 0
  %v2274 = vpop.f32.mrf.mxu0
  %v2275 = vadd.f32 0.0, %v2274
  %v2276 = vpop.f32.mrf.mxu0
  %v2277 = vadd.f32 0.0, %v2276
  %v2278 = vpop.f32.mrf.mxu0
  %v2279 = vpop.f32.mrf.mxu0
  %2280 = vdwg.mxu0
  %2281 = vmatprep.subr.bf16.mxu0 %v2207
  %2282 = vmatpush1.bf16.msra.mxu0 %v2206
  %2283 = vmatprep.subr.bf16.mxu0 %v2203
  %2284 = vmatpush1.bf16.msra.mxu0 %v2202
  %2285 = vmatprep.subr.bf16.mxu0 %v2199
  %2286 = vmatpush1.bf16.msra.mxu0 %v2198
  %2287 = vmatprep.subr.bf16.mxu0 %v2195
  %2288 = vmatpush1.bf16.msra.mxu0 %v2194
  %2289 = vmatprep.subr.bf16.mxu0 %v2191
  %2290 = vmatpush1.bf16.msra.mxu0 %v2190
  %2291 = vmatprep.subr.bf16.mxu0 %v2187
  %2292 = vmatpush1.bf16.msra.mxu0 %v2186
  %2293 = vmatprep.subr.bf16.mxu0 %v2183
  %2294 = vmatpush1.bf16.msra.mxu0 %v2182
  %2295 = vmatprep.subr.bf16.mxu0 %v2179
  %2296 = vmatpush1.bf16.msra.mxu0 %v2178
  %2297 = vmatprep.subr.bf16.mxu0 0
  %2298 = vmatpush2.bf16.msra.mxu0 0
  %2299 = vmatprep.subr.bf16.mxu0 0
  %2300 = vmatpush2.bf16.msra.mxu0 0
  %2301 = vmatprep.subr.bf16.mxu0 0
  %2302 = vmatpush2.bf16.msra.mxu0 0
  %2303 = vmatprep.subr.bf16.mxu0 0
  %2304 = vmatpush2.bf16.msra.mxu0 0
  %2305 = vmatprep.subr.bf16.mxu0 0
  %2306 = vmatpush2.bf16.msra.mxu0 0
  %2307 = vmatprep.subr.bf16.mxu0 0
  %2308 = vmatpush2.bf16.msra.mxu0 0
  %2309 = vmatprep.subr.bf16.mxu0 0
  %2310 = vmatpush2.bf16.msra.mxu0 0
  %2311 = vmatprep.subr.bf16.mxu0 0
  %2312 = vmatpush2.bf16.msra.mxu0 0
  %2313 = vmatprep.mubr.bf16.mxu0 0
  %2314 = vmatmul.mubr.bf16.gmra.mxu0 0
  %v2315 = vpop.f32.mrf.mxu0
  %v2316 = vadd.f32 0.0, %v2315
  %v2317 = vpop.f32.mrf.mxu0
  %v2318 = vadd.f32 0.0, %v2317
  %v2319 = vpop.f32.mrf.mxu0
  %v2320 = vpop.f32.mrf.mxu0
  %2321 = vdwg.mxu0
  %v2322 = vadd.f32 %v2076, %v2275
  %v2323 = vadd.f32 %v2077, %v2277
  %v2324 = vadd.f32 %v2078, %v2316
  %v2325 = vadd.f32 %v2079, %v2318
  %v2326 = vxor.u32 %v2322, 2147483648
  %v2327 = vxor.u32 %v2323, 2147483648
  %v2328 = vxor.u32 %v2324, 2147483648
  %v2329 = vmul.f32 %v2326, 1.442695
  %v2330 = vpow.pop %v2329
  %v2331 = vmul.f32 %v2327, 1.442695
  %v2332 = vpow.pop %v2331
  %v2333 = vmul.f32 %v2328, 1.442695
  %v2334 = vpow.pop %v2333
  %v2335 = vadd.f32 %v2330, 1.0
  %v2336 = vadd.f32 %v2332, 1.0
  %v2337 = vadd.f32 %v2334, 1.0
  %v2338 = vrcp.pop %v2335
  %v2339 = vmul.f32 1.0, %v2338
  %v2340 = vrcp.pop %v2336
  %v2341 = vmul.f32 1.0, %v2340
  %v2342 = vrcp.pop %v2337
  %v2343 = vmul.f32 1.0, %v2342
  %v2344 = vtanh.pop %v2325
  %v2345 = vmul.f32 %v2341, 0.0
  %v2346 = vmul.f32 %v2339, %v2344
  %v2347 = vadd.f32 %v2345, %v2346
  %v2348 = vtanh.pop %v2347
  %v2349 = vmul.f32 %v2343, %v2348
  %v2350 = vld [vmem:[#allocation2 + $0x10] sm:$0xff]
  %v2351 = vld [vmem:[#allocation2 + $0x18] sm:$0xff]
  %v2352 = vunpack.c.l.bf16 %v2350
  %v2353 = vunpack.c.h.bf16 %v2350
  %v2354 = vunpack.c.l.bf16 %v2351
  %v2355 = vunpack.c.h.bf16 %v2351
  %v2356 = vpack.c.bf16 %v2349, %v2349
  %2357 = vmatprep.subr.bf16.mxu0 %v2205
  %2358 = vmatpush1.bf16.msra.mxu0 %v2204
  %2359 = vmatprep.subr.bf16.mxu0 %v2201
  %2360 = vmatpush1.bf16.msra.mxu0 %v2200
  %2361 = vmatprep.subr.bf16.mxu0 %v2197
  %2362 = vmatpush1.bf16.msra.mxu0 %v2196
  %2363 = vmatprep.subr.bf16.mxu0 %v2193
  %2364 = vmatpush1.bf16.msra.mxu0 %v2192
  %2365 = vmatprep.subr.bf16.mxu0 %v2189
  %2366 = vmatpush1.bf16.msra.mxu0 %v2188
  %2367 = vmatprep.subr.bf16.mxu0 %v2185
  %2368 = vmatpush1.bf16.msra.mxu0 %v2184
  %2369 = vmatprep.subr.bf16.mxu0 %v2181
  %2370 = vmatpush1.bf16.msra.mxu0 %v2180
  %2371 = vmatprep.subr.bf16.mxu0 %v2177
  %2372 = vmatpush1.bf16.msra.mxu0 %v2176
  %2373 = vmatprep.subr.bf16.mxu0 0
  %2374 = vmatpush2.bf16.msra.mxu0 0
  %2375 = vmatprep.subr.bf16.mxu0 0
  %2376 = vmatpush2.bf16.msra.mxu0 0
  %2377 = vmatprep.subr.bf16.mxu0 0
  %2378 = vmatpush2.bf16.msra.mxu0 0
  %2379 = vmatprep.subr.bf16.mxu0 0
  %2380 = vmatpush2.bf16.msra.mxu0 0
  %2381 = vmatprep.subr.bf16.mxu0 0
  %2382 = vmatpush2.bf16.msra.mxu0 0
  %2383 = vmatprep.subr.bf16.mxu0 0
  %2384 = vmatpush2.bf16.msra.mxu0 0
  %2385 = vmatprep.subr.bf16.mxu0 0
  %2386 = vmatpush2.bf16.msra.mxu0 0
  %2387 = vmatprep.subr.bf16.mxu0 0
  %2388 = vmatpush2.bf16.msra.mxu0 0
  %2389 = vmatprep.mubr.bf16.mxu0 0
  %2390 = vmatmul.mubr.bf16.gmra.mxu0 %v2356
  %v2391 = vpop.f32.mrf.mxu0
  %v2392 = vadd.f32 0.0, %v2391
  %v2393 = vpop.f32.mrf.mxu0
  %v2394 = vadd.f32 0.0, %v2393
  %v2395 = vpop.f32.mrf.mxu0
  %v2396 = vpop.f32.mrf.mxu0
  %2397 = vdwg.mxu0
  %2398 = vmatprep.subr.bf16.mxu0 %v2207
  %2399 = vmatpush1.bf16.msra.mxu0 %v2206
  %2400 = vmatprep.subr.bf16.mxu0 %v2203
  %2401 = vmatpush1.bf16.msra.mxu0 %v2202
  %2402 = vmatprep.subr.bf16.mxu0 %v2199
  %2403 = vmatpush1.bf16.msra.mxu0 %v2198
  %2404 = vmatprep.subr.bf16.mxu0 %v2195
  %2405 = vmatpush1.bf16.msra.mxu0 %v2194
  %2406 = vmatprep.subr.bf16.mxu0 %v2191
  %2407 = vmatpush1.bf16.msra.mxu0 %v2190
  %2408 = vmatprep.subr.bf16.mxu0 %v2187
  %2409 = vmatpush1.bf16.msra.mxu0 %v2186
  %2410 = vmatprep.subr.bf16.mxu0 %v2183
  %2411 = vmatpush1.bf16.msra.mxu0 %v2182
  %2412 = vmatprep.subr.bf16.mxu0 %v2179
  %2413 = vmatpush1.bf16.msra.mxu0 %v2178
  %2414 = vmatprep.subr.bf16.mxu0 0
  %2415 = vmatpush2.bf16.msra.mxu0 0
  %2416 = vmatprep.subr.bf16.mxu0 0
  %2417 = vmatpush2.bf16.msra.mxu0 0
  %2418 = vmatprep.subr.bf16.mxu0 0
  %2419 = vmatpush2.bf16.msra.mxu0 0
  %2420 = vmatprep.subr.bf16.mxu0 0
  %2421 = vmatpush2.bf16.msra.mxu0 0
  %2422 = vmatprep.subr.bf16.mxu0 0
  %2423 = vmatpush2.bf16.msra.mxu0 0
  %2424 = vmatprep.subr.bf16.mxu0 0
  %2425 = vmatpush2.bf16.msra.mxu0 0
  %2426 = vmatprep.subr.bf16.mxu0 0
  %2427 = vmatpush2.bf16.msra.mxu0 0
  %2428 = vmatprep.subr.bf16.mxu0 0
  %2429 = vmatpush2.bf16.msra.mxu0 0
  %2430 = vmatprep.mubr.bf16.mxu0 0
  %2431 = vmatmul.mubr.bf16.gmra.mxu0 %v2356
  %v2432 = vpop.f32.mrf.mxu0
  %v2433 = vadd.f32 0.0, %v2432
  %v2434 = vpop.f32.mrf.mxu0
  %v2435 = vadd.f32 0.0, %v2434
  %v2436 = vpop.f32.mrf.mxu0
  %v2437 = vpop.f32.mrf.mxu0
  %2438 = vdwg.mxu0
  %v2439 = vadd.f32 %v2352, %v2392
  %v2440 = vadd.f32 %v2353, %v2394
  %v2441 = vadd.f32 %v2354, %v2433
  %v2442 = vadd.f32 %v2355, %v2435
  %v2443 = vxor.u32 %v2439, 2147483648
  %v2444 = vxor.u32 %v2440, 2147483648
  %v2445 = vxor.u32 %v2441, 2147483648
  %v2446 = vmul.f32 %v2443, 1.442695
  %v2447 = vpow.pop %v2446
  %v2448 = vmul.f32 %v2444, 1.442695
  %v2449 = vpow.pop %v2448
  %v2450 = vmul.f32 %v2445, 1.442695
  %v2451 = vpow.pop %v2450
  %v2452 = vadd.f32 %v2447, 1.0
  %v2453 = vadd.f32 %v2449, 1.0
  %v2454 = vadd.f32 %v2451, 1.0
  %v2455 = vrcp.pop %v2452
  %v2456 = vmul.f32 1.0, %v2455
  %v2457 = vrcp.pop %v2453
  %v2458 = vmul.f32 1.0, %v2457
  %v2459 = vrcp.pop %v2454
  %v2460 = vmul.f32 1.0, %v2459
  %v2461 = vtanh.pop %v2442
  %v2462 = vmul.f32 %v2458, %v2347
  %v2463 = vmul.f32 %v2456, %v2461
  %v2464 = vadd.f32 %v2462, %v2463
  %v2465 = vtanh.pop %v2464
  %v2466 = vmul.f32 %v2460, %v2465
  %v2467 = vld [vmem:[#allocation2 + $0x20] sm:$0xff]
  %v2468 = vld [vmem:[#allocation2 + $0x28] sm:$0xff]
  %v2469 = vunpack.c.l.bf16 %v2467
  %v2470 = vunpack.c.h.bf16 %v2467
  %v2471 = vunpack.c.l.bf16 %v2468
  %v2472 = vunpack.c.h.bf16 %v2468
  %v2473 = vpack.c.bf16 %v2466, %v2466
  %2474 = vmatprep.subr.bf16.mxu0 %v2205
  %2475 = vmatpush1.bf16.msra.mxu0 %v2204
  %2476 = vmatprep.subr.bf16.mxu0 %v2201
  %2477 = vmatpush1.bf16.msra.mxu0 %v2200
  %2478 = vmatprep.subr.bf16.mxu0 %v2197
  %2479 = vmatpush1.bf16.msra.mxu0 %v2196
  %2480 = vmatprep.subr.bf16.mxu0 %v2193
  %2481 = vmatpush1.bf16.msra.mxu0 %v2192
  %2482 = vmatprep.subr.bf16.mxu0 %v2189
  %2483 = vmatpush1.bf16.msra.mxu0 %v2188
  %2484 = vmatprep.subr.bf16.mxu0 %v2185
  %2485 = vmatpush1.bf16.msra.mxu0 %v2184
  %2486 = vmatprep.subr.bf16.mxu0 %v2181
  %2487 = vmatpush1.bf16.msra.mxu0 %v2180
  %2488 = vmatprep.subr.bf16.mxu0 %v2177
  %2489 = vmatpush1.bf16.msra.mxu0 %v2176
  %2490 = vmatprep.subr.bf16.mxu0 0
  %2491 = vmatpush2.bf16.msra.mxu0 0
  %2492 = vmatprep.subr.bf16.mxu0 0
  %2493 = vmatpush2.bf16.msra.mxu0 0
  %2494 = vmatprep.subr.bf16.mxu0 0
  %2495 = vmatpush2.bf16.msra.mxu0 0
  %2496 = vmatprep.subr.bf16.mxu0 0
  %2497 = vmatpush2.bf16.msra.mxu0 0
  %2498 = vmatprep.subr.bf16.mxu0 0
  %2499 = vmatpush2.bf16.msra.mxu0 0
  %2500 = vmatprep.subr.bf16.mxu0 0
  %2501 = vmatpush2.bf16.msra.mxu0 0
  %2502 = vmatprep.subr.bf16.mxu0 0
  %2503 = vmatpush2.bf16.msra.mxu0 0
  %2504 = vmatprep.subr.bf16.mxu0 0
  %2505 = vmatpush2.bf16.msra.mxu0 0
  %2506 = vmatprep.mubr.bf16.mxu0 0
  %2507 = vmatmul.mubr.bf16.gmra.mxu0 %v2473
  %v2508 = vpop.f32.mrf.mxu0
  %v2509 = vadd.f32 0.0, %v2508
  %v2510 = vpop.f32.mrf.mxu0
  %v2511 = vadd.f32 0.0, %v2510
  %v2512 = vpop.f32.mrf.mxu0
  %v2513 = vpop.f32.mrf.mxu0
  %2514 = vdwg.mxu0
  %2515 = vmatprep.subr.bf16.mxu0 %v2207
  %2516 = vmatpush1.bf16.msra.mxu0 %v2206
  %2517 = vmatprep.subr.bf16.mxu0 %v2203
  %2518 = vmatpush1.bf16.msra.mxu0 %v2202
  %2519 = vmatprep.subr.bf16.mxu0 %v2199
  %2520 = vmatpush1.bf16.msra.mxu0 %v2198
  %2521 = vmatprep.subr.bf16.mxu0 %v2195
  %2522 = vmatpush1.bf16.msra.mxu0 %v2194
  %2523 = vmatprep.subr.bf16.mxu0 %v2191
  %2524 = vmatpush1.bf16.msra.mxu0 %v2190
  %2525 = vmatprep.subr.bf16.mxu0 %v2187
  %2526 = vmatpush1.bf16.msra.mxu0 %v2186
  %2527 = vmatprep.subr.bf16.mxu0 %v2183
  %2528 = vmatpush1.bf16.msra.mxu0 %v2182
  %2529 = vmatprep.subr.bf16.mxu0 %v2179
  %2530 = vmatpush1.bf16.msra.mxu0 %v2178
  %2531 = vmatprep.subr.bf16.mxu0 0
  %2532 = vmatpush2.bf16.msra.mxu0 0
  %2533 = vmatprep.subr.bf16.mxu0 0
  %2534 = vmatpush2.bf16.msra.mxu0 0
  %2535 = vmatprep.subr.bf16.mxu0 0
  %2536 = vmatpush2.bf16.msra.mxu0 0
  %2537 = vmatprep.subr.bf16.mxu0 0
  %2538 = vmatpush2.bf16.msra.mxu0 0
  %2539 = vmatprep.subr.bf16.mxu0 0
  %2540 = vmatpush2.bf16.msra.mxu0 0
  %2541 = vmatprep.subr.bf16.mxu0 0
  %2542 = vmatpush2.bf16.msra.mxu0 0
  %2543 = vmatprep.subr.bf16.mxu0 0
  %2544 = vmatpush2.bf16.msra.mxu0 0
  %2545 = vmatprep.subr.bf16.mxu0 0
  %2546 = vmatpush2.bf16.msra.mxu0 0
  %2547 = vmatprep.mubr.bf16.mxu0 0
  %2548 = vmatmul.mubr.bf16.gmra.mxu0 %v2473
  %v2549 = vpop.f32.mrf.mxu0
  %v2550 = vadd.f32 0.0, %v2549
  %v2551 = vpop.f32.mrf.mxu0
  %v2552 = vadd.f32 0.0, %v2551
  %v2553 = vpop.f32.mrf.mxu0
  %v2554 = vpop.f32.mrf.mxu0
  %2555 = vdwg.mxu0
  %v2556 = vadd.f32 %v2469, %v2509
  %v2557 = vadd.f32 %v2470, %v2511
  %v2558 = vadd.f32 %v2471, %v2550
  %v2559 = vadd.f32 %v2472, %v2552
  %v2560 = vxor.u32 %v2556, 2147483648
  %v2561 = vxor.u32 %v2557, 2147483648
  %v2562 = vxor.u32 %v2558, 2147483648
  %v2563 = vmul.f32 %v2560, 1.442695
  %v2564 = vpow.pop %v2563
  %v2565 = vmul.f32 %v2561, 1.442695
  %v2566 = vpow.pop %v2565
  %v2567 = vmul.f32 %v2562, 1.442695
  %v2568 = vpow.pop %v2567
  %v2569 = vadd.f32 %v2564, 1.0
  %v2570 = vadd.f32 %v2566, 1.0
  %v2571 = vadd.f32 %v2568, 1.0
  %v2572 = vrcp.pop %v2569
  %v2573 = vmul.f32 1.0, %v2572
  %v2574 = vrcp.pop %v2570
  %v2575 = vmul.f32 1.0, %v2574
  %v2576 = vrcp.pop %v2571
  %v2577 = vmul.f32 1.0, %v2576
  %v2578 = vtanh.pop %v2559
  %v2579 = vmul.f32 %v2575, %v2464
  %v2580 = vmul.f32 %v2573, %v2578
  %v2581 = vadd.f32 %v2579, %v2580
  %v2582 = vtanh.pop %v2581
  %v2583 = vmul.f32 %v2577, %v2582
  %v2584 = vld [vmem:[#allocation2 + $0x30] sm:$0xff]
  %v2585 = vld [vmem:[#allocation2 + $0x38] sm:$0xff]
  %v2586 = vunpack.c.l.bf16 %v2584
  %v2587 = vunpack.c.h.bf16 %v2584
  %v2588 = vunpack.c.l.bf16 %v2585
  %v2589 = vunpack.c.h.bf16 %v2585
  %v2590 = vpack.c.bf16 %v2583, %v2583
  %2591 = vmatprep.subr.bf16.mxu0 %v2205
  %2592 = vmatpush1.bf16.msra.mxu0 %v2204
  %2593 = vmatprep.subr.bf16.mxu0 %v2201
  %2594 = vmatpush1.bf16.msra.mxu0 %v2200
  %2595 = vmatprep.subr.bf16.mxu0 %v2197
  %2596 = vmatpush1.bf16.msra.mxu0 %v2196
  %2597 = vmatprep.subr.bf16.mxu0 %v2193
  %2598 = vmatpush1.bf16.msra.mxu0 %v2192
  %2599 = vmatprep.subr.bf16.mxu0 %v2189
  %2600 = vmatpush1.bf16.msra.mxu0 %v2188
  %2601 = vmatprep.subr.bf16.mxu0 %v2185
  %2602 = vmatpush1.bf16.msra.mxu0 %v2184
  %2603 = vmatprep.subr.bf16.mxu0 %v2181
  %2604 = vmatpush1.bf16.msra.mxu0 %v2180
  %2605 = vmatprep.subr.bf16.mxu0 %v2177
  %2606 = vmatpush1.bf16.msra.mxu0 %v2176
  %2607 = vmatprep.subr.bf16.mxu0 0
  %2608 = vmatpush2.bf16.msra.mxu0 0
  %2609 = vmatprep.subr.bf16.mxu0 0
  %2610 = vmatpush2.bf16.msra.mxu0 0
  %2611 = vmatprep.subr.bf16.mxu0 0
  %2612 = vmatpush2.bf16.msra.mxu0 0
  %2613 = vmatprep.subr.bf16.mxu0 0
  %2614 = vmatpush2.bf16.msra.mxu0 0
  %2615 = vmatprep.subr.bf16.mxu0 0
  %2616 = vmatpush2.bf16.msra.mxu0 0
  %2617 = vmatprep.subr.bf16.mxu0 0
  %2618 = vmatpush2.bf16.msra.mxu0 0
  %2619 = vmatprep.subr.bf16.mxu0 0
  %2620 = vmatpush2.bf16.msra.mxu0 0
  %2621 = vmatprep.subr.bf16.mxu0 0
  %2622 = vmatpush2.bf16.msra.mxu0 0
  %2623 = vmatprep.mubr.bf16.mxu0 0
  %2624 = vmatmul.mubr.bf16.gmra.mxu0 %v2590
  %v2625 = vpop.f32.mrf.mxu0
  %v2626 = vadd.f32 0.0, %v2625
  %v2627 = vpop.f32.mrf.mxu0
  %v2628 = vadd.f32 0.0, %v2627
  %v2629 = vpop.f32.mrf.mxu0
  %v2630 = vpop.f32.mrf.mxu0
  %2631 = vdwg.mxu0
  %2632 = vmatprep.subr.bf16.mxu0 %v2207
  %2633 = vmatpush1.bf16.msra.mxu0 %v2206
  %2634 = vmatprep.subr.bf16.mxu0 %v2203
  %2635 = vmatpush1.bf16.msra.mxu0 %v2202
  %2636 = vmatprep.subr.bf16.mxu0 %v2199
  %2637 = vmatpush1.bf16.msra.mxu0 %v2198
  %2638 = vmatprep.subr.bf16.mxu0 %v2195
  %2639 = vmatpush1.bf16.msra.mxu0 %v2194
  %2640 = vmatprep.subr.bf16.mxu0 %v2191
  %2641 = vmatpush1.bf16.msra.mxu0 %v2190
  %2642 = vmatprep.subr.bf16.mxu0 %v2187
  %2643 = vmatpush1.bf16.msra.mxu0 %v2186
  %2644 = vmatprep.subr.bf16.mxu0 %v2183
  %2645 = vmatpush1.bf16.msra.mxu0 %v2182
  %2646 = vmatprep.subr.bf16.mxu0 %v2179
  %2647 = vmatpush1.bf16.msra.mxu0 %v2178
  %2648 = vmatprep.subr.bf16.mxu0 0
  %2649 = vmatpush2.bf16.msra.mxu0 0
  %2650 = vmatprep.subr.bf16.mxu0 0
  %2651 = vmatpush2.bf16.msra.mxu0 0
  %2652 = vmatprep.subr.bf16.mxu0 0
  %2653 = vmatpush2.bf16.msra.mxu0 0
  %2654 = vmatprep.subr.bf16.mxu0 0
  %2655 = vmatpush2.bf16.msra.mxu0 0
  %2656 = vmatprep.subr.bf16.mxu0 0
  %2657 = vmatpush2.bf16.msra.mxu0 0
  %2658 = vmatprep.subr.bf16.mxu0 0
  %2659 = vmatpush2.bf16.msra.mxu0 0
  %2660 = vmatprep.subr.bf16.mxu0 0
  %2661 = vmatpush2.bf16.msra.mxu0 0
  %2662 = vmatprep.subr.bf16.mxu0 0
  %2663 = vmatpush2.bf16.msra.mxu0 0
  %2664 = vmatprep.mubr.bf16.mxu0 0
  %2665 = vmatmul.mubr.bf16.gmra.mxu0 %v2590
  %v2666 = vpop.f32.mrf.mxu0
  %v2667 = vadd.f32 0.0, %v2666
  %v2668 = vpop.f32.mrf.mxu0
  %v2669 = vadd.f32 0.0, %v2668
  %v2670 = vpop.f32.mrf.mxu0
  %v2671 = vpop.f32.mrf.mxu0
  %2672 = vdwg.mxu0
  %v2673 = vadd.f32 %v2586, %v2626
  %v2674 = vadd.f32 %v2587, %v2628
  %v2675 = vadd.f32 %v2588, %v2667
  %v2676 = vadd.f32 %v2589, %v2669
  %v2677 = vxor.u32 %v2673, 2147483648
  %v2678 = vxor.u32 %v2674, 2147483648
  %v2679 = vxor.u32 %v2675, 2147483648
  %v2680 = vmul.f32 %v2677, 1.442695
  %v2681 = vpow.pop %v2680
  %v2682 = vmul.f32 %v2678, 1.442695
  %v2683 = vpow.pop %v2682
  %v2684 = vmul.f32 %v2679, 1.442695
  %v2685 = vpow.pop %v2684
  %v2686 = vadd.f32 %v2681, 1.0
  %v2687 = vadd.f32 %v2683, 1.0
  %v2688 = vadd.f32 %v2685, 1.0
  %v2689 = vrcp.pop %v2686
  %v2690 = vmul.f32 1.0, %v2689
  %v2691 = vrcp.pop %v2687
  %v2692 = vmul.f32 1.0, %v2691
  %v2693 = vrcp.pop %v2688
  %v2694 = vmul.f32 1.0, %v2693
  %v2695 = vtanh.pop %v2676
  %v2696 = vmul.f32 %v2692, %v2581
  %v2697 = vmul.f32 %v2690, %v2695
  %v2698 = vadd.f32 %v2696, %v2697
  %v2699 = vtanh.pop %v2698
  %v2700 = vmul.f32 %v2694, %v2699
  %v2701 = vld [vmem:[#allocation2 + $0x40] sm:$0xff]
  %v2702 = vld [vmem:[#allocation2 + $0x48] sm:$0xff]
  %v2703 = vunpack.c.l.bf16 %v2701
  %v2704 = vunpack.c.h.bf16 %v2701
  %v2705 = vunpack.c.l.bf16 %v2702
  %v2706 = vunpack.c.h.bf16 %v2702
  %v2707 = vpack.c.bf16 %v2700, %v2700
  %2708 = vmatprep.subr.bf16.mxu0 %v2205
  %2709 = vmatpush1.bf16.msra.mxu0 %v2204
  %2710 = vmatprep.subr.bf16.mxu0 %v2201
  %2711 = vmatpush1.bf16.msra.mxu0 %v2200
  %2712 = vmatprep.subr.bf16.mxu0 %v2197
  %2713 = vmatpush1.bf16.msra.mxu0 %v2196
  %2714 = vmatprep.subr.bf16.mxu0 %v2193
  %2715 = vmatpush1.bf16.msra.mxu0 %v2192
  %2716 = vmatprep.subr.bf16.mxu0 %v2189
  %2717 = vmatpush1.bf16.msra.mxu0 %v2188
  %2718 = vmatprep.subr.bf16.mxu0 %v2185
  %2719 = vmatpush1.bf16.msra.mxu0 %v2184
  %2720 = vmatprep.subr.bf16.mxu0 %v2181
  %2721 = vmatpush1.bf16.msra.mxu0 %v2180
  %2722 = vmatprep.subr.bf16.mxu0 %v2177
  %2723 = vmatpush1.bf16.msra.mxu0 %v2176
  %2724 = vmatprep.subr.bf16.mxu0 0
  %2725 = vmatpush2.bf16.msra.mxu0 0
  %2726 = vmatprep.subr.bf16.mxu0 0
  %2727 = vmatpush2.bf16.msra.mxu0 0
  %2728 = vmatprep.subr.bf16.mxu0 0
  %2729 = vmatpush2.bf16.msra.mxu0 0
  %2730 = vmatprep.subr.bf16.mxu0 0
  %2731 = vmatpush2.bf16.msra.mxu0 0
  %2732 = vmatprep.subr.bf16.mxu0 0
  %2733 = vmatpush2.bf16.msra.mxu0 0
  %2734 = vmatprep.subr.bf16.mxu0 0
  %2735 = vmatpush2.bf16.msra.mxu0 0
  %2736 = vmatprep.subr.bf16.mxu0 0
  %2737 = vmatpush2.bf16.msra.mxu0 0
  %2738 = vmatprep.subr.bf16.mxu0 0
  %2739 = vmatpush2.bf16.msra.mxu0 0
  %2740 = vmatprep.mubr.bf16.mxu0 0
  %2741 = vmatmul.mubr.bf16.gmra.mxu0 %v2707
  %v2742 = vpop.f32.mrf.mxu0
  %v2743 = vadd.f32 0.0, %v2742
  %v2744 = vpop.f32.mrf.mxu0
  %v2745 = vadd.f32 0.0, %v2744
  %v2746 = vpop.f32.mrf.mxu0
  %v2747 = vpop.f32.mrf.mxu0
  %2748 = vdwg.mxu0
  %2749 = vmatprep.subr.bf16.mxu0 %v2207
  %2750 = vmatpush1.bf16.msra.mxu0 %v2206
  %2751 = vmatprep.subr.bf16.mxu0 %v2203
  %2752 = vmatpush1.bf16.msra.mxu0 %v2202
  %2753 = vmatprep.subr.bf16.mxu0 %v2199
  %2754 = vmatpush1.bf16.msra.mxu0 %v2198
  %2755 = vmatprep.subr.bf16.mxu0 %v2195
  %2756 = vmatpush1.bf16.msra.mxu0 %v2194
  %2757 = vmatprep.subr.bf16.mxu0 %v2191
  %2758 = vmatpush1.bf16.msra.mxu0 %v2190
  %2759 = vmatprep.subr.bf16.mxu0 %v2187
  %2760 = vmatpush1.bf16.msra.mxu0 %v2186
  %2761 = vmatprep.subr.bf16.mxu0 %v2183
  %2762 = vmatpush1.bf16.msra.mxu0 %v2182
  %2763 = vmatprep.subr.bf16.mxu0 %v2179
  %2764 = vmatpush1.bf16.msra.mxu0 %v2178
  %2765 = vmatprep.subr.bf16.mxu0 0
  %2766 = vmatpush2.bf16.msra.mxu0 0
  %2767 = vmatprep.subr.bf16.mxu0 0
  %2768 = vmatpush2.bf16.msra.mxu0 0
  %2769 = vmatprep.subr.bf16.mxu0 0
  %2770 = vmatpush2.bf16.msra.mxu0 0
  %2771 = vmatprep.subr.bf16.mxu0 0
  %2772 = vmatpush2.bf16.msra.mxu0 0
  %2773 = vmatprep.subr.bf16.mxu0 0
  %2774 = vmatpush2.bf16.msra.mxu0 0
  %2775 = vmatprep.subr.bf16.mxu0 0
  %2776 = vmatpush2.bf16.msra.mxu0 0
  %2777 = vmatprep.subr.bf16.mxu0 0
  %2778 = vmatpush2.bf16.msra.mxu0 0
  %2779 = vmatprep.subr.bf16.mxu0 0
  %2780 = vmatpush2.bf16.msra.mxu0 0
  %2781 = vmatprep.mubr.bf16.mxu0 0
  %2782 = vmatmul.mubr.bf16.gmra.mxu0 %v2707
  %v2783 = vpop.f32.mrf.mxu0
  %v2784 = vadd.f32 0.0, %v2783
  %v2785 = vpop.f32.mrf.mxu0
  %v2786 = vadd.f32 0.0, %v2785
  %v2787 = vpop.f32.mrf.mxu0
  %v2788 = vpop.f32.mrf.mxu0
  %2789 = vdwg.mxu0
  %v2790 = vadd.f32 %v2703, %v2743
  %v2791 = vadd.f32 %v2704, %v2745
  %v2792 = vadd.f32 %v2705, %v2784
  %v2793 = vadd.f32 %v2706, %v2786
  %v2794 = vxor.u32 %v2790, 2147483648
  %v2795 = vxor.u32 %v2791, 2147483648
  %v2796 = vxor.u32 %v2792, 2147483648
  %v2797 = vmul.f32 %v2794, 1.442695
  %v2798 = vpow.pop %v2797
  %v2799 = vmul.f32 %v2795, 1.442695
  %v2800 = vpow.pop %v2799
  %v2801 = vmul.f32 %v2796, 1.442695
  %v2802 = vpow.pop %v2801
  %v2803 = vadd.f32 %v2798, 1.0
  %v2804 = vadd.f32 %v2800, 1.0
  %v2805 = vadd.f32 %v2802, 1.0
  %v2806 = vrcp.pop %v2803
  %v2807 = vmul.f32 1.0, %v2806
  %v2808 = vrcp.pop %v2804
  %v2809 = vmul.f32 1.0, %v2808
  %v2810 = vrcp.pop %v2805
  %v2811 = vmul.f32 1.0, %v2810
  %v2812 = vtanh.pop %v2793
  %v2813 = vmul.f32 %v2809, %v2698
  %v2814 = vmul.f32 %v2807, %v2812
  %v2815 = vadd.f32 %v2813, %v2814
  %v2816 = vtanh.pop %v2815
  %v2817 = vmul.f32 %v2811, %v2816
  %v2818 = vld [vmem:[#allocation2 + $0x50] sm:$0xff]
  %v2819 = vld [vmem:[#allocation2 + $0x58] sm:$0xff]
  %v2820 = vunpack.c.l.bf16 %v2818
  %v2821 = vunpack.c.h.bf16 %v2818
  %v2822 = vunpack.c.l.bf16 %v2819
  %v2823 = vunpack.c.h.bf16 %v2819
  %v2824 = vpack.c.bf16 %v2817, %v2817
  %2825 = vmatprep.subr.bf16.mxu0 %v2205
  %2826 = vmatpush1.bf16.msra.mxu0 %v2204
  %2827 = vmatprep.subr.bf16.mxu0 %v2201
  %2828 = vmatpush1.bf16.msra.mxu0 %v2200
  %2829 = vmatprep.subr.bf16.mxu0 %v2197
  %2830 = vmatpush1.bf16.msra.mxu0 %v2196
  %2831 = vmatprep.subr.bf16.mxu0 %v2193
  %2832 = vmatpush1.bf16.msra.mxu0 %v2192
  %2833 = vmatprep.subr.bf16.mxu0 %v2189
  %2834 = vmatpush1.bf16.msra.mxu0 %v2188
  %2835 = vmatprep.subr.bf16.mxu0 %v2185
  %2836 = vmatpush1.bf16.msra.mxu0 %v2184
  %2837 = vmatprep.subr.bf16.mxu0 %v2181
  %2838 = vmatpush1.bf16.msra.mxu0 %v2180
  %2839 = vmatprep.subr.bf16.mxu0 %v2177
  %2840 = vmatpush1.bf16.msra.mxu0 %v2176
  %2841 = vmatprep.subr.bf16.mxu0 0
  %2842 = vmatpush2.bf16.msra.mxu0 0
  %2843 = vmatprep.subr.bf16.mxu0 0
  %2844 = vmatpush2.bf16.msra.mxu0 0
  %2845 = vmatprep.subr.bf16.mxu0 0
  %2846 = vmatpush2.bf16.msra.mxu0 0
  %2847 = vmatprep.subr.bf16.mxu0 0
  %2848 = vmatpush2.bf16.msra.mxu0 0
  %2849 = vmatprep.subr.bf16.mxu0 0
  %2850 = vmatpush2.bf16.msra.mxu0 0
  %2851 = vmatprep.subr.bf16.mxu0 0
  %2852 = vmatpush2.bf16.msra.mxu0 0
  %2853 = vmatprep.subr.bf16.mxu0 0
  %2854 = vmatpush2.bf16.msra.mxu0 0
  %2855 = vmatprep.subr.bf16.mxu0 0
  %2856 = vmatpush2.bf16.msra.mxu0 0
  %2857 = vmatprep.mubr.bf16.mxu0 0
  %2858 = vmatmul.mubr.bf16.gmra.mxu0 %v2824
  %v2859 = vpop.f32.mrf.mxu0
  %v2860 = vadd.f32 0.0, %v2859
  %v2861 = vpop.f32.mrf.mxu0
  %v2862 = vadd.f32 0.0, %v2861
  %v2863 = vpop.f32.mrf.mxu0
  %v2864 = vpop.f32.mrf.mxu0
  %2865 = vdwg.mxu0
  %2866 = vmatprep.subr.bf16.mxu0 %v2207
  %2867 = vmatpush1.bf16.msra.mxu0 %v2206
  %2868 = vmatprep.subr.bf16.mxu0 %v2203
  %2869 = vmatpush1.bf16.msra.mxu0 %v2202
  %2870 = vmatprep.subr.bf16.mxu0 %v2199
  %2871 = vmatpush1.bf16.msra.mxu0 %v2198
  %2872 = vmatprep.subr.bf16.mxu0 %v2195
  %2873 = vmatpush1.bf16.msra.mxu0 %v2194
  %2874 = vmatprep.subr.bf16.mxu0 %v2191
  %2875 = vmatpush1.bf16.msra.mxu0 %v2190
  %2876 = vmatprep.subr.bf16.mxu0 %v2187
  %2877 = vmatpush1.bf16.msra.mxu0 %v2186
  %2878 = vmatprep.subr.bf16.mxu0 %v2183
  %2879 = vmatpush1.bf16.msra.mxu0 %v2182
  %2880 = vmatprep.subr.bf16.mxu0 %v2179
  %2881 = vmatpush1.bf16.msra.mxu0 %v2178
  %2882 = vmatprep.subr.bf16.mxu0 0
  %2883 = vmatpush2.bf16.msra.mxu0 0
  %2884 = vmatprep.subr.bf16.mxu0 0
  %2885 = vmatpush2.bf16.msra.mxu0 0
  %2886 = vmatprep.subr.bf16.mxu0 0
  %2887 = vmatpush2.bf16.msra.mxu0 0
  %2888 = vmatprep.subr.bf16.mxu0 0
  %2889 = vmatpush2.bf16.msra.mxu0 0
  %2890 = vmatprep.subr.bf16.mxu0 0
  %2891 = vmatpush2.bf16.msra.mxu0 0
  %2892 = vmatprep.subr.bf16.mxu0 0
  %2893 = vmatpush2.bf16.msra.mxu0 0
  %2894 = vmatprep.subr.bf16.mxu0 0
  %2895 = vmatpush2.bf16.msra.mxu0 0
  %2896 = vmatprep.subr.bf16.mxu0 0
  %2897 = vmatpush2.bf16.msra.mxu0 0
  %2898 = vmatprep.mubr.bf16.mxu0 0
  %2899 = vmatmul.mubr.bf16.gmra.mxu0 %v2824
  %v2900 = vpop.f32.mrf.mxu0
  %v2901 = vadd.f32 0.0, %v2900
  %v2902 = vpop.f32.mrf.mxu0
  %v2903 = vadd.f32 0.0, %v2902
  %v2904 = vpop.f32.mrf.mxu0
  %v2905 = vpop.f32.mrf.mxu0
  %2906 = vdwg.mxu0
  %v2907 = vadd.f32 %v2820, %v2860
  %v2908 = vadd.f32 %v2821, %v2862
  %v2909 = vadd.f32 %v2822, %v2901
  %v2910 = vadd.f32 %v2823, %v2903
  %v2911 = vxor.u32 %v2907, 2147483648
  %v2912 = vxor.u32 %v2908, 2147483648
  %v2913 = vxor.u32 %v2909, 2147483648
  %v2914 = vmul.f32 %v2911, 1.442695
  %v2915 = vpow.pop %v2914
  %v2916 = vmul.f32 %v2912, 1.442695
  %v2917 = vpow.pop %v2916
  %v2918 = vmul.f32 %v2913, 1.442695
  %v2919 = vpow.pop %v2918
  %v2920 = vadd.f32 %v2915, 1.0
  %v2921 = vadd.f32 %v2917, 1.0
  %v2922 = vadd.f32 %v2919, 1.0
  %v2923 = vrcp.pop %v2920
  %v2924 = vmul.f32 1.0, %v2923
  %v2925 = vrcp.pop %v2921
  %v2926 = vmul.f32 1.0, %v2925
  %v2927 = vrcp.pop %v2922
  %v2928 = vmul.f32 1.0, %v2927
  %v2929 = vtanh.pop %v2910
  %v2930 = vmul.f32 %v2926, %v2815
  %v2931 = vmul.f32 %v2924, %v2929
  %v2932 = vadd.f32 %v2930, %v2931
  %v2933 = vtanh.pop %v2932
  %v2934 = vmul.f32 %v2928, %v2933
  %v2935 = vld [vmem:[#allocation2 + $0x60] sm:$0xff]
  %v2936 = vld [vmem:[#allocation2 + $0x68] sm:$0xff]
  %v2937 = vunpack.c.l.bf16 %v2935
  %v2938 = vunpack.c.h.bf16 %v2935
  %v2939 = vunpack.c.l.bf16 %v2936
  %v2940 = vunpack.c.h.bf16 %v2936
  %v2941 = vpack.c.bf16 %v2934, %v2934
  %2942 = vmatprep.subr.bf16.mxu0 %v2205
  %2943 = vmatpush1.bf16.msra.mxu0 %v2204
  %2944 = vmatprep.subr.bf16.mxu0 %v2201
  %2945 = vmatpush1.bf16.msra.mxu0 %v2200
  %2946 = vmatprep.subr.bf16.mxu0 %v2197
  %2947 = vmatpush1.bf16.msra.mxu0 %v2196
  %2948 = vmatprep.subr.bf16.mxu0 %v2193
  %2949 = vmatpush1.bf16.msra.mxu0 %v2192
  %2950 = vmatprep.subr.bf16.mxu0 %v2189
  %2951 = vmatpush1.bf16.msra.mxu0 %v2188
  %2952 = vmatprep.subr.bf16.mxu0 %v2185
  %2953 = vmatpush1.bf16.msra.mxu0 %v2184
  %2954 = vmatprep.subr.bf16.mxu0 %v2181
  %2955 = vmatpush1.bf16.msra.mxu0 %v2180
  %2956 = vmatprep.subr.bf16.mxu0 %v2177
  %2957 = vmatpush1.bf16.msra.mxu0 %v2176
  %2958 = vmatprep.subr.bf16.mxu0 0
  %2959 = vmatpush2.bf16.msra.mxu0 0
  %2960 = vmatprep.subr.bf16.mxu0 0
  %2961 = vmatpush2.bf16.msra.mxu0 0
  %2962 = vmatprep.subr.bf16.mxu0 0
  %2963 = vmatpush2.bf16.msra.mxu0 0
  %2964 = vmatprep.subr.bf16.mxu0 0
  %2965 = vmatpush2.bf16.msra.mxu0 0
  %2966 = vmatprep.subr.bf16.mxu0 0
  %2967 = vmatpush2.bf16.msra.mxu0 0
  %2968 = vmatprep.subr.bf16.mxu0 0
  %2969 = vmatpush2.bf16.msra.mxu0 0
  %2970 = vmatprep.subr.bf16.mxu0 0
  %2971 = vmatpush2.bf16.msra.mxu0 0
  %2972 = vmatprep.subr.bf16.mxu0 0
  %2973 = vmatpush2.bf16.msra.mxu0 0
  %2974 = vmatprep.mubr.bf16.mxu0 0
  %2975 = vmatmul.mubr.bf16.gmra.mxu0 %v2941
  %v2976 = vpop.f32.mrf.mxu0
  %v2977 = vadd.f32 0.0, %v2976
  %v2978 = vpop.f32.mrf.mxu0
  %v2979 = vadd.f32 0.0, %v2978
  %v2980 = vpop.f32.mrf.mxu0
  %v2981 = vpop.f32.mrf.mxu0
  %2982 = vdwg.mxu0
  %2983 = vmatprep.subr.bf16.mxu0 %v2207
  %2984 = vmatpush1.bf16.msra.mxu0 %v2206
  %2985 = vmatprep.subr.bf16.mxu0 %v2203
  %2986 = vmatpush1.bf16.msra.mxu0 %v2202
  %2987 = vmatprep.subr.bf16.mxu0 %v2199
  %2988 = vmatpush1.bf16.msra.mxu0 %v2198
  %2989 = vmatprep.subr.bf16.mxu0 %v2195
  %2990 = vmatpush1.bf16.msra.mxu0 %v2194
  %2991 = vmatprep.subr.bf16.mxu0 %v2191
  %2992 = vmatpush1.bf16.msra.mxu0 %v2190
  %2993 = vmatprep.subr.bf16.mxu0 %v2187
  %2994 = vmatpush1.bf16.msra.mxu0 %v2186
  %2995 = vmatprep.subr.bf16.mxu0 %v2183
  %2996 = vmatpush1.bf16.msra.mxu0 %v2182
  %2997 = vmatprep.subr.bf16.mxu0 %v2179
  %2998 = vmatpush1.bf16.msra.mxu0 %v2178
  %2999 = vmatprep.subr.bf16.mxu0 0
  %3000 = vmatpush2.bf16.msra.mxu0 0
  %3001 = vmatprep.subr.bf16.mxu0 0
  %3002 = vmatpush2.bf16.msra.mxu0 0
  %3003 = vmatprep.subr.bf16.mxu0 0
  %3004 = vmatpush2.bf16.msra.mxu0 0
  %3005 = vmatprep.subr.bf16.mxu0 0
  %3006 = vmatpush2.bf16.msra.mxu0 0
  %3007 = vmatprep.subr.bf16.mxu0 0
  %3008 = vmatpush2.bf16.msra.mxu0 0
  %3009 = vmatprep.subr.bf16.mxu0 0
  %3010 = vmatpush2.bf16.msra.mxu0 0
  %3011 = vmatprep.subr.bf16.mxu0 0
  %3012 = vmatpush2.bf16.msra.mxu0 0
  %3013 = vmatprep.subr.bf16.mxu0 0
  %3014 = vmatpush2.bf16.msra.mxu0 0
  %3015 = vmatprep.mubr.bf16.mxu0 0
  %3016 = vmatmul.mubr.bf16.gmra.mxu0 %v2941
  %v3017 = vpop.f32.mrf.mxu0
  %v3018 = vadd.f32 0.0, %v3017
  %v3019 = vpop.f32.mrf.mxu0
  %v3020 = vadd.f32 0.0, %v3019
  %v3021 = vpop.f32.mrf.mxu0
  %v3022 = vpop.f32.mrf.mxu0
  %3023 = vdwg.mxu0
  %v3024 = vadd.f32 %v2937, %v2977
  %v3025 = vadd.f32 %v2938, %v2979
  %v3026 = vadd.f32 %v2939, %v3018
  %v3027 = vadd.f32 %v2940, %v3020
  %v3028 = vxor.u32 %v3024, 2147483648
  %v3029 = vxor.u32 %v3025, 2147483648
  %v3030 = vxor.u32 %v3026, 2147483648
  %v3031 = vmul.f32 %v3028, 1.442695
  %v3032 = vpow.pop %v3031
  %v3033 = vmul.f32 %v3029, 1.442695
  %v3034 = vpow.pop %v3033
  %v3035 = vmul.f32 %v3030, 1.442695
  %v3036 = vpow.pop %v3035
  %v3037 = vadd.f32 %v3032, 1.0
  %v3038 = vadd.f32 %v3034, 1.0
  %v3039 = vadd.f32 %v3036, 1.0
  %v3040 = vrcp.pop %v3037
  %v3041 = vmul.f32 1.0, %v3040
  %v3042 = vrcp.pop %v3038
  %v3043 = vmul.f32 1.0, %v3042
  %v3044 = vrcp.pop %v3039
  %v3045 = vmul.f32 1.0, %v3044
  %v3046 = vtanh.pop %v3027
  %v3047 = vmul.f32 %v3043, %v2932
  %v3048 = vmul.f32 %v3041, %v3046
  %v3049 = vadd.f32 %v3047, %v3048
  %v3050 = vtanh.pop %v3049
  %v3051 = vmul.f32 %v3045, %v3050
  %v3052 = vld [vmem:[#allocation2 + $0x70] sm:$0xff]
  %v3053 = vld [vmem:[#allocation2 + $0x78] sm:$0xff]
  %v3054 = vunpack.c.l.bf16 %v3052
  %v3055 = vunpack.c.h.bf16 %v3052
  %v3056 = vunpack.c.l.bf16 %v3053
  %v3057 = vunpack.c.h.bf16 %v3053
  %v3058 = vpack.c.bf16 %v3051, %v3051
  %3059 = vmatprep.subr.bf16.mxu0 %v2205
  %3060 = vmatpush1.bf16.msra.mxu0 %v2204
  %3061 = vmatprep.subr.bf16.mxu0 %v2201
  %3062 = vmatpush1.bf16.msra.mxu0 %v2200
  %3063 = vmatprep.subr.bf16.mxu0 %v2197
  %3064 = vmatpush1.bf16.msra.mxu0 %v2196
  %3065 = vmatprep.subr.bf16.mxu0 %v2193
  %3066 = vmatpush1.bf16.msra.mxu0 %v2192
  %3067 = vmatprep.subr.bf16.mxu0 %v2189
  %3068 = vmatpush1.bf16.msra.mxu0 %v2188
  %3069 = vmatprep.subr.bf16.mxu0 %v2185
  %3070 = vmatpush1.bf16.msra.mxu0 %v2184
  %3071 = vmatprep.subr.bf16.mxu0 %v2181
  %3072 = vmatpush1.bf16.msra.mxu0 %v2180
  %3073 = vmatprep.subr.bf16.mxu0 %v2177
  %3074 = vmatpush1.bf16.msra.mxu0 %v2176
  %3075 = vmatprep.subr.bf16.mxu0 0
  %3076 = vmatpush2.bf16.msra.mxu0 0
  %3077 = vmatprep.subr.bf16.mxu0 0
  %3078 = vmatpush2.bf16.msra.mxu0 0
  %3079 = vmatprep.subr.bf16.mxu0 0
  %3080 = vmatpush2.bf16.msra.mxu0 0
  %3081 = vmatprep.subr.bf16.mxu0 0
  %3082 = vmatpush2.bf16.msra.mxu0 0
  %3083 = vmatprep.subr.bf16.mxu0 0
  %3084 = vmatpush2.bf16.msra.mxu0 0
  %3085 = vmatprep.subr.bf16.mxu0 0
  %3086 = vmatpush2.bf16.msra.mxu0 0
  %3087 = vmatprep.subr.bf16.mxu0 0
  %3088 = vmatpush2.bf16.msra.mxu0 0
  %3089 = vmatprep.subr.bf16.mxu0 0
  %3090 = vmatpush2.bf16.msra.mxu0 0
  %3091 = vmatprep.mubr.bf16.mxu0 0
  %3092 = vmatmul.mubr.bf16.gmra.mxu0 %v3058
  %v3093 = vpop.f32.mrf.mxu0
  %v3094 = vadd.f32 0.0, %v3093
  %v3095 = vpop.f32.mrf.mxu0
  %v3096 = vadd.f32 0.0, %v3095
  %v3097 = vpop.f32.mrf.mxu0
  %v3098 = vpop.f32.mrf.mxu0
  %3099 = vdwg.mxu0
  %3100 = vmatprep.subr.bf16.mxu0 %v2207
  %3101 = vmatpush1.bf16.msra.mxu0 %v2206
  %3102 = vmatprep.subr.bf16.mxu0 %v2203
  %3103 = vmatpush1.bf16.msra.mxu0 %v2202
  %3104 = vmatprep.subr.bf16.mxu0 %v2199
  %3105 = vmatpush1.bf16.msra.mxu0 %v2198
  %3106 = vmatprep.subr.bf16.mxu0 %v2195
  %3107 = vmatpush1.bf16.msra.mxu0 %v2194
  %3108 = vmatprep.subr.bf16.mxu0 %v2191
  %3109 = vmatpush1.bf16.msra.mxu0 %v2190
  %3110 = vmatprep.subr.bf16.mxu0 %v2187
  %3111 = vmatpush1.bf16.msra.mxu0 %v2186
  %3112 = vmatprep.subr.bf16.mxu0 %v2183
  %3113 = vmatpush1.bf16.msra.mxu0 %v2182
  %3114 = vmatprep.subr.bf16.mxu0 %v2179
  %3115 = vmatpush1.bf16.msra.mxu0 %v2178
  %3116 = vmatprep.subr.bf16.mxu0 0
  %3117 = vmatpush2.bf16.msra.mxu0 0
  %3118 = vmatprep.subr.bf16.mxu0 0
  %3119 = vmatpush2.bf16.msra.mxu0 0
  %3120 = vmatprep.subr.bf16.mxu0 0
  %3121 = vmatpush2.bf16.msra.mxu0 0
  %3122 = vmatprep.subr.bf16.mxu0 0
  %3123 = vmatpush2.bf16.msra.mxu0 0
  %3124 = vmatprep.subr.bf16.mxu0 0
  %3125 = vmatpush2.bf16.msra.mxu0 0
  %3126 = vmatprep.subr.bf16.mxu0 0
  %3127 = vmatpush2.bf16.msra.mxu0 0
  %3128 = vmatprep.subr.bf16.mxu0 0
  %3129 = vmatpush2.bf16.msra.mxu0 0
  %3130 = vmatprep.subr.bf16.mxu0 0
  %3131 = vmatpush2.bf16.msra.mxu0 0
  %3132 = vmatprep.mubr.bf16.mxu0 0
  %3133 = vmatmul.mubr.bf16.gmra.mxu0 %v3058
  %v3134 = vpop.f32.mrf.mxu0
  %v3135 = vadd.f32 0.0, %v3134
  %v3136 = vpop.f32.mrf.mxu0
  %v3137 = vadd.f32 0.0, %v3136
  %v3138 = vpop.f32.mrf.mxu0
  %v3139 = vpop.f32.mrf.mxu0
  %3140 = vdwg.mxu0
  %v3141 = vadd.f32 %v3054, %v3094
  %v3142 = vadd.f32 %v3055, %v3096
  %v3143 = vadd.f32 %v3056, %v3135
  %v3144 = vadd.f32 %v3057, %v3137
  %v3145 = vxor.u32 %v3141, 2147483648
  %v3146 = vxor.u32 %v3142, 2147483648
  %v3147 = vxor.u32 %v3143, 2147483648
  %v3148 = vmul.f32 %v3145, 1.442695
  %v3149 = vpow.pop %v3148
  %v3150 = vmul.f32 %v3146, 1.442695
  %v3151 = vpow.pop %v3150
  %v3152 = vmul.f32 %v3147, 1.442695
  %v3153 = vpow.pop %v3152
  %v3154 = vadd.f32 %v3149, 1.0
  %v3155 = vadd.f32 %v3151, 1.0
  %v3156 = vadd.f32 %v3153, 1.0
  %v3157 = vrcp.pop %v3154
  %v3158 = vmul.f32 1.0, %v3157
  %v3159 = vrcp.pop %v3155
  %v3160 = vmul.f32 1.0, %v3159
  %v3161 = vrcp.pop %v3156
  %v3162 = vmul.f32 1.0, %v3161
  %v3163 = vtanh.pop %v3144
  %v3164 = vmul.f32 %v3160, %v3049
  %v3165 = vmul.f32 %v3158, %v3163
  %v3166 = vadd.f32 %v3164, %v3165
  %v3167 = vtanh.pop %v3166
  %v3168 = vmul.f32 %v3162, %v3167
  %v3169 = vpack.c.bf16 %v3168, %v3168
  %v3170 = vld [vmem:[%s7] sm:$0xf]
  %v3171 = vld [vmem:[%s7 + $0x4] sm:$0xf]
  %v3172 = vld [vmem:[%s7 + $0x8] sm:$0xf]
  %v3173 = vld [vmem:[%s7 + $0xc] sm:$0xf]
  %v3174 = vld [vmem:[%s7 + $0x10] sm:$0xf]
  %v3175 = vld [vmem:[%s7 + $0x14] sm:$0xf]
  %v3176 = vld [vmem:[%s7 + $0x18] sm:$0xf]
  %v3177 = vld [vmem:[%s7 + $0x1c] sm:$0xf]
  %v3178 = vld [vmem:[%s7 + $0x20] sm:$0xf]
  %v3179 = vld [vmem:[%s7 + $0x24] sm:$0xf]
  %v3180 = vld [vmem:[%s7 + $0x28] sm:$0xf]
  %v3181 = vld [vmem:[%s7 + $0x2c] sm:$0xf]
  %v3182 = vld [vmem:[%s7 + $0x30] sm:$0xf]
  %v3183 = vld [vmem:[%s7 + $0x34] sm:$0xf]
  %v3184 = vld [vmem:[%s7 + $0x38] sm:$0xf]
  %v3185 = vld [vmem:[%s7 + $0x3c] sm:$0xf]
  %v3186 = vld [vmem:[%s8] sm:$0x1]
  %v3188 = vlaneseq
  %v3189 = vshrl.u32 %v3188, 7
  %v3190 = vsub.s32 0, %v3189
  %v3191 = vrot.slane %v3186, %v3190
  %v3209 = vunpack.c.l.b16 %v3170
  %v3210 = vunpack.c.l.b16 %v3171
  %v3211 = vunpack.c.l.b16 %v3172
  %v3212 = vunpack.c.l.b16 %v3173
  %v3213 = vunpack.c.l.b16 %v3174
  %v3214 = vunpack.c.l.b16 %v3175
  %v3215 = vunpack.c.l.b16 %v3176
  %v3216 = vunpack.c.l.b16 %v3177
  %v3217 = vunpack.c.l.b16 %v3178
  %v3218 = vunpack.c.l.b16 %v3179
  %v3219 = vunpack.c.l.b16 %v3180
  %v3220 = vunpack.c.l.b16 %v3181
  %v3221 = vunpack.c.l.b16 %v3182
  %v3222 = vunpack.c.l.b16 %v3183
  %v3223 = vunpack.c.l.b16 %v3184
  %v3224 = vunpack.c.l.b16 %v3185
  %v3225 = vpack.c.b16 %v3210, %v3209
  %v3226 = vpack.c.b16 %v3212, %v3211
  %v3227 = vpack.c.b16 %v3214, %v3213
  %v3228 = vpack.c.b16 %v3216, %v3215
  %v3229 = vpack.c.b16 %v3218, %v3217
  %v3230 = vpack.c.b16 %v3220, %v3219
  %v3231 = vpack.c.b16 %v3222, %v3221
  %v3232 = vpack.c.b16 %v3224, %v3223
  %3241 = vmatprep.subr.bf16.mxu0 0
  %3242 = vmatpush1.bf16.msra.mxu0 %v3232
  %3243 = vmatprep.subr.bf16.mxu0 0
  %3244 = vmatpush1.bf16.msra.mxu0 %v3231
  %3245 = vmatprep.subr.bf16.mxu0 0
  %3246 = vmatpush1.bf16.msra.mxu0 %v3230
  %3247 = vmatprep.subr.bf16.mxu0 0
  %3248 = vmatpush1.bf16.msra.mxu0 %v3229
  %3249 = vmatprep.subr.bf16.mxu0 0
  %3250 = vmatpush1.bf16.msra.mxu0 %v3228
  %3251 = vmatprep.subr.bf16.mxu0 0
  %3252 = vmatpush1.bf16.msra.mxu0 %v3227
  %3253 = vmatprep.subr.bf16.mxu0 0
  %3254 = vmatpush1.bf16.msra.mxu0 %v3226
  %3255 = vmatprep.subr.bf16.mxu0 0
  %3256 = vmatpush1.bf16.msra.mxu0 %v3225
  %3257 = vmatprep.subr.bf16.mxu0 0
  %3258 = vmatpush2.bf16.msra.mxu0 0
  %3259 = vmatprep.subr.bf16.mxu0 0
  %3260 = vmatpush2.bf16.msra.mxu0 0
  %3261 = vmatprep.subr.bf16.mxu0 0
  %3262 = vmatpush2.bf16.msra.mxu0 0
  %3263 = vmatprep.subr.bf16.mxu0 0
  %3264 = vmatpush2.bf16.msra.mxu0 0
  %3265 = vmatprep.subr.bf16.mxu0 0
  %3266 = vmatpush2.bf16.msra.mxu0 0
  %3267 = vmatprep.subr.bf16.mxu0 0
  %3268 = vmatpush2.bf16.msra.mxu0 0
  %3269 = vmatprep.subr.bf16.mxu0 0
  %3270 = vmatpush2.bf16.msra.mxu0 0
  %3271 = vmatprep.subr.bf16.mxu0 0
  %3272 = vmatpush2.bf16.msra.mxu0 0
  %3273 = vmatprep.mubr.bf16.mxu0 0
  %3274 = vmatmul.mubr.bf16.gmra.mxu0 %v3169
  %v3275 = vpop.f32.mrf.mxu0
  %v3276 = vadd.f32 %v3191, %v3275
  %v3277 = vpop.f32.mrf.mxu0
  %v3278 = vpop.f32.mrf.mxu0
  %v3279 = vpop.f32.mrf.mxu0
  %3280 = vdwg.mxu0
  %3281 = vst [vmem:[%s9] sm:$0xff] %v3276
  // Predicated region
  $region38: #{lstm_forward.1} parent=0 // pred_check
    _
  $region39: #{lstm_forward.1} parent=0 // pred_check_branch
    %3283 = sbr.rel (0) target = $region41
  $region40: #{lstm_forward.1} parent=0 // pred_region
    _
  $region41: #{lstm_forward.1} parent=0 // pred_fallthru
    _
  // Predicated region
  $region42: #{lstm_forward.1} parent=0 // pred_check
    _
  $region43: #{lstm_forward.1} parent=0 // pred_check_branch
    %3285 = sbr.rel (0) target = $region45
  $region44: #{lstm_forward.1} parent=0 // pred_region
    _
  $region45: #{lstm_forward.1} parent=0 // pred_fallthru
    _

</llo_original>
